<compile_context>
chip_gen: v7x
topology: tpu7x:2x2x1
jax: 0.10.0
libtpu: 0.0.40
codegen_flags: <defaults>
</compile_context>

<pallas_src>
import jax
import jax.numpy as jnp
from jax import lax
from jax.experimental import pallas as pl
from jax.experimental.pallas import tpu as pltpu


def _channel_loss_kernel(a_r_ref, e_r_ref, sa_ref, se_ref, a_c_ref, e_c_ref,
                         out_ref):
    # a_r_ref/e_r_ref : (N_pad, tile) column slabs of A / EMA for the output
    #                   ROW block (columns [i*tile, (i+1)*tile) of the input).
    # a_c_ref/e_c_ref : (N_pad, tile) column slabs for the output COLUMN block.
    # sa_ref/se_ref   : (tile, 1) per-row scales = rsqrt(||row||^2) * sqrt(1/N).
    # out_ref         : (tile, tile) block of the loss matrix.
    contract = (((0,), (0,)), ((), ()))        # contract over N_pad, no batch

    s = lax.dot_general(a_r_ref[...], a_c_ref[...], contract,
                        preferred_element_type=jnp.float32)      # (tile, tile)
    es = lax.dot_general(e_r_ref[...], e_c_ref[...], contract,
                         preferred_element_type=jnp.float32)     # (tile, tile)

    d = s * sa_ref[...] - es * se_ref[...]     # 1/N already folded into scales
    out_ref[...] = (d * d).astype(out_ref.dtype)


def _round_up(x, m):
    return ((x + m - 1) // m) * m


def channel_loss(activations, ema_activations, batch_size, world_size):
    """Pallas implementation of ChannelLoss.forward (world_size == 1 path)."""
    assert activations.shape == ema_activations.shape
    # TODO(synk): world_size > 1 (GatherLayer all-gather) not implemented;
    # single-device path only.
    assert world_size == 1
    N = batch_size * world_size

    act = activations.reshape(N, -1).astype(jnp.float32)
    ema = ema_activations.reshape(N, -1).astype(jnp.float32)
    D = act.shape[1]

    # Pad N to the 8-sublane minimum with zero rows (zero rows don't change
    # A^T A; the 1/N factor below uses the original N).
    n_pad = max(8, _round_up(N, 8))
    if n_pad != N:
        act = jnp.pad(act, ((0, n_pad - N), (0, 0)))
        ema = jnp.pad(ema, ((0, n_pad - N), (0, 0)))

    # 2-D square output tiles.  512 is the sweet spot (>=85% of store
    # roofline, ~5 MiB/step VMEM incl. double buffers + s/es intermediates,
    # and >=4 grid blocks for D >= 1024 so v7x's 2 TCs both get work).
    if D <= 512:
        tile = max(128, _round_up(D, 128))
    else:
        tile = 512
    d_pad = _round_up(D, tile)
    if d_pad != D:
        act = jnp.pad(act, ((0, 0), (0, d_pad - D)))
        ema = jnp.pad(ema, ((0, 0), (0, d_pad - D)))

    inv_n = 1.0 / float(N)
    sqrt_inv_n = float(inv_n) ** 0.5

    def row_scales(a):
        # ||S_i||^2 = c_i^T (A A^T) c_i  with c_i = A[:, i]  (Gram trick).
        g = a @ a.T                                   # (n_pad, n_pad)
        m = g @ a                                     # (n_pad, d_pad)
        sumsq = jnp.sum(a * m, axis=0)                # (d_pad,)
        if d_pad != D:
            # Keep padded (all-zero) rows finite; they are sliced off below.
            col = jnp.arange(d_pad)
            sumsq = jnp.where(col < D, sumsq, 1.0)
        return (lax.rsqrt(sumsq) * sqrt_inv_n).reshape(d_pad, 1)

    scale_a = row_scales(act)
    scale_e = row_scales(ema)

    nblk = d_pad // tile
    grid = (nblk, nblk)                               # j (columns) innermost

    out = pl.pallas_call(
        _channel_loss_kernel,
        out_shape=jax.ShapeDtypeStruct((d_pad, d_pad), jnp.float32),
        grid_spec=pltpu.PrefetchScalarGridSpec(
            num_scalar_prefetch=0,
            grid=grid,
            in_specs=[
                pl.BlockSpec((n_pad, tile), lambda i, j: (0, i)),  # A row slab
                pl.BlockSpec((n_pad, tile), lambda i, j: (0, i)),  # E row slab
                pl.BlockSpec((tile, 1), lambda i, j: (i, 0)),      # scale_a
                pl.BlockSpec((tile, 1), lambda i, j: (i, 0)),      # scale_e
                pl.BlockSpec((n_pad, tile), lambda i, j: (0, j)),  # A col slab
                pl.BlockSpec((n_pad, tile), lambda i, j: (0, j)),  # E col slab
            ],
            out_specs=pl.BlockSpec((tile, tile), lambda i, j: (i, j)),
        ),
        compiler_params=pltpu.CompilerParams(
            dimension_semantics=("parallel", "parallel"),
            vmem_limit_bytes=48 * 1024 * 1024,
        ),
    )(act, ema, scale_a, scale_e, act, ema)

    if d_pad != D:
        out = out[:D, :D]
    return out


def _reference(activations, ema_activations, batch_size, world_size):
    N = batch_size * world_size
    a = activations.reshape(N, -1).astype(jnp.float32)
    e = ema_activations.reshape(N, -1).astype(jnp.float32)
    s = a.T @ a
    s = s / jnp.linalg.norm(s, ord=2, axis=1, keepdims=True)
    es = e.T @ e
    es = es / jnp.linalg.norm(es, ord=2, axis=1, keepdims=True)
    return (s - es) ** 2 / N


if __name__ == "__main__":
    batch_size, world_size = 2, 1
    C, H, W = 4, 16, 16            # D = C*H*W = 1024

    key = jax.random.PRNGKey(0)
    k1, k2 = jax.random.split(key)
    activations = jax.random.normal(k1, (batch_size, C, H, W), jnp.float32)
    ema_activations = jax.random.normal(k2, (batch_size, C, H, W), jnp.float32)

    out = channel_loss(activations, ema_activations, batch_size, world_size)
    out = jax.block_until_ready(out)

    ref = _reference(activations, ema_activations, batch_size, world_size)
    assert out.shape == ref.shape == (C * H * W, C * H * W)
    assert jnp.allclose(out, ref, atol=1e-5, rtol=1e-5)

    print("KERNEL_OK")
</pallas_src>

<mosaic_0001>
module attributes {stable_mosaic.version = 11 : i64} {
  func.func @_channel_loss_kernel(%arg0: i32, %arg1: i32, %arg2: memref<8x512xf32, #tpu.memory_space<vmem>>, %arg3: memref<8x512xf32, #tpu.memory_space<vmem>>, %arg4: memref<512x1xf32, #tpu.memory_space<vmem>>, %arg5: memref<512x1xf32, #tpu.memory_space<vmem>>, %arg6: memref<8x512xf32, #tpu.memory_space<vmem>>, %arg7: memref<8x512xf32, #tpu.memory_space<vmem>>, %arg8: memref<512x512xf32, #tpu.memory_space<vmem>>) attributes {dimension_semantics = [#tpu.dimension_semantics<parallel>, #tpu.dimension_semantics<parallel>], iteration_bounds = array<i64: 2, 2>, scalar_prefetch = 0 : i64, scratch_operands = 0 : i64, tpu.core_type = #tpu.core_type<tc>, window_params = [{transform_indices = @transform_0, window_bounds = array<i64: 8, 512>}, {transform_indices = @transform_1, window_bounds = array<i64: 8, 512>}, {transform_indices = @transform_2, window_bounds = array<i64: 512, 1>}, {transform_indices = @transform_3, window_bounds = array<i64: 512, 1>}, {transform_indices = @transform_4, window_bounds = array<i64: 8, 512>}, {transform_indices = @transform_5, window_bounds = array<i64: 8, 512>}, {transform_indices = @transform_6, window_bounds = array<i64: 512, 512>}]} {
    %c0 = arith.constant 0 : index
    %c0_0 = arith.constant 0 : index
    %0 = vector.load %arg2[%c0, %c0_0] : memref<8x512xf32, #tpu.memory_space<vmem>>, vector<8x512xf32>
    %c0_1 = arith.constant 0 : index
    %c0_2 = arith.constant 0 : index
    %1 = vector.load %arg6[%c0_1, %c0_2] : memref<8x512xf32, #tpu.memory_space<vmem>>, vector<8x512xf32>
    %cst = arith.constant dense<0.000000e+00> : vector<512x512xf32>
    %2 = tpu.matmul %0, %1, %cst {dimension_numbers = #tpu.dot_dimension_numbers<[0], [0], [1], [1], [0, 1, 1, 1], [], []>} : vector<8x512xf32>, vector<8x512xf32>, vector<512x512xf32> -> vector<512x512xf32>
    %c0_3 = arith.constant 0 : index
    %c0_4 = arith.constant 0 : index
    %3 = vector.load %arg3[%c0_3, %c0_4] : memref<8x512xf32, #tpu.memory_space<vmem>>, vector<8x512xf32>
    %c0_5 = arith.constant 0 : index
    %c0_6 = arith.constant 0 : index
    %4 = vector.load %arg7[%c0_5, %c0_6] : memref<8x512xf32, #tpu.memory_space<vmem>>, vector<8x512xf32>
    %cst_7 = arith.constant dense<0.000000e+00> : vector<512x512xf32>
    %5 = tpu.matmul %3, %4, %cst_7 {dimension_numbers = #tpu.dot_dimension_numbers<[0], [0], [1], [1], [0, 1, 1, 1], [], []>} : vector<8x512xf32>, vector<8x512xf32>, vector<512x512xf32> -> vector<512x512xf32>
    %c0_8 = arith.constant 0 : index
    %c0_9 = arith.constant 0 : index
    %6 = vector.load %arg4[%c0_8, %c0_9] : memref<512x1xf32, #tpu.memory_space<vmem>>, vector<512x1xf32>
    %7 = vector.broadcast %6 : vector<512x1xf32> to vector<512x512xf32>
    %8 = arith.mulf %2, %7 : vector<512x512xf32>
    %c0_10 = arith.constant 0 : index
    %c0_11 = arith.constant 0 : index
    %9 = vector.load %arg5[%c0_10, %c0_11] : memref<512x1xf32, #tpu.memory_space<vmem>>, vector<512x1xf32>
    %10 = vector.broadcast %9 : vector<512x1xf32> to vector<512x512xf32>
    %11 = arith.mulf %5, %10 : vector<512x512xf32>
    %12 = arith.subf %8, %11 : vector<512x512xf32>
    %13 = arith.mulf %12, %12 : vector<512x512xf32>
    %c0_12 = arith.constant 0 : index
    %c0_13 = arith.constant 0 : index
    %14 = vector.load %arg8[%c0_12, %c0_13] : memref<512x512xf32, #tpu.memory_space<vmem>>, vector<512x512xf32>
    tpu.vector_store %arg8[%c0_12, %c0_13], %13 {strides = array<i32>} : memref<512x512xf32, #tpu.memory_space<vmem>>, vector<512x512xf32>,
    return
  }
  func.func @transform_0(%arg0: i32, %arg1: i32) -> (i32, i32) {
    %c0_i32 = arith.constant 0 : i32
    %c0_i32_0 = arith.constant 0 : i32
    return %c0_i32, %arg0 : i32, i32
  }
  func.func @transform_1(%arg0: i32, %arg1: i32) -> (i32, i32) {
    %c0_i32 = arith.constant 0 : i32
    %c0_i32_0 = arith.constant 0 : i32
    return %c0_i32, %arg0 : i32, i32
  }
  func.func @transform_2(%arg0: i32, %arg1: i32) -> (i32, i32) {
    %c0_i32 = arith.constant 0 : i32
    %c0_i32_0 = arith.constant 0 : i32
    return %arg0, %c0_i32 : i32, i32
  }
  func.func @transform_3(%arg0: i32, %arg1: i32) -> (i32, i32) {
    %c0_i32 = arith.constant 0 : i32
    %c0_i32_0 = arith.constant 0 : i32
    return %arg0, %c0_i32 : i32, i32
  }
  func.func @transform_4(%arg0: i32, %arg1: i32) -> (i32, i32) {
    %c0_i32 = arith.constant 0 : i32
    %c0_i32_0 = arith.constant 0 : i32
    return %c0_i32, %arg1 : i32, i32
  }
  func.func @transform_5(%arg0: i32, %arg1: i32) -> (i32, i32) {
    %c0_i32 = arith.constant 0 : i32
    %c0_i32_0 = arith.constant 0 : i32
    return %c0_i32, %arg1 : i32, i32
  }
  func.func @transform_6(%arg0: i32, %arg1: i32) -> (i32, i32) {
    %c0_i32 = arith.constant 0 : i32
    return %arg0, %arg1 : i32, i32
  }
}

</mosaic_0001>

<llo_original>
// kernel: tpu_custom_call.1
$region0: #{tpu_custom_call.1}
  #allocation0 [shape = 'u32[]', space=smem, size = 0x4, offset = 0x4, fixed_abs, tag = 'smem constant byte address 0x4 - core index']
  #allocation1 [shape = 'u32[144,128]{1,0:T(1,128)}', space=vmem, size = 0x12000, scoped, tag = 'internal scratch']
  %s0 = inlined_call_operand.hbm [shape: f32[8,1024], index: 0, kind: input, shape index: {}]
  %s1 = inlined_call_operand.hbm [shape: f32[8,1024], index: 1, kind: input, shape index: {}]
  %s2 = inlined_call_operand.vmem [shape: f32[1024,1], index: 2, kind: input, shape index: {}]
  %s3 = inlined_call_operand.vmem [shape: f32[1024,1], index: 3, kind: input, shape index: {}]
  %s4 = inlined_call_operand.hbm [shape: f32[8,1024], index: 4, kind: input, shape index: {}]
  %s5 = inlined_call_operand.hbm [shape: f32[8,1024], index: 5, kind: input, shape index: {}]
  %s6 = inlined_call_operand.hbm [shape: f32[1024,1024], index: 6, kind: output, shape index: {}]
  %s7 = sld [smem:[#allocation0]]
  $region73: #{tpu_custom_call.1} parent=0
    _
  %s9 = ssub.s32 1, %s7
  %s10 = scalar_select 0, %s9, %s7
  $region1: #{tpu_custom_call.1} parent=0
    #allocation2 [shape = 'u8[32768]{0}', space=vmem, size = 0x8000, scoped, tag = 'input window, operand 0']
    #allocation3 [shape = 's32[2]{0}', space=sflag, size = 0x8, scoped, tag = 'scoped memory for tpu_custom_call.1']
    #allocation4 [shape = 's32[2]{0}', space=sflag, size = 0x8, scoped, tag = 'scoped memory for tpu_custom_call.1']
    #allocation5 [shape = 'u8[32768]{0}', space=vmem, size = 0x8000, scoped, tag = 'input window, operand 1']
    #allocation6 [shape = 's32[2]{0}', space=sflag, size = 0x8, scoped, tag = 'scoped memory for tpu_custom_call.1']
    #allocation7 [shape = 'u8[32768]{0}', space=vmem, size = 0x8000, scoped, tag = 'input window, operand 4']
    #allocation8 [shape = 'u8[32768]{0}', space=vmem, size = 0x8000, scoped, tag = 'input window, operand 5']
    #allocation9 [shape = 's32[2]{0}', space=sflag, size = 0x8, scoped, tag = 'scoped memory for tpu_custom_call.1']
    #allocation10 [shape = 'u8[2097152]{0}', space=vmem, size = 0x200000, scoped, tag = 'output window, operand 0']
    %11 = vsyncpa [#allocation3], 0
    %s12 = scalar_lea.sflag [#allocation3], 1
    %13 = vsyncpa %s12, 0
    %14 = vsyncpa [#allocation6], 0
    %s15 = scalar_lea.sflag [#allocation6], 1
    %16 = vsyncpa %s15, 0
    %17 = vsyncpa [#allocation9], 0
    %s18 = scalar_lea.sflag [#allocation9], 1
    %19 = vsyncpa %s18, 0
    %20 = vsyncpa [#allocation4], 0
    %s21 = scalar_lea.sflag [#allocation4], 1
    %22 = vsyncpa %s21, 0
    loop: start=0, step=1, limit=6
    $region2: #{tpu_custom_call.1} parent=1 // loop_pre_header
      _
    $region3: #{tpu_custom_call.1} parent=1 // loop_header
      %s24 = sphi 0, %s28
      %p25 = scmp.ge.s32.totalorder %s24, 6
      %s31 = sphi 0, %s43
      %s32 = sphi 0, %s39
      %s33 = sphi 0, %s31
      %s34 = sphi 0, %s32
      %s35 = sphi 0, %s33
      %s36 = sphi 0, %s34
      %s46 = sphi 0, %s48
      %s49 = sphi 0, %s46
      %s50 = sphi 0, %s49
      %s66 = sphi 0, %s50
      %s72 = sphi 0, %s74
      %s75 = sphi 0, %s72
      %s76 = sphi 0, %s75
      %s92 = sphi 0, %s76
      %s98 = sphi 0, %s100
      %s101 = sphi 0, %s98
      %s102 = sphi 0, %s101
      %s118 = sphi 0, %s102
      %s124 = sphi 0, %s126
      %s127 = sphi 0, %s124
      %s128 = sphi 0, %s127
      %s144 = sphi 0, %s128
      %s150 = sphi 0, %s152
      %s153 = sphi 0, %s150
      %s154 = sphi 0, %s153
      %s170 = sphi 0, %s154
      %s176 = sphi 0, %s178
      %s179 = sphi 0, %s176
      %s180 = sphi 0, %s179
      %s196 = sphi 0, %s180
      %s204 = sphi 0, %s206
      %s207 = sphi 0, %s204
      %s208 = sphi 0, %s207
      %s224 = sphi 0, %s208
    $region4: #{tpu_custom_call.1} parent=1 // loop_header_branch
      %27 = sbr.rel (%p25) target = $region8
    $region5: #{tpu_custom_call.1} parent=1 // loop_body
      %s29 = ssub.s32 %s24, 1
      %s30 = ssub.s32 %s24, 2
      %s37 = sadd.s32 1, %s32
      %p38 = scmp.ge.s32.totalorder %s37, 2
      %s39 = scalar_select %p38, 0, %s37
      %s40 = sadd.s32 1, %s31
      %s41 = scalar_select %p38, %s40, %s31
      %p42 = scmp.ge.s32.totalorder %s41, 2
      %s43 = scalar_select %p42, 0, %s41
      %s44 = ssub.s32 %s31, %s43
      %p45 = scmp.eq.s32.totalorder %s44, 0
      %s47 = sadd.s32 %s46, 1
      %s48 = scalar_select %p45, %s46, %s47
      %p51 = pneg %p45
      %p52 = scmp.eq.s32.totalorder %s24, 3
      %p53 = por %p51, %p52
      %p54 = scmp.ne.s32.totalorder %s46, %s49
      %p55 = scmp.eq.s32.totalorder %s24, 0
      %p56 = por %p54, %p55
      %p57 = scmp.ne.s32.totalorder %s46, %s49
      %p58 = scmp.eq.s32.totalorder %s29, 3
      %p59 = por %p57, %p58
      %p60 = scmp.ne.s32.totalorder %s49, %s50
      %p61 = scmp.eq.s32.totalorder %s29, 0
      %p62 = por %p60, %p61
      %p63 = scmp.ne.s32.totalorder %s49, %s50
      %p64 = scmp.eq.s32.totalorder %s30, 3
      %p65 = por %p63, %p64
      %p67 = scmp.ne.s32.totalorder %s50, %s66
      %p68 = scmp.eq.s32.totalorder %s30, 0
      %p69 = por %p67, %p68
      %s70 = ssub.s32 %s31, %s43
      %p71 = scmp.eq.s32.totalorder %s70, 0
      %s73 = sadd.s32 %s72, 1
      %s74 = scalar_select %p71, %s72, %s73
      %p77 = pneg %p71
      %p78 = scmp.eq.s32.totalorder %s24, 3
      %p79 = por %p77, %p78
      %p80 = scmp.ne.s32.totalorder %s72, %s75
      %p81 = scmp.eq.s32.totalorder %s24, 0
      %p82 = por %p80, %p81
      %p83 = scmp.ne.s32.totalorder %s72, %s75
      %p84 = scmp.eq.s32.totalorder %s29, 3
      %p85 = por %p83, %p84
      %p86 = scmp.ne.s32.totalorder %s75, %s76
      %p87 = scmp.eq.s32.totalorder %s29, 0
      %p88 = por %p86, %p87
      %p89 = scmp.ne.s32.totalorder %s75, %s76
      %p90 = scmp.eq.s32.totalorder %s30, 3
      %p91 = por %p89, %p90
      %p93 = scmp.ne.s32.totalorder %s76, %s92
      %p94 = scmp.eq.s32.totalorder %s30, 0
      %p95 = por %p93, %p94
      %s96 = ssub.s32 %s31, %s43
      %p97 = scmp.eq.s32.totalorder %s96, 0
      %s99 = sadd.s32 %s98, 1
      %s100 = scalar_select %p97, %s98, %s99
      %p103 = pneg %p97
      %p104 = scmp.eq.s32.totalorder %s24, 3
      %p105 = por %p103, %p104
      %p106 = scmp.ne.s32.totalorder %s98, %s101
      %p107 = scmp.eq.s32.totalorder %s24, 0
      %p108 = por %p106, %p107
      %p109 = scmp.ne.s32.totalorder %s98, %s101
      %p110 = scmp.eq.s32.totalorder %s29, 3
      %p111 = por %p109, %p110
      %p112 = scmp.ne.s32.totalorder %s101, %s102
      %p113 = scmp.eq.s32.totalorder %s29, 0
      %p114 = por %p112, %p113
      %p115 = scmp.ne.s32.totalorder %s101, %s102
      %p116 = scmp.eq.s32.totalorder %s30, 3
      %p117 = por %p115, %p116
      %p119 = scmp.ne.s32.totalorder %s102, %s118
      %p120 = scmp.eq.s32.totalorder %s30, 0
      %p121 = por %p119, %p120
      %s122 = ssub.s32 %s31, %s43
      %p123 = scmp.eq.s32.totalorder %s122, 0
      %s125 = sadd.s32 %s124, 1
      %s126 = scalar_select %p123, %s124, %s125
      %p129 = pneg %p123
      %p130 = scmp.eq.s32.totalorder %s24, 3
      %p131 = por %p129, %p130
      %p132 = scmp.ne.s32.totalorder %s124, %s127
      %p133 = scmp.eq.s32.totalorder %s24, 0
      %p134 = por %p132, %p133
      %p135 = scmp.ne.s32.totalorder %s124, %s127
      %p136 = scmp.eq.s32.totalorder %s29, 3
      %p137 = por %p135, %p136
      %p138 = scmp.ne.s32.totalorder %s127, %s128
      %p139 = scmp.eq.s32.totalorder %s29, 0
      %p140 = por %p138, %p139
      %p141 = scmp.ne.s32.totalorder %s127, %s128
      %p142 = scmp.eq.s32.totalorder %s30, 3
      %p143 = por %p141, %p142
      %p145 = scmp.ne.s32.totalorder %s128, %s144
      %p146 = scmp.eq.s32.totalorder %s30, 0
      %p147 = por %p145, %p146
      %s148 = ssub.s32 %s32, %s39
      %p149 = scmp.eq.s32.totalorder %s148, 0
      %s151 = sadd.s32 %s150, 1
      %s152 = scalar_select %p149, %s150, %s151
      %p155 = pneg %p149
      %p156 = scmp.eq.s32.totalorder %s24, 3
      %p157 = por %p155, %p156
      %p158 = scmp.ne.s32.totalorder %s150, %s153
      %p159 = scmp.eq.s32.totalorder %s24, 0
      %p160 = por %p158, %p159
      %p161 = scmp.ne.s32.totalorder %s150, %s153
      %p162 = scmp.eq.s32.totalorder %s29, 3
      %p163 = por %p161, %p162
      %p164 = scmp.ne.s32.totalorder %s153, %s154
      %p165 = scmp.eq.s32.totalorder %s29, 0
      %p166 = por %p164, %p165
      %p167 = scmp.ne.s32.totalorder %s153, %s154
      %p168 = scmp.eq.s32.totalorder %s30, 3
      %p169 = por %p167, %p168
      %p171 = scmp.ne.s32.totalorder %s154, %s170
      %p172 = scmp.eq.s32.totalorder %s30, 0
      %p173 = por %p171, %p172
      %s174 = ssub.s32 %s32, %s39
      %p175 = scmp.eq.s32.totalorder %s174, 0
      %s177 = sadd.s32 %s176, 1
      %s178 = scalar_select %p175, %s176, %s177
      %p181 = pneg %p175
      %p182 = scmp.eq.s32.totalorder %s24, 3
      %p183 = por %p181, %p182
      %p184 = scmp.ne.s32.totalorder %s176, %s179
      %p185 = scmp.eq.s32.totalorder %s24, 0
      %p186 = por %p184, %p185
      %p187 = scmp.ne.s32.totalorder %s176, %s179
      %p188 = scmp.eq.s32.totalorder %s29, 3
      %p189 = por %p187, %p188
      %p190 = scmp.ne.s32.totalorder %s179, %s180
      %p191 = scmp.eq.s32.totalorder %s29, 0
      %p192 = por %p190, %p191
      %p193 = scmp.ne.s32.totalorder %s179, %s180
      %p194 = scmp.eq.s32.totalorder %s30, 3
      %p195 = por %p193, %p194
      %p197 = scmp.ne.s32.totalorder %s180, %s196
      %p198 = scmp.eq.s32.totalorder %s30, 0
      %p199 = por %p197, %p198
      %s200 = ssub.s32 %s31, %s43
      %s201 = ssub.s32 %s32, %s39
      %s202 = sor.u32 %s200, %s201
      %p203 = scmp.eq.s32.totalorder %s202, 0
      %s205 = sadd.s32 %s204, 1
      %s206 = scalar_select %p203, %s204, %s205
      %p209 = pneg %p203
      %p210 = scmp.eq.s32.totalorder %s24, 3
      %p211 = por %p209, %p210
      %p212 = scmp.ne.s32.totalorder %s204, %s207
      %p213 = scmp.eq.s32.totalorder %s24, 0
      %p214 = por %p212, %p213
      %p215 = scmp.ne.s32.totalorder %s204, %s207
      %p216 = scmp.eq.s32.totalorder %s29, 3
      %p217 = por %p215, %p216
      %p218 = scmp.ne.s32.totalorder %s207, %s208
      %p219 = scmp.eq.s32.totalorder %s29, 0
      %p220 = por %p218, %p219
      %p221 = scmp.ne.s32.totalorder %s207, %s208
      %p222 = scmp.eq.s32.totalorder %s30, 3
      %p223 = por %p221, %p222
      %p225 = scmp.ne.s32.totalorder %s208, %s224
      %p226 = scmp.eq.s32.totalorder %s30, 0
      %p227 = por %p225, %p226
      %p228 = scmp.le.s32.totalorder 1, %s24
      %p229 = scmp.lt.s32.totalorder %s24, 5
      %p230 = pnand %p228, %p229
      %p231 = pneg %p230
      // Predicated region
      $region9: #{tpu_custom_call.1} parent=5 // pred_check
        _
      $region10: #{tpu_custom_call.1} parent=5 // pred_check_branch
        %233 = sbr.rel (%p230) target = $region12
      $region11: #{tpu_custom_call.1} parent=5 // pred_region
        %s234 = ssub.s32 %s24, 1
      $region12: #{tpu_custom_call.1} parent=5 // pred_fallthru
        _
      %p235 = scmp.lt.s32.totalorder %s24, 4
      // Predicated region
      $region13: #{tpu_custom_call.1} parent=5 // pred_check
        %p236 = pneg %p235
      $region14: #{tpu_custom_call.1} parent=5 // pred_check_branch
        %238 = sbr.rel (%p236) target = $region16
      $region15: #{tpu_custom_call.1} parent=5 // pred_region
        // Predicated region
        $region17: #{tpu_custom_call.1} parent=15 // pred_check
          %p239 = pneg %p56
        $region18: #{tpu_custom_call.1} parent=15 // pred_check_branch
          %241 = sbr.rel (%p239) target = $region20
        $region19: #{tpu_custom_call.1} parent=15 // pred_region
          %s242 = sand.u32 %s46, 1
          %s243 = scalar_lea.sflag [#allocation3], %s242
          %s244 = sand.u32 %s46, 1
          %s245 = smul.addr %s244, 32
          %s246 = scalar_lea.vmem [#allocation2], %s245
          %s247 = smul.u32 4, %s31
          %s249 = ssub.s32 512, 512
          %250 = vsyncadd %s243, %s249
          %s251 = smul.addr %s247, 128
          %s252 = scalar_lea.hbm %s0, %s251
          %s254 = sshll.u32 %s246, 4
          %s255 = int_to_ptr.vmem [resolvable:$true] %s254
          %257 = dma.hbm_to_vmem [thread:$0]  %s252, 512, %s255, %s243
        $region20: #{tpu_custom_call.1} parent=15 // pred_fallthru
          _
        // Predicated region
        $region21: #{tpu_custom_call.1} parent=15 // pred_check
          %p258 = pneg %p82
        $region22: #{tpu_custom_call.1} parent=15 // pred_check_branch
          %260 = sbr.rel (%p258) target = $region24
        $region23: #{tpu_custom_call.1} parent=15 // pred_region
          %s261 = sand.u32 %s24, 1
          %s262 = scalar_lea.sflag [#allocation6], %s261
          %s263 = sand.u32 %s72, 1
          %s264 = smul.addr %s263, 32
          %s265 = scalar_lea.vmem [#allocation5], %s264
          %s266 = smul.u32 4, %s31
          %s268 = ssub.s32 512, 512
          %269 = vsyncadd %s262, %s268
          %s270 = smul.addr %s266, 128
          %s271 = scalar_lea.hbm %s1, %s270
          %s273 = sshll.u32 %s265, 4
          %s274 = int_to_ptr.vmem [resolvable:$true] %s273
          %276 = dma.hbm_to_vmem [thread:$0]  %s271, 512, %s274, %s262
        $region24: #{tpu_custom_call.1} parent=15 // pred_fallthru
          _
        // Predicated region
        $region25: #{tpu_custom_call.1} parent=15 // pred_check
          %p277 = pneg %p108
        $region26: #{tpu_custom_call.1} parent=15 // pred_check_branch
          %279 = sbr.rel (%p277) target = $region28
        $region27: #{tpu_custom_call.1} parent=15 // pred_region
          %s280 = smul.u32 64, %s31
          %p281 = scmp.lt.s32.totalorder %s280, 127
          %s282 = scalar_select %p281, %s280, 127
          %s283 = smul.addr %s282, 8
          %s284 = scalar_lea.vmem %s2, %s283
          %s285 = smul.u32 64, %s31
        $region28: #{tpu_custom_call.1} parent=15 // pred_fallthru
          _
        // Predicated region
        $region29: #{tpu_custom_call.1} parent=15 // pred_check
          %p286 = pneg %p134
        $region30: #{tpu_custom_call.1} parent=15 // pred_check_branch
          %288 = sbr.rel (%p286) target = $region32
        $region31: #{tpu_custom_call.1} parent=15 // pred_region
          %s289 = smul.u32 64, %s31
          %p290 = scmp.lt.s32.totalorder %s289, 127
          %s291 = scalar_select %p290, %s289, 127
          %s292 = smul.addr %s291, 8
          %s293 = scalar_lea.vmem %s3, %s292
          %s294 = smul.u32 64, %s31
        $region32: #{tpu_custom_call.1} parent=15 // pred_fallthru
          _
        // Predicated region
        $region33: #{tpu_custom_call.1} parent=15 // pred_check
          %p295 = pneg %p160
        $region34: #{tpu_custom_call.1} parent=15 // pred_check_branch
          %297 = sbr.rel (%p295) target = $region36
        $region35: #{tpu_custom_call.1} parent=15 // pred_region
          %s298 = sand.u32 %s24, 1
          %s299 = scalar_lea.sflag [#allocation6], %s298
          %s300 = sand.u32 %s150, 1
          %s301 = smul.addr %s300, 32
          %s302 = scalar_lea.vmem [#allocation7], %s301
          %s303 = smul.u32 4, %s32
          %s305 = ssub.s32 512, 512
          %306 = vsyncadd %s299, %s305
          %s307 = smul.addr %s303, 128
          %s308 = scalar_lea.hbm %s4, %s307
          %s310 = sshll.u32 %s302, 4
          %s311 = int_to_ptr.vmem [resolvable:$true] %s310
          %313 = dma.hbm_to_vmem [thread:$0]  %s308, 512, %s311, %s299
        $region36: #{tpu_custom_call.1} parent=15 // pred_fallthru
          _
        // Predicated region
        $region37: #{tpu_custom_call.1} parent=15 // pred_check
          %p314 = pneg %p186
        $region38: #{tpu_custom_call.1} parent=15 // pred_check_branch
          %316 = sbr.rel (%p314) target = $region40
        $region39: #{tpu_custom_call.1} parent=15 // pred_region
          %s317 = sand.u32 %s176, 1
          %s318 = scalar_lea.sflag [#allocation9], %s317
          %s319 = sand.u32 %s176, 1
          %s320 = smul.addr %s319, 32
          %s321 = scalar_lea.vmem [#allocation8], %s320
          %s322 = smul.u32 4, %s32
          %s324 = ssub.s32 512, 512
          %325 = vsyncadd %s318, %s324
          %s326 = smul.addr %s322, 128
          %s327 = scalar_lea.hbm %s5, %s326
          %s329 = sshll.u32 %s321, 4
          %s330 = int_to_ptr.vmem [resolvable:$true] %s329
          %332 = dma.hbm_to_vmem [thread:$0]  %s327, 512, %s330, %s318
        $region40: #{tpu_custom_call.1} parent=15 // pred_fallthru
          _
      $region16: #{tpu_custom_call.1} parent=5 // pred_fallthru
        _
      %p333 = scmp.le.s32.totalorder 1, %s24
      %p334 = scmp.lt.s32.totalorder %s24, 5
      %p335 = pnand %p333, %p334
      %p336 = pneg %p335
      // Predicated region
      $region41: #{tpu_custom_call.1} parent=5 // pred_check
        _
      $region42: #{tpu_custom_call.1} parent=5 // pred_check_branch
        %338 = sbr.rel (%p335) target = $region44
      $region43: #{tpu_custom_call.1} parent=5 // pred_region
        %s339 = ssub.s32 %s24, 1
        %s340 = sand.u32 %s49, 1
        %s341 = scalar_lea.sflag [#allocation3], %s340
        %s342 = sand.u32 %s49, 1
        %s343 = smul.addr %s342, 32
        %s344 = scalar_lea.vmem [#allocation2], %s343
        // Predicated region
        $region45: #{tpu_custom_call.1} parent=43 // pred_check
          %p345 = pneg %p62
        $region46: #{tpu_custom_call.1} parent=43 // pred_check_branch
          %347 = sbr.rel (%p345) target = $region48
        $region47: #{tpu_custom_call.1} parent=43 // pred_region
          %348 = dma.done %s341, 512
        $region48: #{tpu_custom_call.1} parent=43 // pred_fallthru
          _
        %s349 = sand.u32 %s29, 1
        %s350 = scalar_lea.sflag [#allocation6], %s349
        %s351 = sand.u32 %s75, 1
        %s352 = smul.addr %s351, 32
        %s353 = scalar_lea.vmem [#allocation5], %s352
        // Predicated region
        $region49: #{tpu_custom_call.1} parent=43 // pred_check
          %p354 = pneg %p88
        $region50: #{tpu_custom_call.1} parent=43 // pred_check_branch
          %356 = sbr.rel (%p354) target = $region52
        $region51: #{tpu_custom_call.1} parent=43 // pred_region
          %357 = dma.done %s350, 512
        $region52: #{tpu_custom_call.1} parent=43 // pred_fallthru
          _
        %s358 = sand.u32 %s29, 1
        %s359 = scalar_lea.sflag [#allocation6], %s358
        %s360 = sand.u32 %s153, 1
        %s361 = smul.addr %s360, 32
        %s362 = scalar_lea.vmem [#allocation7], %s361
        // Predicated region
        $region53: #{tpu_custom_call.1} parent=43 // pred_check
          %p363 = pneg %p166
        $region54: #{tpu_custom_call.1} parent=43 // pred_check_branch
          %365 = sbr.rel (%p363) target = $region56
        $region55: #{tpu_custom_call.1} parent=43 // pred_region
          %366 = dma.done %s359, 512
        $region56: #{tpu_custom_call.1} parent=43 // pred_fallthru
          _
        %s367 = sand.u32 %s179, 1
        %s368 = scalar_lea.sflag [#allocation9], %s367
        %s369 = sand.u32 %s179, 1
        %s370 = smul.addr %s369, 32
        %s371 = scalar_lea.vmem [#allocation8], %s370
        // Predicated region
        $region57: #{tpu_custom_call.1} parent=43 // pred_check
          %p372 = pneg %p192
        $region58: #{tpu_custom_call.1} parent=43 // pred_check_branch
          %374 = sbr.rel (%p372) target = $region60
        $region59: #{tpu_custom_call.1} parent=43 // pred_region
          %375 = dma.done %s368, 512
        $region60: #{tpu_custom_call.1} parent=43 // pred_fallthru
          _
        %s376 = sand.u32 %s49, 1
        %s377 = scalar_lea.sflag [#allocation3], %s376
        %s378 = sand.u32 %s49, 1
        %s379 = smul.addr %s378, 32
        %s380 = scalar_lea.vmem [#allocation2], %s379
        %p381 = pneg %p62
        %p382 = pneg %p59
        %s383 = sand.u32 %s29, 1
        %s384 = scalar_lea.sflag [#allocation6], %s383
        %s385 = sand.u32 %s75, 1
        %s386 = smul.addr %s385, 32
        %s387 = scalar_lea.vmem [#allocation5], %s386
        %p388 = pneg %p88
        %p389 = pneg %p85
        %s390 = smul.u32 64, %s33
        %p391 = scmp.lt.s32.totalorder %s390, 127
        %s392 = scalar_select %p391, %s390, 127
        %s393 = smul.addr %s392, 8
        %s394 = scalar_lea.vmem %s2, %s393
        %p395 = pneg %p114
        %p396 = pneg %p111
        %s397 = smul.u32 64, %s33
        %p398 = scmp.lt.s32.totalorder %s397, 127
        %s399 = scalar_select %p398, %s397, 127
        %s400 = smul.addr %s399, 8
        %s401 = scalar_lea.vmem %s3, %s400
        %p402 = pneg %p140
        %p403 = pneg %p137
        %s404 = sand.u32 %s29, 1
        %s405 = scalar_lea.sflag [#allocation6], %s404
        %s406 = sand.u32 %s153, 1
        %s407 = smul.addr %s406, 32
        %s408 = scalar_lea.vmem [#allocation7], %s407
        %p409 = pneg %p166
        %p410 = pneg %p163
        %s411 = sand.u32 %s179, 1
        %s412 = scalar_lea.sflag [#allocation9], %s411
        %s413 = sand.u32 %s179, 1
        %s414 = smul.addr %s413, 32
        %s415 = scalar_lea.vmem [#allocation8], %s414
        %p416 = pneg %p192
        %p417 = pneg %p189
        %p418 = pneg %p220
        %p419 = pneg %p217
        %s420 = sand.u32 %s207, 1
        %s421 = scalar_lea.sflag [#allocation4], %s420
        %s422 = sand.u32 %s207, 1
        %s423 = smul.addr %s422, 2048
        %s424 = scalar_lea.vmem [#allocation10], %s423
        %s425 = smul.u32 4, %s33
        %s426 = smul.u32 4, %s33
        %s427 = smul.u32 64, %s33
        %p428 = scmp.lt.s32.totalorder %s427, 127
        %s429 = scalar_select %p428, %s427, 127
        %s430 = smul.addr %s429, 8
        %s431 = scalar_lea.vmem %s2, %s430
        %s432 = smul.u32 64, %s33
        %s433 = smul.u32 64, %s33
        %p434 = scmp.lt.s32.totalorder %s433, 127
        %s435 = scalar_select %p434, %s433, 127
        %s436 = smul.addr %s435, 8
        %s437 = scalar_lea.vmem %s3, %s436
        %s438 = smul.u32 64, %s33
        %s439 = smul.u32 4, %s34
        %s440 = smul.u32 4, %s34
        %s441 = smul.u32 64, %s33
        %s442 = smul.u32 4, %s34
        %v443 = vld [vmem:[%s344] sm:$0xff]
        %v444 = vld [vmem:[%s344 + $0x8] sm:$0xff]
        %v445 = vld [vmem:[%s344 + $0x10] sm:$0xff]
        %v446 = vld [vmem:[%s344 + $0x18] sm:$0xff]
        %v447 = vld [vmem:[%s362] sm:$0xff]
        %v448 = vld [vmem:[%s362 + $0x8] sm:$0xff]
        %v449 = vld [vmem:[%s362 + $0x10] sm:$0xff]
        %v450 = vld [vmem:[%s362 + $0x18] sm:$0xff]
        %451 = vxpose.xlu0.b32.start [1/16] %v443, 128
        %452 = vxpose.xlu0.b32.cont [2/16] 0.0, 128
        %453 = vxpose.xlu0.b32.cont [3/16] 0.0, 128
        %454 = vxpose.xlu0.b32.cont [4/16] 0.0, 128
        %455 = vxpose.xlu0.b32.cont [5/16] 0.0, 128
        %456 = vxpose.xlu0.b32.cont [6/16] 0.0, 128
        %457 = vxpose.xlu0.b32.cont [7/16] 0.0, 128
        %458 = vxpose.xlu0.b32.cont [8/16] 0.0, 128
        %459 = vxpose.xlu0.b32.cont [9/16] 0.0, 128
        %460 = vxpose.xlu0.b32.cont [10/16] 0.0, 128
        %461 = vxpose.xlu0.b32.cont [11/16] 0.0, 128
        %462 = vxpose.xlu0.b32.cont [12/16] 0.0, 128
        %463 = vxpose.xlu0.b32.cont [13/16] 0.0, 128
        %464 = vxpose.xlu0.b32.cont [14/16] 0.0, 128
        %465 = vxpose.xlu0.b32.cont [15/16] 0.0, 128
        %466 = vxpose.xlu0.b32.end [16/16] 0.0, 128
        %v467 = vpop.trf.xlu0
        %v468 = vpop.trf.xlu0
        %v469 = vpop.trf.xlu0
        %v470 = vpop.trf.xlu0
        %v471 = vpop.trf.xlu0
        %v472 = vpop.trf.xlu0
        %v473 = vpop.trf.xlu0
        %v474 = vpop.trf.xlu0
        %v475 = vpop.trf.xlu0
        %v476 = vpop.trf.xlu0
        %v477 = vpop.trf.xlu0
        %v478 = vpop.trf.xlu0
        %v479 = vpop.trf.xlu0
        %v480 = vpop.trf.xlu0
        %v481 = vpop.trf.xlu0
        %v482 = vpop.trf.xlu0
        %483 = vxpose.xlu0.b32.start [1/16] %v444, 128
        %484 = vxpose.xlu0.b32.cont [2/16] 0.0, 128
        %485 = vxpose.xlu0.b32.cont [3/16] 0.0, 128
        %486 = vxpose.xlu0.b32.cont [4/16] 0.0, 128
        %487 = vxpose.xlu0.b32.cont [5/16] 0.0, 128
        %488 = vxpose.xlu0.b32.cont [6/16] 0.0, 128
        %489 = vxpose.xlu0.b32.cont [7/16] 0.0, 128
        %490 = vxpose.xlu0.b32.cont [8/16] 0.0, 128
        %491 = vxpose.xlu0.b32.cont [9/16] 0.0, 128
        %492 = vxpose.xlu0.b32.cont [10/16] 0.0, 128
        %493 = vxpose.xlu0.b32.cont [11/16] 0.0, 128
        %494 = vxpose.xlu0.b32.cont [12/16] 0.0, 128
        %495 = vxpose.xlu0.b32.cont [13/16] 0.0, 128
        %496 = vxpose.xlu0.b32.cont [14/16] 0.0, 128
        %497 = vxpose.xlu0.b32.cont [15/16] 0.0, 128
        %498 = vxpose.xlu0.b32.end [16/16] 0.0, 128
        %v499 = vpop.trf.xlu0
        %v500 = vpop.trf.xlu0
        %v501 = vpop.trf.xlu0
        %v502 = vpop.trf.xlu0
        %v503 = vpop.trf.xlu0
        %v504 = vpop.trf.xlu0
        %v505 = vpop.trf.xlu0
        %v506 = vpop.trf.xlu0
        %v507 = vpop.trf.xlu0
        %v508 = vpop.trf.xlu0
        %v509 = vpop.trf.xlu0
        %v510 = vpop.trf.xlu0
        %v511 = vpop.trf.xlu0
        %v512 = vpop.trf.xlu0
        %v513 = vpop.trf.xlu0
        %v514 = vpop.trf.xlu0
        %515 = vxpose.xlu0.b32.start [1/16] %v445, 128
        %516 = vxpose.xlu0.b32.cont [2/16] 0.0, 128
        %517 = vxpose.xlu0.b32.cont [3/16] 0.0, 128
        %518 = vxpose.xlu0.b32.cont [4/16] 0.0, 128
        %519 = vxpose.xlu0.b32.cont [5/16] 0.0, 128
        %520 = vxpose.xlu0.b32.cont [6/16] 0.0, 128
        %521 = vxpose.xlu0.b32.cont [7/16] 0.0, 128
        %522 = vxpose.xlu0.b32.cont [8/16] 0.0, 128
        %523 = vxpose.xlu0.b32.cont [9/16] 0.0, 128
        %524 = vxpose.xlu0.b32.cont [10/16] 0.0, 128
        %525 = vxpose.xlu0.b32.cont [11/16] 0.0, 128
        %526 = vxpose.xlu0.b32.cont [12/16] 0.0, 128
        %527 = vxpose.xlu0.b32.cont [13/16] 0.0, 128
        %528 = vxpose.xlu0.b32.cont [14/16] 0.0, 128
        %529 = vxpose.xlu0.b32.cont [15/16] 0.0, 128
        %530 = vxpose.xlu0.b32.end [16/16] 0.0, 128
        %v531 = vpop.trf.xlu0
        %v532 = vpop.trf.xlu0
        %v533 = vpop.trf.xlu0
        %v534 = vpop.trf.xlu0
        %v535 = vpop.trf.xlu0
        %v536 = vpop.trf.xlu0
        %v537 = vpop.trf.xlu0
        %v538 = vpop.trf.xlu0
        %v539 = vpop.trf.xlu0
        %v540 = vpop.trf.xlu0
        %v541 = vpop.trf.xlu0
        %v542 = vpop.trf.xlu0
        %v543 = vpop.trf.xlu0
        %v544 = vpop.trf.xlu0
        %v545 = vpop.trf.xlu0
        %v546 = vpop.trf.xlu0
        %547 = vxpose.xlu0.b32.start [1/16] %v446, 128
        %548 = vxpose.xlu0.b32.cont [2/16] 0.0, 128
        %549 = vxpose.xlu0.b32.cont [3/16] 0.0, 128
        %550 = vxpose.xlu0.b32.cont [4/16] 0.0, 128
        %551 = vxpose.xlu0.b32.cont [5/16] 0.0, 128
        %552 = vxpose.xlu0.b32.cont [6/16] 0.0, 128
        %553 = vxpose.xlu0.b32.cont [7/16] 0.0, 128
        %554 = vxpose.xlu0.b32.cont [8/16] 0.0, 128
        %555 = vxpose.xlu0.b32.cont [9/16] 0.0, 128
        %556 = vxpose.xlu0.b32.cont [10/16] 0.0, 128
        %557 = vxpose.xlu0.b32.cont [11/16] 0.0, 128
        %558 = vxpose.xlu0.b32.cont [12/16] 0.0, 128
        %559 = vxpose.xlu0.b32.cont [13/16] 0.0, 128
        %560 = vxpose.xlu0.b32.cont [14/16] 0.0, 128
        %561 = vxpose.xlu0.b32.cont [15/16] 0.0, 128
        %562 = vxpose.xlu0.b32.end [16/16] 0.0, 128
        %v563 = vpop.trf.xlu0
        %v564 = vpop.trf.xlu0
        %v565 = vpop.trf.xlu0
        %v566 = vpop.trf.xlu0
        %v567 = vpop.trf.xlu0
        %v568 = vpop.trf.xlu0
        %v569 = vpop.trf.xlu0
        %v570 = vpop.trf.xlu0
        %v571 = vpop.trf.xlu0
        %v572 = vpop.trf.xlu0
        %v573 = vpop.trf.xlu0
        %v574 = vpop.trf.xlu0
        %v575 = vpop.trf.xlu0
        %v576 = vpop.trf.xlu0
        %v577 = vpop.trf.xlu0
        %v578 = vpop.trf.xlu0
        %vm579 = vcmask 64512
        %v581 = vsel %vm579, %v467, 0
        %v584 = vsel %vm579, %v468, 0
        %v587 = vsel %vm579, %v469, 0
        %v590 = vsel %vm579, %v470, 0
        %v593 = vsel %vm579, %v471, 0
        %v596 = vsel %vm579, %v472, 0
        %v599 = vsel %vm579, %v473, 0
        %v602 = vsel %vm579, %v474, 0
        %v605 = vsel %vm579, %v475, 0
        %v608 = vsel %vm579, %v476, 0
        %v611 = vsel %vm579, %v477, 0
        %v614 = vsel %vm579, %v478, 0
        %v617 = vsel %vm579, %v479, 0
        %v620 = vsel %vm579, %v480, 0
        %v623 = vsel %vm579, %v481, 0
        %v626 = vsel %vm579, %v482, 0
        %v629 = vsel %vm579, %v499, 0
        %v632 = vsel %vm579, %v500, 0
        %v635 = vsel %vm579, %v501, 0
        %v638 = vsel %vm579, %v502, 0
        %v641 = vsel %vm579, %v503, 0
        %v644 = vsel %vm579, %v504, 0
        %v647 = vsel %vm579, %v505, 0
        %v650 = vsel %vm579, %v506, 0
        %v653 = vsel %vm579, %v507, 0
        %v656 = vsel %vm579, %v508, 0
        %v659 = vsel %vm579, %v509, 0
        %v662 = vsel %vm579, %v510, 0
        %v665 = vsel %vm579, %v511, 0
        %v668 = vsel %vm579, %v512, 0
        %v671 = vsel %vm579, %v513, 0
        %v674 = vsel %vm579, %v514, 0
        %v677 = vsel %vm579, %v531, 0
        %v680 = vsel %vm579, %v532, 0
        %v683 = vsel %vm579, %v533, 0
        %v686 = vsel %vm579, %v534, 0
        %v689 = vsel %vm579, %v535, 0
        %v692 = vsel %vm579, %v536, 0
        %v695 = vsel %vm579, %v537, 0
        %v698 = vsel %vm579, %v538, 0
        %v701 = vsel %vm579, %v539, 0
        %v704 = vsel %vm579, %v540, 0
        %v707 = vsel %vm579, %v541, 0
        %v710 = vsel %vm579, %v542, 0
        %v713 = vsel %vm579, %v543, 0
        %v716 = vsel %vm579, %v544, 0
        %v719 = vsel %vm579, %v545, 0
        %v722 = vsel %vm579, %v546, 0
        %v725 = vsel %vm579, %v563, 0
        %v728 = vsel %vm579, %v564, 0
        %v731 = vsel %vm579, %v565, 0
        %v734 = vsel %vm579, %v566, 0
        %v737 = vsel %vm579, %v567, 0
        %v740 = vsel %vm579, %v568, 0
        %v743 = vsel %vm579, %v569, 0
        %v746 = vsel %vm579, %v570, 0
        %v749 = vsel %vm579, %v571, 0
        %v752 = vsel %vm579, %v572, 0
        %v755 = vsel %vm579, %v573, 0
        %v758 = vsel %vm579, %v574, 0
        %v761 = vsel %vm579, %v575, 0
        %v764 = vsel %vm579, %v576, 0
        %v767 = vsel %vm579, %v577, 0
        %v770 = vsel %vm579, %v578, 0
        %772 = vmatprep.subr.mxu0 %v448
        %773 = vmatpush1.msra.mxu0 %v447
        %774 = vmatprep.subr.mxu0 0.0
        %775 = vmatpush1.msra.mxu0 0.0
        %776 = vmatprep.subr.mxu0 0.0
        %777 = vmatpush1.msra.mxu0 0.0
        %778 = vmatprep.subr.mxu0 0.0
        %779 = vmatpush1.msra.mxu0 0.0
        %780 = vmatprep.subr.mxu0 0.0
        %781 = vmatpush1.msra.mxu0 0.0
        %782 = vmatprep.subr.mxu0 0.0
        %783 = vmatpush1.msra.mxu0 0.0
        %784 = vmatprep.subr.mxu0 0.0
        %785 = vmatpush1.msra.mxu0 0.0
        %786 = vmatprep.subr.mxu0 0.0
        %787 = vmatpush1.msra.mxu0 0.0
        %788 = vmatprep.subr.mxu0 0.0
        %789 = vmatpush1.msra.mxu0 0.0
        %790 = vmatprep.subr.mxu0 0.0
        %791 = vmatpush1.msra.mxu0 0.0
        %792 = vmatprep.subr.mxu0 0.0
        %793 = vmatpush1.msra.mxu0 0.0
        %794 = vmatprep.subr.mxu0 0.0
        %795 = vmatpush1.msra.mxu0 0.0
        %796 = vmatprep.subr.mxu0 0.0
        %797 = vmatpush1.msra.mxu0 0.0
        %798 = vmatprep.subr.mxu0 0.0
        %799 = vmatpush1.msra.mxu0 0.0
        %800 = vmatprep.subr.mxu0 0.0
        %801 = vmatpush1.msra.mxu0 0.0
        %802 = vmatprep.subr.mxu0 0.0
        %803 = vmatpush1.msra.mxu0 0.0
        %804 = vmatprep.subr.mxu0 0.0
        %805 = vmatpush1.msra.mxu0 0.0
        %806 = vmatprep.subr.mxu0 0.0
        %807 = vmatpush1.msra.mxu0 0.0
        %808 = vmatprep.subr.mxu0 0.0
        %809 = vmatpush1.msra.mxu0 0.0
        %810 = vmatprep.subr.mxu0 0.0
        %811 = vmatpush1.msra.mxu0 0.0
        %812 = vmatprep.subr.mxu0 0.0
        %813 = vmatpush1.msra.mxu0 0.0
        %814 = vmatprep.subr.mxu0 0.0
        %815 = vmatpush1.msra.mxu0 0.0
        %816 = vmatprep.subr.mxu0 0.0
        %817 = vmatpush1.msra.mxu0 0.0
        %818 = vmatprep.subr.mxu0 0.0
        %819 = vmatpush1.msra.mxu0 0.0
        %820 = vmatprep.subr.mxu0 0.0
        %821 = vmatpush1.msra.mxu0 0.0
        %822 = vmatprep.subr.mxu0 0.0
        %823 = vmatpush1.msra.mxu0 0.0
        %824 = vmatprep.subr.mxu0 0.0
        %825 = vmatpush1.msra.mxu0 0.0
        %826 = vmatprep.subr.mxu0 0.0
        %827 = vmatpush1.msra.mxu0 0.0
        %828 = vmatprep.subr.mxu0 0.0
        %829 = vmatpush1.msra.mxu0 0.0
        %830 = vmatprep.subr.mxu0 0.0
        %831 = vmatpush1.msra.mxu0 0.0
        %832 = vmatprep.subr.mxu0 0.0
        %833 = vmatpush1.msra.mxu0 0.0
        %834 = vmatprep.subr.mxu0 0.0
        %835 = vmatpush1.msra.mxu0 0.0
        %836 = vmatprep.mubr.f32.mxu0 0.0
        %837 = vmatmul.mubr.f32.gmra.mrb[0].mxu0 %v581
        %v838 = vpop.f32.mrb[0].mxu0
        %v839 = vadd.f32 0.0, %v838
        %v840 = vpop.f32.mrb[0].mxu0
        %v841 = vadd.f32 0.0, %v840
        %842 = vmatprep.mubr.f32.mxu0 0.0
        %843 = vmatmul.mubr.f32.gmra.mrb[0].mxu0 %v584
        %v844 = vpop.f32.mrb[0].mxu0
        %v845 = vadd.f32 0.0, %v844
        %v846 = vpop.f32.mrb[0].mxu0
        %v847 = vadd.f32 0.0, %v846
        %848 = vmatprep.mubr.f32.mxu0 0.0
        %849 = vmatmul.mubr.f32.gmra.mrb[0].mxu0 %v587
        %v850 = vpop.f32.mrb[0].mxu0
        %v851 = vadd.f32 0.0, %v850
        %v852 = vpop.f32.mrb[0].mxu0
        %v853 = vadd.f32 0.0, %v852
        %854 = vmatprep.mubr.f32.mxu0 0.0
        %855 = vmatmul.mubr.f32.gmra.mrb[0].mxu0 %v590
        %v856 = vpop.f32.mrb[0].mxu0
        %v857 = vadd.f32 0.0, %v856
        %v858 = vpop.f32.mrb[0].mxu0
        %v859 = vadd.f32 0.0, %v858
        %860 = vmatprep.mubr.f32.mxu0 0.0
        %861 = vmatmul.mubr.f32.gmra.mrb[0].mxu0 %v593
        %v862 = vpop.f32.mrb[0].mxu0
        %v863 = vadd.f32 0.0, %v862
        %v864 = vpop.f32.mrb[0].mxu0
        %v865 = vadd.f32 0.0, %v864
        %866 = vmatprep.mubr.f32.mxu0 0.0
        %867 = vmatmul.mubr.f32.gmra.mrb[0].mxu0 %v596
        %v868 = vpop.f32.mrb[0].mxu0
        %v869 = vadd.f32 0.0, %v868
        %v870 = vpop.f32.mrb[0].mxu0
        %v871 = vadd.f32 0.0, %v870
        %872 = vmatprep.mubr.f32.mxu0 0.0
        %873 = vmatmul.mubr.f32.gmra.mrb[0].mxu0 %v599
        %v874 = vpop.f32.mrb[0].mxu0
        %v875 = vadd.f32 0.0, %v874
        %v876 = vpop.f32.mrb[0].mxu0
        %v877 = vadd.f32 0.0, %v876
        %878 = vmatprep.mubr.f32.mxu0 0.0
        %879 = vmatmul.mubr.f32.gmra.mrb[0].mxu0 %v602
        %v880 = vpop.f32.mrb[0].mxu0
        %v881 = vadd.f32 0.0, %v880
        %v882 = vpop.f32.mrb[0].mxu0
        %v883 = vadd.f32 0.0, %v882
        %884 = vmatprep.mubr.f32.mxu0 0.0
        %885 = vmatmul.mubr.f32.gmra.mrb[0].mxu0 %v605
        %v886 = vpop.f32.mrb[0].mxu0
        %v887 = vadd.f32 0.0, %v886
        %v888 = vpop.f32.mrb[0].mxu0
        %v889 = vadd.f32 0.0, %v888
        %890 = vmatprep.mubr.f32.mxu0 0.0
        %891 = vmatmul.mubr.f32.gmra.mrb[0].mxu0 %v608
        %v892 = vpop.f32.mrb[0].mxu0
        %v893 = vadd.f32 0.0, %v892
        %v894 = vpop.f32.mrb[0].mxu0
        %v895 = vadd.f32 0.0, %v894
        %896 = vmatprep.mubr.f32.mxu0 0.0
        %897 = vmatmul.mubr.f32.gmra.mrb[0].mxu0 %v611
        %v898 = vpop.f32.mrb[0].mxu0
        %v899 = vadd.f32 0.0, %v898
        %v900 = vpop.f32.mrb[0].mxu0
        %v901 = vadd.f32 0.0, %v900
        %902 = vmatprep.mubr.f32.mxu0 0.0
        %903 = vmatmul.mubr.f32.gmra.mrb[0].mxu0 %v614
        %v904 = vpop.f32.mrb[0].mxu0
        %v905 = vadd.f32 0.0, %v904
        %v906 = vpop.f32.mrb[0].mxu0
        %v907 = vadd.f32 0.0, %v906
        %908 = vmatprep.mubr.f32.mxu0 0.0
        %909 = vmatmul.mubr.f32.gmra.mrb[0].mxu0 %v617
        %v910 = vpop.f32.mrb[0].mxu0
        %v911 = vadd.f32 0.0, %v910
        %v912 = vpop.f32.mrb[0].mxu0
        %v913 = vadd.f32 0.0, %v912
        %914 = vmatprep.mubr.f32.mxu0 0.0
        %915 = vmatmul.mubr.f32.gmra.mrb[0].mxu0 %v620
        %v916 = vpop.f32.mrb[0].mxu0
        %v917 = vadd.f32 0.0, %v916
        %v918 = vpop.f32.mrb[0].mxu0
        %v919 = vadd.f32 0.0, %v918
        %920 = vmatprep.mubr.f32.mxu0 0.0
        %921 = vmatmul.mubr.f32.gmra.mrb[0].mxu0 %v623
        %v922 = vpop.f32.mrb[0].mxu0
        %v923 = vadd.f32 0.0, %v922
        %v924 = vpop.f32.mrb[0].mxu0
        %v925 = vadd.f32 0.0, %v924
        %926 = vmatprep.mubr.f32.mxu0 0.0
        %927 = vmatmul.mubr.f32.gmra.mrb[0].mxu0 %v626
        %v928 = vpop.f32.mrb[0].mxu0
        %v929 = vadd.f32 0.0, %v928
        %v930 = vpop.f32.mrb[0].mxu0
        %v931 = vadd.f32 0.0, %v930
        %932 = vmatprep.mubr.f32.mxu0 0.0
        %933 = vmatmul.mubr.f32.gmra.mrb[0].mxu0 %v629
        %v934 = vpop.f32.mrb[0].mxu0
        %v935 = vadd.f32 0.0, %v934
        %v936 = vpop.f32.mrb[0].mxu0
        %v937 = vadd.f32 0.0, %v936
        %938 = vmatprep.mubr.f32.mxu0 0.0
        %939 = vmatmul.mubr.f32.gmra.mrb[0].mxu0 %v632
        %v940 = vpop.f32.mrb[0].mxu0
        %v941 = vadd.f32 0.0, %v940
        %v942 = vpop.f32.mrb[0].mxu0
        %v943 = vadd.f32 0.0, %v942
        %944 = vmatprep.mubr.f32.mxu0 0.0
        %945 = vmatmul.mubr.f32.gmra.mrb[0].mxu0 %v635
        %v946 = vpop.f32.mrb[0].mxu0
        %v947 = vadd.f32 0.0, %v946
        %v948 = vpop.f32.mrb[0].mxu0
        %v949 = vadd.f32 0.0, %v948
        %950 = vmatprep.mubr.f32.mxu0 0.0
        %951 = vmatmul.mubr.f32.gmra.mrb[0].mxu0 %v638
        %v952 = vpop.f32.mrb[0].mxu0
        %v953 = vadd.f32 0.0, %v952
        %v954 = vpop.f32.mrb[0].mxu0
        %v955 = vadd.f32 0.0, %v954
        %956 = vmatprep.mubr.f32.mxu0 0.0
        %957 = vmatmul.mubr.f32.gmra.mrb[0].mxu0 %v641
        %v958 = vpop.f32.mrb[0].mxu0
        %v959 = vadd.f32 0.0, %v958
        %v960 = vpop.f32.mrb[0].mxu0
        %v961 = vadd.f32 0.0, %v960
        %962 = vmatprep.mubr.f32.mxu0 0.0
        %963 = vmatmul.mubr.f32.gmra.mrb[0].mxu0 %v644
        %v964 = vpop.f32.mrb[0].mxu0
        %v965 = vadd.f32 0.0, %v964
        %v966 = vpop.f32.mrb[0].mxu0
        %v967 = vadd.f32 0.0, %v966
        %968 = vmatprep.mubr.f32.mxu0 0.0
        %969 = vmatmul.mubr.f32.gmra.mrb[0].mxu0 %v647
        %v970 = vpop.f32.mrb[0].mxu0
        %v971 = vadd.f32 0.0, %v970
        %v972 = vpop.f32.mrb[0].mxu0
        %v973 = vadd.f32 0.0, %v972
        %974 = vmatprep.mubr.f32.mxu0 0.0
        %975 = vmatmul.mubr.f32.gmra.mrb[0].mxu0 %v650
        %v976 = vpop.f32.mrb[0].mxu0
        %v977 = vadd.f32 0.0, %v976
        %v978 = vpop.f32.mrb[0].mxu0
        %v979 = vadd.f32 0.0, %v978
        %980 = vmatprep.mubr.f32.mxu0 0.0
        %981 = vmatmul.mubr.f32.gmra.mrb[0].mxu0 %v653
        %v982 = vpop.f32.mrb[0].mxu0
        %v983 = vadd.f32 0.0, %v982
        %v984 = vpop.f32.mrb[0].mxu0
        %v985 = vadd.f32 0.0, %v984
        %986 = vmatprep.mubr.f32.mxu0 0.0
        %987 = vmatmul.mubr.f32.gmra.mrb[0].mxu0 %v656
        %v988 = vpop.f32.mrb[0].mxu0
        %v989 = vadd.f32 0.0, %v988
        %v990 = vpop.f32.mrb[0].mxu0
        %v991 = vadd.f32 0.0, %v990
        %992 = vmatprep.mubr.f32.mxu0 0.0
        %993 = vmatmul.mubr.f32.gmra.mrb[0].mxu0 %v659
        %v994 = vpop.f32.mrb[0].mxu0
        %v995 = vadd.f32 0.0, %v994
        %v996 = vpop.f32.mrb[0].mxu0
        %v997 = vadd.f32 0.0, %v996
        %998 = vmatprep.mubr.f32.mxu0 0.0
        %999 = vmatmul.mubr.f32.gmra.mrb[0].mxu0 %v662
        %v1000 = vpop.f32.mrb[0].mxu0
        %v1001 = vadd.f32 0.0, %v1000
        %v1002 = vpop.f32.mrb[0].mxu0
        %v1003 = vadd.f32 0.0, %v1002
        %1004 = vmatprep.mubr.f32.mxu0 0.0
        %1005 = vmatmul.mubr.f32.gmra.mrb[0].mxu0 %v665
        %v1006 = vpop.f32.mrb[0].mxu0
        %v1007 = vadd.f32 0.0, %v1006
        %v1008 = vpop.f32.mrb[0].mxu0
        %v1009 = vadd.f32 0.0, %v1008
        %1010 = vmatprep.mubr.f32.mxu0 0.0
        %1011 = vmatmul.mubr.f32.gmra.mrb[0].mxu0 %v668
        %v1012 = vpop.f32.mrb[0].mxu0
        %v1013 = vadd.f32 0.0, %v1012
        %v1014 = vpop.f32.mrb[0].mxu0
        %v1015 = vadd.f32 0.0, %v1014
        %1016 = vmatprep.mubr.f32.mxu0 0.0
        %1017 = vmatmul.mubr.f32.gmra.mrb[0].mxu0 %v671
        %v1018 = vpop.f32.mrb[0].mxu0
        %v1019 = vadd.f32 0.0, %v1018
        %v1020 = vpop.f32.mrb[0].mxu0
        %v1021 = vadd.f32 0.0, %v1020
        %1022 = vmatprep.mubr.f32.mxu0 0.0
        %1023 = vmatmul.mubr.f32.gmra.mrb[0].mxu0 %v674
        %v1024 = vpop.f32.mrb[0].mxu0
        %v1025 = vadd.f32 0.0, %v1024
        %v1026 = vpop.f32.mrb[0].mxu0
        %v1027 = vadd.f32 0.0, %v1026
        %1028 = vmatprep.mubr.f32.mxu0 0.0
        %1029 = vmatmul.mubr.f32.gmra.mrb[0].mxu0 %v677
        %v1030 = vpop.f32.mrb[0].mxu0
        %v1031 = vadd.f32 0.0, %v1030
        %v1032 = vpop.f32.mrb[0].mxu0
        %v1033 = vadd.f32 0.0, %v1032
        %1034 = vmatprep.mubr.f32.mxu0 0.0
        %1035 = vmatmul.mubr.f32.gmra.mrb[0].mxu0 %v680
        %v1036 = vpop.f32.mrb[0].mxu0
        %v1037 = vadd.f32 0.0, %v1036
        %v1038 = vpop.f32.mrb[0].mxu0
        %v1039 = vadd.f32 0.0, %v1038
        %1040 = vmatprep.mubr.f32.mxu0 0.0
        %1041 = vmatmul.mubr.f32.gmra.mrb[0].mxu0 %v683
        %v1042 = vpop.f32.mrb[0].mxu0
        %v1043 = vadd.f32 0.0, %v1042
        %v1044 = vpop.f32.mrb[0].mxu0
        %v1045 = vadd.f32 0.0, %v1044
        %1046 = vmatprep.mubr.f32.mxu0 0.0
        %1047 = vmatmul.mubr.f32.gmra.mrb[0].mxu0 %v686
        %v1048 = vpop.f32.mrb[0].mxu0
        %v1049 = vadd.f32 0.0, %v1048
        %v1050 = vpop.f32.mrb[0].mxu0
        %v1051 = vadd.f32 0.0, %v1050
        %1052 = vmatprep.mubr.f32.mxu0 0.0
        %1053 = vmatmul.mubr.f32.gmra.mrb[0].mxu0 %v689
        %v1054 = vpop.f32.mrb[0].mxu0
        %v1055 = vadd.f32 0.0, %v1054
        %v1056 = vpop.f32.mrb[0].mxu0
        %v1057 = vadd.f32 0.0, %v1056
        %1058 = vmatprep.mubr.f32.mxu0 0.0
        %1059 = vmatmul.mubr.f32.gmra.mrb[0].mxu0 %v692
        %v1060 = vpop.f32.mrb[0].mxu0
        %v1061 = vadd.f32 0.0, %v1060
        %v1062 = vpop.f32.mrb[0].mxu0
        %v1063 = vadd.f32 0.0, %v1062
        %1064 = vmatprep.mubr.f32.mxu0 0.0
        %1065 = vmatmul.mubr.f32.gmra.mrb[0].mxu0 %v695
        %v1066 = vpop.f32.mrb[0].mxu0
        %v1067 = vadd.f32 0.0, %v1066
        %v1068 = vpop.f32.mrb[0].mxu0
        %v1069 = vadd.f32 0.0, %v1068
        %1070 = vmatprep.mubr.f32.mxu0 0.0
        %1071 = vmatmul.mubr.f32.gmra.mrb[0].mxu0 %v698
        %v1072 = vpop.f32.mrb[0].mxu0
        %v1073 = vadd.f32 0.0, %v1072
        %v1074 = vpop.f32.mrb[0].mxu0
        %v1075 = vadd.f32 0.0, %v1074
        %1076 = vmatprep.mubr.f32.mxu0 0.0
        %1077 = vmatmul.mubr.f32.gmra.mrb[0].mxu0 %v701
        %v1078 = vpop.f32.mrb[0].mxu0
        %v1079 = vadd.f32 0.0, %v1078
        %v1080 = vpop.f32.mrb[0].mxu0
        %v1081 = vadd.f32 0.0, %v1080
        %1082 = vmatprep.mubr.f32.mxu0 0.0
        %1083 = vmatmul.mubr.f32.gmra.mrb[0].mxu0 %v704
        %v1084 = vpop.f32.mrb[0].mxu0
        %v1085 = vadd.f32 0.0, %v1084
        %v1086 = vpop.f32.mrb[0].mxu0
        %v1087 = vadd.f32 0.0, %v1086
        %1088 = vmatprep.mubr.f32.mxu0 0.0
        %1089 = vmatmul.mubr.f32.gmra.mrb[0].mxu0 %v707
        %v1090 = vpop.f32.mrb[0].mxu0
        %v1091 = vadd.f32 0.0, %v1090
        %v1092 = vpop.f32.mrb[0].mxu0
        %v1093 = vadd.f32 0.0, %v1092
        %1094 = vmatprep.mubr.f32.mxu0 0.0
        %1095 = vmatmul.mubr.f32.gmra.mrb[0].mxu0 %v710
        %v1096 = vpop.f32.mrb[0].mxu0
        %v1097 = vadd.f32 0.0, %v1096
        %v1098 = vpop.f32.mrb[0].mxu0
        %v1099 = vadd.f32 0.0, %v1098
        %1100 = vmatprep.mubr.f32.mxu0 0.0
        %1101 = vmatmul.mubr.f32.gmra.mrb[0].mxu0 %v713
        %v1102 = vpop.f32.mrb[0].mxu0
        %v1103 = vadd.f32 0.0, %v1102
        %v1104 = vpop.f32.mrb[0].mxu0
        %v1105 = vadd.f32 0.0, %v1104
        %1106 = vmatprep.mubr.f32.mxu0 0.0
        %1107 = vmatmul.mubr.f32.gmra.mrb[0].mxu0 %v716
        %v1108 = vpop.f32.mrb[0].mxu0
        %v1109 = vadd.f32 0.0, %v1108
        %v1110 = vpop.f32.mrb[0].mxu0
        %v1111 = vadd.f32 0.0, %v1110
        %1112 = vmatprep.mubr.f32.mxu0 0.0
        %1113 = vmatmul.mubr.f32.gmra.mrb[0].mxu0 %v719
        %v1114 = vpop.f32.mrb[0].mxu0
        %v1115 = vadd.f32 0.0, %v1114
        %v1116 = vpop.f32.mrb[0].mxu0
        %v1117 = vadd.f32 0.0, %v1116
        %1118 = vmatprep.mubr.f32.mxu0 0.0
        %1119 = vmatmul.mubr.f32.gmra.mrb[0].mxu0 %v722
        %v1120 = vpop.f32.mrb[0].mxu0
        %v1121 = vadd.f32 0.0, %v1120
        %v1122 = vpop.f32.mrb[0].mxu0
        %v1123 = vadd.f32 0.0, %v1122
        %1124 = vmatprep.mubr.f32.mxu0 0.0
        %1125 = vmatmul.mubr.f32.gmra.mrb[0].mxu0 %v725
        %v1126 = vpop.f32.mrb[0].mxu0
        %v1127 = vadd.f32 0.0, %v1126
        %v1128 = vpop.f32.mrb[0].mxu0
        %v1129 = vadd.f32 0.0, %v1128
        %1130 = vmatprep.mubr.f32.mxu0 0.0
        %1131 = vmatmul.mubr.f32.gmra.mrb[0].mxu0 %v728
        %v1132 = vpop.f32.mrb[0].mxu0
        %v1133 = vadd.f32 0.0, %v1132
        %v1134 = vpop.f32.mrb[0].mxu0
        %v1135 = vadd.f32 0.0, %v1134
        %1136 = vmatprep.mubr.f32.mxu0 0.0
        %1137 = vmatmul.mubr.f32.gmra.mrb[0].mxu0 %v731
        %v1138 = vpop.f32.mrb[0].mxu0
        %v1139 = vadd.f32 0.0, %v1138
        %v1140 = vpop.f32.mrb[0].mxu0
        %v1141 = vadd.f32 0.0, %v1140
        %1142 = vmatprep.mubr.f32.mxu0 0.0
        %1143 = vmatmul.mubr.f32.gmra.mrb[0].mxu0 %v734
        %v1144 = vpop.f32.mrb[0].mxu0
        %v1145 = vadd.f32 0.0, %v1144
        %v1146 = vpop.f32.mrb[0].mxu0
        %v1147 = vadd.f32 0.0, %v1146
        %1148 = vmatprep.mubr.f32.mxu0 0.0
        %1149 = vmatmul.mubr.f32.gmra.mrb[0].mxu0 %v737
        %v1150 = vpop.f32.mrb[0].mxu0
        %v1151 = vadd.f32 0.0, %v1150
        %v1152 = vpop.f32.mrb[0].mxu0
        %v1153 = vadd.f32 0.0, %v1152
        %1154 = vmatprep.mubr.f32.mxu0 0.0
        %1155 = vmatmul.mubr.f32.gmra.mrb[0].mxu0 %v740
        %v1156 = vpop.f32.mrb[0].mxu0
        %v1157 = vadd.f32 0.0, %v1156
        %v1158 = vpop.f32.mrb[0].mxu0
        %v1159 = vadd.f32 0.0, %v1158
        %1160 = vmatprep.mubr.f32.mxu0 0.0
        %1161 = vmatmul.mubr.f32.gmra.mrb[0].mxu0 %v743
        %v1162 = vpop.f32.mrb[0].mxu0
        %v1163 = vadd.f32 0.0, %v1162
        %v1164 = vpop.f32.mrb[0].mxu0
        %v1165 = vadd.f32 0.0, %v1164
        %1166 = vmatprep.mubr.f32.mxu0 0.0
        %1167 = vmatmul.mubr.f32.gmra.mrb[0].mxu0 %v746
        %v1168 = vpop.f32.mrb[0].mxu0
        %v1169 = vadd.f32 0.0, %v1168
        %v1170 = vpop.f32.mrb[0].mxu0
        %v1171 = vadd.f32 0.0, %v1170
        %1172 = vmatprep.mubr.f32.mxu0 0.0
        %1173 = vmatmul.mubr.f32.gmra.mrb[0].mxu0 %v749
        %v1174 = vpop.f32.mrb[0].mxu0
        %v1175 = vadd.f32 0.0, %v1174
        %v1176 = vpop.f32.mrb[0].mxu0
        %v1177 = vadd.f32 0.0, %v1176
        %1178 = vmatprep.mubr.f32.mxu0 0.0
        %1179 = vmatmul.mubr.f32.gmra.mrb[0].mxu0 %v752
        %v1180 = vpop.f32.mrb[0].mxu0
        %v1181 = vadd.f32 0.0, %v1180
        %v1182 = vpop.f32.mrb[0].mxu0
        %v1183 = vadd.f32 0.0, %v1182
        %1184 = vmatprep.mubr.f32.mxu0 0.0
        %1185 = vmatmul.mubr.f32.gmra.mrb[0].mxu0 %v755
        %v1186 = vpop.f32.mrb[0].mxu0
        %v1187 = vadd.f32 0.0, %v1186
        %v1188 = vpop.f32.mrb[0].mxu0
        %v1189 = vadd.f32 0.0, %v1188
        %1190 = vmatprep.mubr.f32.mxu0 0.0
        %1191 = vmatmul.mubr.f32.gmra.mrb[0].mxu0 %v758
        %v1192 = vpop.f32.mrb[0].mxu0
        %v1193 = vadd.f32 0.0, %v1192
        %v1194 = vpop.f32.mrb[0].mxu0
        %v1195 = vadd.f32 0.0, %v1194
        %1196 = vmatprep.mubr.f32.mxu0 0.0
        %1197 = vmatmul.mubr.f32.gmra.mrb[0].mxu0 %v761
        %v1198 = vpop.f32.mrb[0].mxu0
        %v1199 = vadd.f32 0.0, %v1198
        %v1200 = vpop.f32.mrb[0].mxu0
        %v1201 = vadd.f32 0.0, %v1200
        %1202 = vmatprep.mubr.f32.mxu0 0.0
        %1203 = vmatmul.mubr.f32.gmra.mrb[0].mxu0 %v764
        %v1204 = vpop.f32.mrb[0].mxu0
        %v1205 = vadd.f32 0.0, %v1204
        %v1206 = vpop.f32.mrb[0].mxu0
        %v1207 = vadd.f32 0.0, %v1206
        %1208 = vmatprep.mubr.f32.mxu0 0.0
        %1209 = vmatmul.mubr.f32.gmra.mrb[0].mxu0 %v767
        %v1210 = vpop.f32.mrb[0].mxu0
        %v1211 = vadd.f32 0.0, %v1210
        %v1212 = vpop.f32.mrb[0].mxu0
        %v1213 = vadd.f32 0.0, %v1212
        %1214 = vmatprep.mubr.f32.mxu0 0.0
        %1215 = vmatmul.mubr.f32.gmra.mrb[0].mxu0 %v770
        %v1216 = vpop.f32.mrb[0].mxu0
        %v1217 = vadd.f32 0.0, %v1216
        %v1218 = vpop.f32.mrb[0].mxu0
        %v1219 = vadd.f32 0.0, %v1218
        %1220 = vdwg.mxu0
        %1221 = vmatprep.subr.mxu0 %v450
        %1222 = vmatpush1.msra.mxu0 %v449
        %1223 = vmatprep.subr.mxu0 0.0
        %1224 = vmatpush1.msra.mxu0 0.0
        %1225 = vmatprep.subr.mxu0 0.0
        %1226 = vmatpush1.msra.mxu0 0.0
        %1227 = vmatprep.subr.mxu0 0.0
        %1228 = vmatpush1.msra.mxu0 0.0
        %1229 = vmatprep.subr.mxu0 0.0
        %1230 = vmatpush1.msra.mxu0 0.0
        %1231 = vmatprep.subr.mxu0 0.0
        %1232 = vmatpush1.msra.mxu0 0.0
        %1233 = vmatprep.subr.mxu0 0.0
        %1234 = vmatpush1.msra.mxu0 0.0
        %1235 = vmatprep.subr.mxu0 0.0
        %1236 = vmatpush1.msra.mxu0 0.0
        %1237 = vmatprep.subr.mxu0 0.0
        %1238 = vmatpush1.msra.mxu0 0.0
        %1239 = vmatprep.subr.mxu0 0.0
        %1240 = vmatpush1.msra.mxu0 0.0
        %1241 = vmatprep.subr.mxu0 0.0
        %1242 = vmatpush1.msra.mxu0 0.0
        %1243 = vmatprep.subr.mxu0 0.0
        %1244 = vmatpush1.msra.mxu0 0.0
        %1245 = vmatprep.subr.mxu0 0.0
        %1246 = vmatpush1.msra.mxu0 0.0
        %1247 = vmatprep.subr.mxu0 0.0
        %1248 = vmatpush1.msra.mxu0 0.0
        %1249 = vmatprep.subr.mxu0 0.0
        %1250 = vmatpush1.msra.mxu0 0.0
        %1251 = vmatprep.subr.mxu0 0.0
        %1252 = vmatpush1.msra.mxu0 0.0
        %1253 = vmatprep.subr.mxu0 0.0
        %1254 = vmatpush1.msra.mxu0 0.0
        %1255 = vmatprep.subr.mxu0 0.0
        %1256 = vmatpush1.msra.mxu0 0.0
        %1257 = vmatprep.subr.mxu0 0.0
        %1258 = vmatpush1.msra.mxu0 0.0
        %1259 = vmatprep.subr.mxu0 0.0
        %1260 = vmatpush1.msra.mxu0 0.0
        %1261 = vmatprep.subr.mxu0 0.0
        %1262 = vmatpush1.msra.mxu0 0.0
        %1263 = vmatprep.subr.mxu0 0.0
        %1264 = vmatpush1.msra.mxu0 0.0
        %1265 = vmatprep.subr.mxu0 0.0
        %1266 = vmatpush1.msra.mxu0 0.0
        %1267 = vmatprep.subr.mxu0 0.0
        %1268 = vmatpush1.msra.mxu0 0.0
        %1269 = vmatprep.subr.mxu0 0.0
        %1270 = vmatpush1.msra.mxu0 0.0
        %1271 = vmatprep.subr.mxu0 0.0
        %1272 = vmatpush1.msra.mxu0 0.0
        %1273 = vmatprep.subr.mxu0 0.0
        %1274 = vmatpush1.msra.mxu0 0.0
        %1275 = vmatprep.subr.mxu0 0.0
        %1276 = vmatpush1.msra.mxu0 0.0
        %1277 = vmatprep.subr.mxu0 0.0
        %1278 = vmatpush1.msra.mxu0 0.0
        %1279 = vmatprep.subr.mxu0 0.0
        %1280 = vmatpush1.msra.mxu0 0.0
        %1281 = vmatprep.subr.mxu0 0.0
        %1282 = vmatpush1.msra.mxu0 0.0
        %1283 = vmatprep.subr.mxu0 0.0
        %1284 = vmatpush1.msra.mxu0 0.0
        %1285 = vmatprep.mubr.f32.mxu0 0.0
        %1286 = vmatmul.mubr.f32.gmra.mrb[0].mxu0 %v581
        %v1287 = vpop.f32.mrb[0].mxu0
        %v1288 = vadd.f32 0.0, %v1287
        %v1289 = vpop.f32.mrb[0].mxu0
        %v1290 = vadd.f32 0.0, %v1289
        %1291 = vmatprep.mubr.f32.mxu0 0.0
        %1292 = vmatmul.mubr.f32.gmra.mrb[0].mxu0 %v584
        %v1293 = vpop.f32.mrb[0].mxu0
        %v1294 = vadd.f32 0.0, %v1293
        %v1295 = vpop.f32.mrb[0].mxu0
        %v1296 = vadd.f32 0.0, %v1295
        %1297 = vmatprep.mubr.f32.mxu0 0.0
        %1298 = vmatmul.mubr.f32.gmra.mrb[0].mxu0 %v587
        %v1299 = vpop.f32.mrb[0].mxu0
        %v1300 = vadd.f32 0.0, %v1299
        %v1301 = vpop.f32.mrb[0].mxu0
        %v1302 = vadd.f32 0.0, %v1301
        %1303 = vmatprep.mubr.f32.mxu0 0.0
        %1304 = vmatmul.mubr.f32.gmra.mrb[0].mxu0 %v590
        %v1305 = vpop.f32.mrb[0].mxu0
        %v1306 = vadd.f32 0.0, %v1305
        %v1307 = vpop.f32.mrb[0].mxu0
        %v1308 = vadd.f32 0.0, %v1307
        %1309 = vmatprep.mubr.f32.mxu0 0.0
        %1310 = vmatmul.mubr.f32.gmra.mrb[0].mxu0 %v593
        %v1311 = vpop.f32.mrb[0].mxu0
        %v1312 = vadd.f32 0.0, %v1311
        %v1313 = vpop.f32.mrb[0].mxu0
        %v1314 = vadd.f32 0.0, %v1313
        %1315 = vmatprep.mubr.f32.mxu0 0.0
        %1316 = vmatmul.mubr.f32.gmra.mrb[0].mxu0 %v596
        %v1317 = vpop.f32.mrb[0].mxu0
        %v1318 = vadd.f32 0.0, %v1317
        %v1319 = vpop.f32.mrb[0].mxu0
        %v1320 = vadd.f32 0.0, %v1319
        %1321 = vmatprep.mubr.f32.mxu0 0.0
        %1322 = vmatmul.mubr.f32.gmra.mrb[0].mxu0 %v599
        %v1323 = vpop.f32.mrb[0].mxu0
        %v1324 = vadd.f32 0.0, %v1323
        %v1325 = vpop.f32.mrb[0].mxu0
        %v1326 = vadd.f32 0.0, %v1325
        %1327 = vmatprep.mubr.f32.mxu0 0.0
        %1328 = vmatmul.mubr.f32.gmra.mrb[0].mxu0 %v602
        %v1329 = vpop.f32.mrb[0].mxu0
        %v1330 = vadd.f32 0.0, %v1329
        %v1331 = vpop.f32.mrb[0].mxu0
        %v1332 = vadd.f32 0.0, %v1331
        %1333 = vmatprep.mubr.f32.mxu0 0.0
        %1334 = vmatmul.mubr.f32.gmra.mrb[0].mxu0 %v605
        %v1335 = vpop.f32.mrb[0].mxu0
        %v1336 = vadd.f32 0.0, %v1335
        %v1337 = vpop.f32.mrb[0].mxu0
        %v1338 = vadd.f32 0.0, %v1337
        %1339 = vmatprep.mubr.f32.mxu0 0.0
        %1340 = vmatmul.mubr.f32.gmra.mrb[0].mxu0 %v608
        %v1341 = vpop.f32.mrb[0].mxu0
        %v1342 = vadd.f32 0.0, %v1341
        %v1343 = vpop.f32.mrb[0].mxu0
        %v1344 = vadd.f32 0.0, %v1343
        %1345 = vmatprep.mubr.f32.mxu0 0.0
        %1346 = vmatmul.mubr.f32.gmra.mrb[0].mxu0 %v611
        %v1347 = vpop.f32.mrb[0].mxu0
        %v1348 = vadd.f32 0.0, %v1347
        %v1349 = vpop.f32.mrb[0].mxu0
        %v1350 = vadd.f32 0.0, %v1349
        %1351 = vmatprep.mubr.f32.mxu0 0.0
        %1352 = vmatmul.mubr.f32.gmra.mrb[0].mxu0 %v614
        %v1353 = vpop.f32.mrb[0].mxu0
        %v1354 = vadd.f32 0.0, %v1353
        %v1355 = vpop.f32.mrb[0].mxu0
        %v1356 = vadd.f32 0.0, %v1355
        %1357 = vmatprep.mubr.f32.mxu0 0.0
        %1358 = vmatmul.mubr.f32.gmra.mrb[0].mxu0 %v617
        %v1359 = vpop.f32.mrb[0].mxu0
        %v1360 = vadd.f32 0.0, %v1359
        %v1361 = vpop.f32.mrb[0].mxu0
        %v1362 = vadd.f32 0.0, %v1361
        %1363 = vmatprep.mubr.f32.mxu0 0.0
        %1364 = vmatmul.mubr.f32.gmra.mrb[0].mxu0 %v620
        %v1365 = vpop.f32.mrb[0].mxu0
        %v1366 = vadd.f32 0.0, %v1365
        %v1367 = vpop.f32.mrb[0].mxu0
        %v1368 = vadd.f32 0.0, %v1367
        %1369 = vmatprep.mubr.f32.mxu0 0.0
        %1370 = vmatmul.mubr.f32.gmra.mrb[0].mxu0 %v623
        %v1371 = vpop.f32.mrb[0].mxu0
        %v1372 = vadd.f32 0.0, %v1371
        %v1373 = vpop.f32.mrb[0].mxu0
        %v1374 = vadd.f32 0.0, %v1373
        %1375 = vmatprep.mubr.f32.mxu0 0.0
        %1376 = vmatmul.mubr.f32.gmra.mrb[0].mxu0 %v626
        %v1377 = vpop.f32.mrb[0].mxu0
        %v1378 = vadd.f32 0.0, %v1377
        %v1379 = vpop.f32.mrb[0].mxu0
        %v1380 = vadd.f32 0.0, %v1379
        %1381 = vmatprep.mubr.f32.mxu0 0.0
        %1382 = vmatmul.mubr.f32.gmra.mrb[0].mxu0 %v629
        %v1383 = vpop.f32.mrb[0].mxu0
        %v1384 = vadd.f32 0.0, %v1383
        %v1385 = vpop.f32.mrb[0].mxu0
        %v1386 = vadd.f32 0.0, %v1385
        %1387 = vmatprep.mubr.f32.mxu0 0.0
        %1388 = vmatmul.mubr.f32.gmra.mrb[0].mxu0 %v632
        %v1389 = vpop.f32.mrb[0].mxu0
        %v1390 = vadd.f32 0.0, %v1389
        %v1391 = vpop.f32.mrb[0].mxu0
        %v1392 = vadd.f32 0.0, %v1391
        %1393 = vmatprep.mubr.f32.mxu0 0.0
        %1394 = vmatmul.mubr.f32.gmra.mrb[0].mxu0 %v635
        %v1395 = vpop.f32.mrb[0].mxu0
        %v1396 = vadd.f32 0.0, %v1395
        %v1397 = vpop.f32.mrb[0].mxu0
        %v1398 = vadd.f32 0.0, %v1397
        %1399 = vmatprep.mubr.f32.mxu0 0.0
        %1400 = vmatmul.mubr.f32.gmra.mrb[0].mxu0 %v638
        %v1401 = vpop.f32.mrb[0].mxu0
        %v1402 = vadd.f32 0.0, %v1401
        %v1403 = vpop.f32.mrb[0].mxu0
        %v1404 = vadd.f32 0.0, %v1403
        %1405 = vmatprep.mubr.f32.mxu0 0.0
        %1406 = vmatmul.mubr.f32.gmra.mrb[0].mxu0 %v641
        %v1407 = vpop.f32.mrb[0].mxu0
        %v1408 = vadd.f32 0.0, %v1407
        %v1409 = vpop.f32.mrb[0].mxu0
        %v1410 = vadd.f32 0.0, %v1409
        %1411 = vmatprep.mubr.f32.mxu0 0.0
        %1412 = vmatmul.mubr.f32.gmra.mrb[0].mxu0 %v644
        %v1413 = vpop.f32.mrb[0].mxu0
        %v1414 = vadd.f32 0.0, %v1413
        %v1415 = vpop.f32.mrb[0].mxu0
        %v1416 = vadd.f32 0.0, %v1415
        %1417 = vmatprep.mubr.f32.mxu0 0.0
        %1418 = vmatmul.mubr.f32.gmra.mrb[0].mxu0 %v647
        %v1419 = vpop.f32.mrb[0].mxu0
        %v1420 = vadd.f32 0.0, %v1419
        %v1421 = vpop.f32.mrb[0].mxu0
        %v1422 = vadd.f32 0.0, %v1421
        %1423 = vmatprep.mubr.f32.mxu0 0.0
        %1424 = vmatmul.mubr.f32.gmra.mrb[0].mxu0 %v650
        %v1425 = vpop.f32.mrb[0].mxu0
        %v1426 = vadd.f32 0.0, %v1425
        %v1427 = vpop.f32.mrb[0].mxu0
        %v1428 = vadd.f32 0.0, %v1427
        %1429 = vmatprep.mubr.f32.mxu0 0.0
        %1430 = vmatmul.mubr.f32.gmra.mrb[0].mxu0 %v653
        %v1431 = vpop.f32.mrb[0].mxu0
        %v1432 = vadd.f32 0.0, %v1431
        %v1433 = vpop.f32.mrb[0].mxu0
        %v1434 = vadd.f32 0.0, %v1433
        %1435 = vmatprep.mubr.f32.mxu0 0.0
        %1436 = vmatmul.mubr.f32.gmra.mrb[0].mxu0 %v656
        %v1437 = vpop.f32.mrb[0].mxu0
        %v1438 = vadd.f32 0.0, %v1437
        %v1439 = vpop.f32.mrb[0].mxu0
        %v1440 = vadd.f32 0.0, %v1439
        %1441 = vmatprep.mubr.f32.mxu0 0.0
        %1442 = vmatmul.mubr.f32.gmra.mrb[0].mxu0 %v659
        %v1443 = vpop.f32.mrb[0].mxu0
        %v1444 = vadd.f32 0.0, %v1443
        %v1445 = vpop.f32.mrb[0].mxu0
        %v1446 = vadd.f32 0.0, %v1445
        %1447 = vmatprep.mubr.f32.mxu0 0.0
        %1448 = vmatmul.mubr.f32.gmra.mrb[0].mxu0 %v662
        %v1449 = vpop.f32.mrb[0].mxu0
        %v1450 = vadd.f32 0.0, %v1449
        %v1451 = vpop.f32.mrb[0].mxu0
        %v1452 = vadd.f32 0.0, %v1451
        %1453 = vmatprep.mubr.f32.mxu0 0.0
        %1454 = vmatmul.mubr.f32.gmra.mrb[0].mxu0 %v665
        %v1455 = vpop.f32.mrb[0].mxu0
        %v1456 = vadd.f32 0.0, %v1455
        %v1457 = vpop.f32.mrb[0].mxu0
        %v1458 = vadd.f32 0.0, %v1457
        %1459 = vmatprep.mubr.f32.mxu0 0.0
        %1460 = vmatmul.mubr.f32.gmra.mrb[0].mxu0 %v668
        %v1461 = vpop.f32.mrb[0].mxu0
        %v1462 = vadd.f32 0.0, %v1461
        %v1463 = vpop.f32.mrb[0].mxu0
        %v1464 = vadd.f32 0.0, %v1463
        %1465 = vmatprep.mubr.f32.mxu0 0.0
        %1466 = vmatmul.mubr.f32.gmra.mrb[0].mxu0 %v671
        %v1467 = vpop.f32.mrb[0].mxu0
        %v1468 = vadd.f32 0.0, %v1467
        %v1469 = vpop.f32.mrb[0].mxu0
        %v1470 = vadd.f32 0.0, %v1469
        %1471 = vmatprep.mubr.f32.mxu0 0.0
        %1472 = vmatmul.mubr.f32.gmra.mrb[0].mxu0 %v674
        %v1473 = vpop.f32.mrb[0].mxu0
        %v1474 = vadd.f32 0.0, %v1473
        %v1475 = vpop.f32.mrb[0].mxu0
        %v1476 = vadd.f32 0.0, %v1475
        %1477 = vmatprep.mubr.f32.mxu0 0.0
        %1478 = vmatmul.mubr.f32.gmra.mrb[0].mxu0 %v677
        %v1479 = vpop.f32.mrb[0].mxu0
        %v1480 = vadd.f32 0.0, %v1479
        %v1481 = vpop.f32.mrb[0].mxu0
        %v1482 = vadd.f32 0.0, %v1481
        %1483 = vmatprep.mubr.f32.mxu0 0.0
        %1484 = vmatmul.mubr.f32.gmra.mrb[0].mxu0 %v680
        %v1485 = vpop.f32.mrb[0].mxu0
        %v1486 = vadd.f32 0.0, %v1485
        %v1487 = vpop.f32.mrb[0].mxu0
        %v1488 = vadd.f32 0.0, %v1487
        %1489 = vmatprep.mubr.f32.mxu0 0.0
        %1490 = vmatmul.mubr.f32.gmra.mrb[0].mxu0 %v683
        %v1491 = vpop.f32.mrb[0].mxu0
        %v1492 = vadd.f32 0.0, %v1491
        %v1493 = vpop.f32.mrb[0].mxu0
        %v1494 = vadd.f32 0.0, %v1493
        %1495 = vmatprep.mubr.f32.mxu0 0.0
        %1496 = vmatmul.mubr.f32.gmra.mrb[0].mxu0 %v686
        %v1497 = vpop.f32.mrb[0].mxu0
        %v1498 = vadd.f32 0.0, %v1497
        %v1499 = vpop.f32.mrb[0].mxu0
        %v1500 = vadd.f32 0.0, %v1499
        %1501 = vmatprep.mubr.f32.mxu0 0.0
        %1502 = vmatmul.mubr.f32.gmra.mrb[0].mxu0 %v689
        %v1503 = vpop.f32.mrb[0].mxu0
        %v1504 = vadd.f32 0.0, %v1503
        %v1505 = vpop.f32.mrb[0].mxu0
        %v1506 = vadd.f32 0.0, %v1505
        %1507 = vmatprep.mubr.f32.mxu0 0.0
        %1508 = vmatmul.mubr.f32.gmra.mrb[0].mxu0 %v692
        %v1509 = vpop.f32.mrb[0].mxu0
        %v1510 = vadd.f32 0.0, %v1509
        %v1511 = vpop.f32.mrb[0].mxu0
        %v1512 = vadd.f32 0.0, %v1511
        %1513 = vmatprep.mubr.f32.mxu0 0.0
        %1514 = vmatmul.mubr.f32.gmra.mrb[0].mxu0 %v695
        %v1515 = vpop.f32.mrb[0].mxu0
        %v1516 = vadd.f32 0.0, %v1515
        %v1517 = vpop.f32.mrb[0].mxu0
        %v1518 = vadd.f32 0.0, %v1517
        %1519 = vmatprep.mubr.f32.mxu0 0.0
        %1520 = vmatmul.mubr.f32.gmra.mrb[0].mxu0 %v698
        %v1521 = vpop.f32.mrb[0].mxu0
        %v1522 = vadd.f32 0.0, %v1521
        %v1523 = vpop.f32.mrb[0].mxu0
        %v1524 = vadd.f32 0.0, %v1523
        %1525 = vmatprep.mubr.f32.mxu0 0.0
        %1526 = vmatmul.mubr.f32.gmra.mrb[0].mxu0 %v701
        %v1527 = vpop.f32.mrb[0].mxu0
        %v1528 = vadd.f32 0.0, %v1527
        %v1529 = vpop.f32.mrb[0].mxu0
        %v1530 = vadd.f32 0.0, %v1529
        %1531 = vmatprep.mubr.f32.mxu0 0.0
        %1532 = vmatmul.mubr.f32.gmra.mrb[0].mxu0 %v704
        %v1533 = vpop.f32.mrb[0].mxu0
        %v1534 = vadd.f32 0.0, %v1533
        %v1535 = vpop.f32.mrb[0].mxu0
        %v1536 = vadd.f32 0.0, %v1535
        %1537 = vmatprep.mubr.f32.mxu0 0.0
        %1538 = vmatmul.mubr.f32.gmra.mrb[0].mxu0 %v707
        %v1539 = vpop.f32.mrb[0].mxu0
        %v1540 = vadd.f32 0.0, %v1539
        %v1541 = vpop.f32.mrb[0].mxu0
        %v1542 = vadd.f32 0.0, %v1541
        %1543 = vmatprep.mubr.f32.mxu0 0.0
        %1544 = vmatmul.mubr.f32.gmra.mrb[0].mxu0 %v710
        %v1545 = vpop.f32.mrb[0].mxu0
        %v1546 = vadd.f32 0.0, %v1545
        %v1547 = vpop.f32.mrb[0].mxu0
        %v1548 = vadd.f32 0.0, %v1547
        %1549 = vmatprep.mubr.f32.mxu0 0.0
        %1550 = vmatmul.mubr.f32.gmra.mrb[0].mxu0 %v713
        %v1551 = vpop.f32.mrb[0].mxu0
        %v1552 = vadd.f32 0.0, %v1551
        %v1553 = vpop.f32.mrb[0].mxu0
        %v1554 = vadd.f32 0.0, %v1553
        %1555 = vmatprep.mubr.f32.mxu0 0.0
        %1556 = vmatmul.mubr.f32.gmra.mrb[0].mxu0 %v716
        %v1557 = vpop.f32.mrb[0].mxu0
        %v1558 = vadd.f32 0.0, %v1557
        %v1559 = vpop.f32.mrb[0].mxu0
        %v1560 = vadd.f32 0.0, %v1559
        %1561 = vmatprep.mubr.f32.mxu0 0.0
        %1562 = vmatmul.mubr.f32.gmra.mrb[0].mxu0 %v719
        %v1563 = vpop.f32.mrb[0].mxu0
        %v1564 = vadd.f32 0.0, %v1563
        %v1565 = vpop.f32.mrb[0].mxu0
        %v1566 = vadd.f32 0.0, %v1565
        %1567 = vmatprep.mubr.f32.mxu0 0.0
        %1568 = vmatmul.mubr.f32.gmra.mrb[0].mxu0 %v722
        %v1569 = vpop.f32.mrb[0].mxu0
        %v1570 = vadd.f32 0.0, %v1569
        %v1571 = vpop.f32.mrb[0].mxu0
        %v1572 = vadd.f32 0.0, %v1571
        %1573 = vmatprep.mubr.f32.mxu0 0.0
        %1574 = vmatmul.mubr.f32.gmra.mrb[0].mxu0 %v725
        %v1575 = vpop.f32.mrb[0].mxu0
        %v1576 = vadd.f32 0.0, %v1575
        %v1577 = vpop.f32.mrb[0].mxu0
        %v1578 = vadd.f32 0.0, %v1577
        %1579 = vmatprep.mubr.f32.mxu0 0.0
        %1580 = vmatmul.mubr.f32.gmra.mrb[0].mxu0 %v728
        %v1581 = vpop.f32.mrb[0].mxu0
        %v1582 = vadd.f32 0.0, %v1581
        %v1583 = vpop.f32.mrb[0].mxu0
        %v1584 = vadd.f32 0.0, %v1583
        %1585 = vmatprep.mubr.f32.mxu0 0.0
        %1586 = vmatmul.mubr.f32.gmra.mrb[0].mxu0 %v731
        %v1587 = vpop.f32.mrb[0].mxu0
        %v1588 = vadd.f32 0.0, %v1587
        %v1589 = vpop.f32.mrb[0].mxu0
        %v1590 = vadd.f32 0.0, %v1589
        %1591 = vmatprep.mubr.f32.mxu0 0.0
        %1592 = vmatmul.mubr.f32.gmra.mrb[0].mxu0 %v734
        %v1593 = vpop.f32.mrb[0].mxu0
        %v1594 = vadd.f32 0.0, %v1593
        %v1595 = vpop.f32.mrb[0].mxu0
        %v1596 = vadd.f32 0.0, %v1595
        %1597 = vmatprep.mubr.f32.mxu0 0.0
        %1598 = vmatmul.mubr.f32.gmra.mrb[0].mxu0 %v737
        %v1599 = vpop.f32.mrb[0].mxu0
        %v1600 = vadd.f32 0.0, %v1599
        %v1601 = vpop.f32.mrb[0].mxu0
        %v1602 = vadd.f32 0.0, %v1601
        %1603 = vmatprep.mubr.f32.mxu0 0.0
        %1604 = vmatmul.mubr.f32.gmra.mrb[0].mxu0 %v740
        %v1605 = vpop.f32.mrb[0].mxu0
        %v1606 = vadd.f32 0.0, %v1605
        %v1607 = vpop.f32.mrb[0].mxu0
        %v1608 = vadd.f32 0.0, %v1607
        %1609 = vmatprep.mubr.f32.mxu0 0.0
        %1610 = vmatmul.mubr.f32.gmra.mrb[0].mxu0 %v743
        %v1611 = vpop.f32.mrb[0].mxu0
        %v1612 = vadd.f32 0.0, %v1611
        %v1613 = vpop.f32.mrb[0].mxu0
        %v1614 = vadd.f32 0.0, %v1613
        %1615 = vmatprep.mubr.f32.mxu0 0.0
        %1616 = vmatmul.mubr.f32.gmra.mrb[0].mxu0 %v746
        %v1617 = vpop.f32.mrb[0].mxu0
        %v1618 = vadd.f32 0.0, %v1617
        %v1619 = vpop.f32.mrb[0].mxu0
        %v1620 = vadd.f32 0.0, %v1619
        %1621 = vmatprep.mubr.f32.mxu0 0.0
        %1622 = vmatmul.mubr.f32.gmra.mrb[0].mxu0 %v749
        %v1623 = vpop.f32.mrb[0].mxu0
        %v1624 = vadd.f32 0.0, %v1623
        %v1625 = vpop.f32.mrb[0].mxu0
        %v1626 = vadd.f32 0.0, %v1625
        %1627 = vmatprep.mubr.f32.mxu0 0.0
        %1628 = vmatmul.mubr.f32.gmra.mrb[0].mxu0 %v752
        %v1629 = vpop.f32.mrb[0].mxu0
        %v1630 = vadd.f32 0.0, %v1629
        %v1631 = vpop.f32.mrb[0].mxu0
        %v1632 = vadd.f32 0.0, %v1631
        %1633 = vmatprep.mubr.f32.mxu0 0.0
        %1634 = vmatmul.mubr.f32.gmra.mrb[0].mxu0 %v755
        %v1635 = vpop.f32.mrb[0].mxu0
        %v1636 = vadd.f32 0.0, %v1635
        %v1637 = vpop.f32.mrb[0].mxu0
        %v1638 = vadd.f32 0.0, %v1637
        %1639 = vmatprep.mubr.f32.mxu0 0.0
        %1640 = vmatmul.mubr.f32.gmra.mrb[0].mxu0 %v758
        %v1641 = vpop.f32.mrb[0].mxu0
        %v1642 = vadd.f32 0.0, %v1641
        %v1643 = vpop.f32.mrb[0].mxu0
        %v1644 = vadd.f32 0.0, %v1643
        %1645 = vmatprep.mubr.f32.mxu0 0.0
        %1646 = vmatmul.mubr.f32.gmra.mrb[0].mxu0 %v761
        %v1647 = vpop.f32.mrb[0].mxu0
        %v1648 = vadd.f32 0.0, %v1647
        %v1649 = vpop.f32.mrb[0].mxu0
        %v1650 = vadd.f32 0.0, %v1649
        %1651 = vmatprep.mubr.f32.mxu0 0.0
        %1652 = vmatmul.mubr.f32.gmra.mrb[0].mxu0 %v764
        %v1653 = vpop.f32.mrb[0].mxu0
        %v1654 = vadd.f32 0.0, %v1653
        %v1655 = vpop.f32.mrb[0].mxu0
        %v1656 = vadd.f32 0.0, %v1655
        %1657 = vmatprep.mubr.f32.mxu0 0.0
        %1658 = vmatmul.mubr.f32.gmra.mrb[0].mxu0 %v767
        %v1659 = vpop.f32.mrb[0].mxu0
        %v1660 = vadd.f32 0.0, %v1659
        %v1661 = vpop.f32.mrb[0].mxu0
        %v1662 = vadd.f32 0.0, %v1661
        %1663 = vmatprep.mubr.f32.mxu0 0.0
        %1664 = vmatmul.mubr.f32.gmra.mrb[0].mxu0 %v770
        %v1665 = vpop.f32.mrb[0].mxu0
        %v1666 = vadd.f32 0.0, %v1665
        %v1667 = vpop.f32.mrb[0].mxu0
        %v1668 = vadd.f32 0.0, %v1667
        %1669 = vdwg.mxu0
        %v1670 = vld [vmem:[%s353] sm:$0xff]
        %v1671 = vld [vmem:[%s353 + $0x8] sm:$0xff]
        %v1672 = vld [vmem:[%s353 + $0x10] sm:$0xff]
        %v1673 = vld [vmem:[%s353 + $0x18] sm:$0xff]
        %v1674 = vld [vmem:[%s371] sm:$0xff]
        %v1675 = vld [vmem:[%s371 + $0x8] sm:$0xff]
        %v1676 = vld [vmem:[%s371 + $0x10] sm:$0xff]
        %v1677 = vld [vmem:[%s371 + $0x18] sm:$0xff]
        %1678 = vxpose.xlu0.b32.start [1/16] %v1670, 128
        %1679 = vxpose.xlu0.b32.cont [2/16] 0.0, 128
        %1680 = vxpose.xlu0.b32.cont [3/16] 0.0, 128
        %1681 = vxpose.xlu0.b32.cont [4/16] 0.0, 128
        %1682 = vxpose.xlu0.b32.cont [5/16] 0.0, 128
        %1683 = vxpose.xlu0.b32.cont [6/16] 0.0, 128
        %1684 = vxpose.xlu0.b32.cont [7/16] 0.0, 128
        %1685 = vxpose.xlu0.b32.cont [8/16] 0.0, 128
        %1686 = vxpose.xlu0.b32.cont [9/16] 0.0, 128
        %1687 = vxpose.xlu0.b32.cont [10/16] 0.0, 128
        %1688 = vxpose.xlu0.b32.cont [11/16] 0.0, 128
        %1689 = vxpose.xlu0.b32.cont [12/16] 0.0, 128
        %1690 = vxpose.xlu0.b32.cont [13/16] 0.0, 128
        %1691 = vxpose.xlu0.b32.cont [14/16] 0.0, 128
        %1692 = vxpose.xlu0.b32.cont [15/16] 0.0, 128
        %1693 = vxpose.xlu0.b32.end [16/16] 0.0, 128
        %v1694 = vpop.trf.xlu0
        %v1695 = vpop.trf.xlu0
        %v1696 = vpop.trf.xlu0
        %v1697 = vpop.trf.xlu0
        %v1698 = vpop.trf.xlu0
        %v1699 = vpop.trf.xlu0
        %v1700 = vpop.trf.xlu0
        %v1701 = vpop.trf.xlu0
        %v1702 = vpop.trf.xlu0
        %v1703 = vpop.trf.xlu0
        %v1704 = vpop.trf.xlu0
        %v1705 = vpop.trf.xlu0
        %v1706 = vpop.trf.xlu0
        %v1707 = vpop.trf.xlu0
        %v1708 = vpop.trf.xlu0
        %v1709 = vpop.trf.xlu0
        %1710 = vxpose.xlu0.b32.start [1/16] %v1671, 128
        %1711 = vxpose.xlu0.b32.cont [2/16] 0.0, 128
        %1712 = vxpose.xlu0.b32.cont [3/16] 0.0, 128
        %1713 = vxpose.xlu0.b32.cont [4/16] 0.0, 128
        %1714 = vxpose.xlu0.b32.cont [5/16] 0.0, 128
        %1715 = vxpose.xlu0.b32.cont [6/16] 0.0, 128
        %1716 = vxpose.xlu0.b32.cont [7/16] 0.0, 128
        %1717 = vxpose.xlu0.b32.cont [8/16] 0.0, 128
        %1718 = vxpose.xlu0.b32.cont [9/16] 0.0, 128
        %1719 = vxpose.xlu0.b32.cont [10/16] 0.0, 128
        %1720 = vxpose.xlu0.b32.cont [11/16] 0.0, 128
        %1721 = vxpose.xlu0.b32.cont [12/16] 0.0, 128
        %1722 = vxpose.xlu0.b32.cont [13/16] 0.0, 128
        %1723 = vxpose.xlu0.b32.cont [14/16] 0.0, 128
        %1724 = vxpose.xlu0.b32.cont [15/16] 0.0, 128
        %1725 = vxpose.xlu0.b32.end [16/16] 0.0, 128
        %v1726 = vpop.trf.xlu0
        %v1727 = vpop.trf.xlu0
        %v1728 = vpop.trf.xlu0
        %v1729 = vpop.trf.xlu0
        %v1730 = vpop.trf.xlu0
        %v1731 = vpop.trf.xlu0
        %v1732 = vpop.trf.xlu0
        %v1733 = vpop.trf.xlu0
        %v1734 = vpop.trf.xlu0
        %v1735 = vpop.trf.xlu0
        %v1736 = vpop.trf.xlu0
        %v1737 = vpop.trf.xlu0
        %v1738 = vpop.trf.xlu0
        %v1739 = vpop.trf.xlu0
        %v1740 = vpop.trf.xlu0
        %v1741 = vpop.trf.xlu0
        %1742 = vxpose.xlu0.b32.start [1/16] %v1672, 128
        %1743 = vxpose.xlu0.b32.cont [2/16] 0.0, 128
        %1744 = vxpose.xlu0.b32.cont [3/16] 0.0, 128
        %1745 = vxpose.xlu0.b32.cont [4/16] 0.0, 128
        %1746 = vxpose.xlu0.b32.cont [5/16] 0.0, 128
        %1747 = vxpose.xlu0.b32.cont [6/16] 0.0, 128
        %1748 = vxpose.xlu0.b32.cont [7/16] 0.0, 128
        %1749 = vxpose.xlu0.b32.cont [8/16] 0.0, 128
        %1750 = vxpose.xlu0.b32.cont [9/16] 0.0, 128
        %1751 = vxpose.xlu0.b32.cont [10/16] 0.0, 128
        %1752 = vxpose.xlu0.b32.cont [11/16] 0.0, 128
        %1753 = vxpose.xlu0.b32.cont [12/16] 0.0, 128
        %1754 = vxpose.xlu0.b32.cont [13/16] 0.0, 128
        %1755 = vxpose.xlu0.b32.cont [14/16] 0.0, 128
        %1756 = vxpose.xlu0.b32.cont [15/16] 0.0, 128
        %1757 = vxpose.xlu0.b32.end [16/16] 0.0, 128
        %v1758 = vpop.trf.xlu0
        %v1759 = vpop.trf.xlu0
        %v1760 = vpop.trf.xlu0
        %v1761 = vpop.trf.xlu0
        %v1762 = vpop.trf.xlu0
        %v1763 = vpop.trf.xlu0
        %v1764 = vpop.trf.xlu0
        %v1765 = vpop.trf.xlu0
        %v1766 = vpop.trf.xlu0
        %v1767 = vpop.trf.xlu0
        %v1768 = vpop.trf.xlu0
        %v1769 = vpop.trf.xlu0
        %v1770 = vpop.trf.xlu0
        %v1771 = vpop.trf.xlu0
        %v1772 = vpop.trf.xlu0
        %v1773 = vpop.trf.xlu0
        %1774 = vxpose.xlu0.b32.start [1/16] %v1673, 128
        %1775 = vxpose.xlu0.b32.cont [2/16] 0.0, 128
        %1776 = vxpose.xlu0.b32.cont [3/16] 0.0, 128
        %1777 = vxpose.xlu0.b32.cont [4/16] 0.0, 128
        %1778 = vxpose.xlu0.b32.cont [5/16] 0.0, 128
        %1779 = vxpose.xlu0.b32.cont [6/16] 0.0, 128
        %1780 = vxpose.xlu0.b32.cont [7/16] 0.0, 128
        %1781 = vxpose.xlu0.b32.cont [8/16] 0.0, 128
        %1782 = vxpose.xlu0.b32.cont [9/16] 0.0, 128
        %1783 = vxpose.xlu0.b32.cont [10/16] 0.0, 128
        %1784 = vxpose.xlu0.b32.cont [11/16] 0.0, 128
        %1785 = vxpose.xlu0.b32.cont [12/16] 0.0, 128
        %1786 = vxpose.xlu0.b32.cont [13/16] 0.0, 128
        %1787 = vxpose.xlu0.b32.cont [14/16] 0.0, 128
        %1788 = vxpose.xlu0.b32.cont [15/16] 0.0, 128
        %1789 = vxpose.xlu0.b32.end [16/16] 0.0, 128
        %v1790 = vpop.trf.xlu0
        %v1791 = vpop.trf.xlu0
        %v1792 = vpop.trf.xlu0
        %v1793 = vpop.trf.xlu0
        %v1794 = vpop.trf.xlu0
        %v1795 = vpop.trf.xlu0
        %v1796 = vpop.trf.xlu0
        %v1797 = vpop.trf.xlu0
        %v1798 = vpop.trf.xlu0
        %v1799 = vpop.trf.xlu0
        %v1800 = vpop.trf.xlu0
        %v1801 = vpop.trf.xlu0
        %v1802 = vpop.trf.xlu0
        %v1803 = vpop.trf.xlu0
        %v1804 = vpop.trf.xlu0
        %v1805 = vpop.trf.xlu0
        %v1807 = vsel %vm579, %v1694, 0
        %v1810 = vsel %vm579, %v1695, 0
        %v1813 = vsel %vm579, %v1696, 0
        %v1816 = vsel %vm579, %v1697, 0
        %v1819 = vsel %vm579, %v1698, 0
        %v1822 = vsel %vm579, %v1699, 0
        %v1825 = vsel %vm579, %v1700, 0
        %v1828 = vsel %vm579, %v1701, 0
        %v1831 = vsel %vm579, %v1702, 0
        %v1834 = vsel %vm579, %v1703, 0
        %v1837 = vsel %vm579, %v1704, 0
        %v1840 = vsel %vm579, %v1705, 0
        %v1843 = vsel %vm579, %v1706, 0
        %v1846 = vsel %vm579, %v1707, 0
        %v1849 = vsel %vm579, %v1708, 0
        %v1852 = vsel %vm579, %v1709, 0
        %v1855 = vsel %vm579, %v1726, 0
        %v1858 = vsel %vm579, %v1727, 0
        %v1861 = vsel %vm579, %v1728, 0
        %v1864 = vsel %vm579, %v1729, 0
        %v1867 = vsel %vm579, %v1730, 0
        %v1870 = vsel %vm579, %v1731, 0
        %v1873 = vsel %vm579, %v1732, 0
        %v1876 = vsel %vm579, %v1733, 0
        %v1879 = vsel %vm579, %v1734, 0
        %v1882 = vsel %vm579, %v1735, 0
        %v1885 = vsel %vm579, %v1736, 0
        %v1888 = vsel %vm579, %v1737, 0
        %v1891 = vsel %vm579, %v1738, 0
        %v1894 = vsel %vm579, %v1739, 0
        %v1897 = vsel %vm579, %v1740, 0
        %v1900 = vsel %vm579, %v1741, 0
        %v1903 = vsel %vm579, %v1758, 0
        %v1906 = vsel %vm579, %v1759, 0
        %v1909 = vsel %vm579, %v1760, 0
        %v1912 = vsel %vm579, %v1761, 0
        %v1915 = vsel %vm579, %v1762, 0
        %v1918 = vsel %vm579, %v1763, 0
        %v1921 = vsel %vm579, %v1764, 0
        %v1924 = vsel %vm579, %v1765, 0
        %v1927 = vsel %vm579, %v1766, 0
        %v1930 = vsel %vm579, %v1767, 0
        %v1933 = vsel %vm579, %v1768, 0
        %v1936 = vsel %vm579, %v1769, 0
        %v1939 = vsel %vm579, %v1770, 0
        %v1942 = vsel %vm579, %v1771, 0
        %v1945 = vsel %vm579, %v1772, 0
        %v1948 = vsel %vm579, %v1773, 0
        %v1951 = vsel %vm579, %v1790, 0
        %v1954 = vsel %vm579, %v1791, 0
        %v1957 = vsel %vm579, %v1792, 0
        %v1960 = vsel %vm579, %v1793, 0
        %v1963 = vsel %vm579, %v1794, 0
        %v1966 = vsel %vm579, %v1795, 0
        %v1969 = vsel %vm579, %v1796, 0
        %v1972 = vsel %vm579, %v1797, 0
        %v1975 = vsel %vm579, %v1798, 0
        %v1978 = vsel %vm579, %v1799, 0
        %v1981 = vsel %vm579, %v1800, 0
        %v1984 = vsel %vm579, %v1801, 0
        %v1987 = vsel %vm579, %v1802, 0
        %v1990 = vsel %vm579, %v1803, 0
        %v1993 = vsel %vm579, %v1804, 0
        %v1996 = vsel %vm579, %v1805, 0
        %1998 = vmatprep.subr.mxu0 %v1675
        %1999 = vmatpush1.msra.mxu0 %v1674
        %2000 = vmatprep.subr.mxu0 0.0
        %2001 = vmatpush1.msra.mxu0 0.0
        %2002 = vmatprep.subr.mxu0 0.0
        %2003 = vmatpush1.msra.mxu0 0.0
        %2004 = vmatprep.subr.mxu0 0.0
        %2005 = vmatpush1.msra.mxu0 0.0
        %2006 = vmatprep.subr.mxu0 0.0
        %2007 = vmatpush1.msra.mxu0 0.0
        %2008 = vmatprep.subr.mxu0 0.0
        %2009 = vmatpush1.msra.mxu0 0.0
        %2010 = vmatprep.subr.mxu0 0.0
        %2011 = vmatpush1.msra.mxu0 0.0
        %2012 = vmatprep.subr.mxu0 0.0
        %2013 = vmatpush1.msra.mxu0 0.0
        %2014 = vmatprep.subr.mxu0 0.0
        %2015 = vmatpush1.msra.mxu0 0.0
        %2016 = vmatprep.subr.mxu0 0.0
        %2017 = vmatpush1.msra.mxu0 0.0
        %2018 = vmatprep.subr.mxu0 0.0
        %2019 = vmatpush1.msra.mxu0 0.0
        %2020 = vmatprep.subr.mxu0 0.0
        %2021 = vmatpush1.msra.mxu0 0.0
        %2022 = vmatprep.subr.mxu0 0.0
        %2023 = vmatpush1.msra.mxu0 0.0
        %2024 = vmatprep.subr.mxu0 0.0
        %2025 = vmatpush1.msra.mxu0 0.0
        %2026 = vmatprep.subr.mxu0 0.0
        %2027 = vmatpush1.msra.mxu0 0.0
        %2028 = vmatprep.subr.mxu0 0.0
        %2029 = vmatpush1.msra.mxu0 0.0
        %2030 = vmatprep.subr.mxu0 0.0
        %2031 = vmatpush1.msra.mxu0 0.0
        %2032 = vmatprep.subr.mxu0 0.0
        %2033 = vmatpush1.msra.mxu0 0.0
        %2034 = vmatprep.subr.mxu0 0.0
        %2035 = vmatpush1.msra.mxu0 0.0
        %2036 = vmatprep.subr.mxu0 0.0
        %2037 = vmatpush1.msra.mxu0 0.0
        %2038 = vmatprep.subr.mxu0 0.0
        %2039 = vmatpush1.msra.mxu0 0.0
        %2040 = vmatprep.subr.mxu0 0.0
        %2041 = vmatpush1.msra.mxu0 0.0
        %2042 = vmatprep.subr.mxu0 0.0
        %2043 = vmatpush1.msra.mxu0 0.0
        %2044 = vmatprep.subr.mxu0 0.0
        %2045 = vmatpush1.msra.mxu0 0.0
        %2046 = vmatprep.subr.mxu0 0.0
        %2047 = vmatpush1.msra.mxu0 0.0
        %2048 = vmatprep.subr.mxu0 0.0
        %2049 = vmatpush1.msra.mxu0 0.0
        %2050 = vmatprep.subr.mxu0 0.0
        %2051 = vmatpush1.msra.mxu0 0.0
        %2052 = vmatprep.subr.mxu0 0.0
        %2053 = vmatpush1.msra.mxu0 0.0
        %2054 = vmatprep.subr.mxu0 0.0
        %2055 = vmatpush1.msra.mxu0 0.0
        %2056 = vmatprep.subr.mxu0 0.0
        %2057 = vmatpush1.msra.mxu0 0.0
        %2058 = vmatprep.subr.mxu0 0.0
        %2059 = vmatpush1.msra.mxu0 0.0
        %2060 = vmatprep.subr.mxu0 0.0
        %2061 = vmatpush1.msra.mxu0 0.0
        %2062 = vmatprep.mubr.f32.mxu0 0.0
        %2063 = vmatmul.mubr.f32.gmra.mrb[0].mxu0 %v1807
        %v2064 = vpop.f32.mrb[0].mxu0
        %v2065 = vadd.f32 0.0, %v2064
        %v2066 = vpop.f32.mrb[0].mxu0
        %v2067 = vadd.f32 0.0, %v2066
        %2068 = vmatprep.mubr.f32.mxu0 0.0
        %2069 = vmatmul.mubr.f32.gmra.mrb[0].mxu0 %v1810
        %v2070 = vpop.f32.mrb[0].mxu0
        %v2071 = vadd.f32 0.0, %v2070
        %v2072 = vpop.f32.mrb[0].mxu0
        %v2073 = vadd.f32 0.0, %v2072
        %2074 = vmatprep.mubr.f32.mxu0 0.0
        %2075 = vmatmul.mubr.f32.gmra.mrb[0].mxu0 %v1813
        %v2076 = vpop.f32.mrb[0].mxu0
        %v2077 = vadd.f32 0.0, %v2076
        %v2078 = vpop.f32.mrb[0].mxu0
        %v2079 = vadd.f32 0.0, %v2078
        %2080 = vmatprep.mubr.f32.mxu0 0.0
        %2081 = vmatmul.mubr.f32.gmra.mrb[0].mxu0 %v1816
        %v2082 = vpop.f32.mrb[0].mxu0
        %v2083 = vadd.f32 0.0, %v2082
        %v2084 = vpop.f32.mrb[0].mxu0
        %v2085 = vadd.f32 0.0, %v2084
        %2086 = vmatprep.mubr.f32.mxu0 0.0
        %2087 = vmatmul.mubr.f32.gmra.mrb[0].mxu0 %v1819
        %v2088 = vpop.f32.mrb[0].mxu0
        %v2089 = vadd.f32 0.0, %v2088
        %v2090 = vpop.f32.mrb[0].mxu0
        %v2091 = vadd.f32 0.0, %v2090
        %2092 = vmatprep.mubr.f32.mxu0 0.0
        %2093 = vmatmul.mubr.f32.gmra.mrb[0].mxu0 %v1822
        %v2094 = vpop.f32.mrb[0].mxu0
        %v2095 = vadd.f32 0.0, %v2094
        %v2096 = vpop.f32.mrb[0].mxu0
        %v2097 = vadd.f32 0.0, %v2096
        %2098 = vmatprep.mubr.f32.mxu0 0.0
        %2099 = vmatmul.mubr.f32.gmra.mrb[0].mxu0 %v1825
        %v2100 = vpop.f32.mrb[0].mxu0
        %v2101 = vadd.f32 0.0, %v2100
        %v2102 = vpop.f32.mrb[0].mxu0
        %v2103 = vadd.f32 0.0, %v2102
        %2104 = vmatprep.mubr.f32.mxu0 0.0
        %2105 = vmatmul.mubr.f32.gmra.mrb[0].mxu0 %v1828
        %v2106 = vpop.f32.mrb[0].mxu0
        %v2107 = vadd.f32 0.0, %v2106
        %v2108 = vpop.f32.mrb[0].mxu0
        %v2109 = vadd.f32 0.0, %v2108
        %2110 = vmatprep.mubr.f32.mxu0 0.0
        %2111 = vmatmul.mubr.f32.gmra.mrb[0].mxu0 %v1831
        %v2112 = vpop.f32.mrb[0].mxu0
        %v2113 = vadd.f32 0.0, %v2112
        %v2114 = vpop.f32.mrb[0].mxu0
        %v2115 = vadd.f32 0.0, %v2114
        %2116 = vmatprep.mubr.f32.mxu0 0.0
        %2117 = vmatmul.mubr.f32.gmra.mrb[0].mxu0 %v1834
        %v2118 = vpop.f32.mrb[0].mxu0
        %v2119 = vadd.f32 0.0, %v2118
        %v2120 = vpop.f32.mrb[0].mxu0
        %v2121 = vadd.f32 0.0, %v2120
        %2122 = vmatprep.mubr.f32.mxu0 0.0
        %2123 = vmatmul.mubr.f32.gmra.mrb[0].mxu0 %v1837
        %v2124 = vpop.f32.mrb[0].mxu0
        %v2125 = vadd.f32 0.0, %v2124
        %v2126 = vpop.f32.mrb[0].mxu0
        %v2127 = vadd.f32 0.0, %v2126
        %2128 = vmatprep.mubr.f32.mxu0 0.0
        %2129 = vmatmul.mubr.f32.gmra.mrb[0].mxu0 %v1840
        %v2130 = vpop.f32.mrb[0].mxu0
        %v2131 = vadd.f32 0.0, %v2130
        %v2132 = vpop.f32.mrb[0].mxu0
        %v2133 = vadd.f32 0.0, %v2132
        %2134 = vmatprep.mubr.f32.mxu0 0.0
        %2135 = vmatmul.mubr.f32.gmra.mrb[0].mxu0 %v1843
        %v2136 = vpop.f32.mrb[0].mxu0
        %v2137 = vadd.f32 0.0, %v2136
        %v2138 = vpop.f32.mrb[0].mxu0
        %v2139 = vadd.f32 0.0, %v2138
        %2140 = vmatprep.mubr.f32.mxu0 0.0
        %2141 = vmatmul.mubr.f32.gmra.mrb[0].mxu0 %v1846
        %v2142 = vpop.f32.mrb[0].mxu0
        %v2143 = vadd.f32 0.0, %v2142
        %v2144 = vpop.f32.mrb[0].mxu0
        %v2145 = vadd.f32 0.0, %v2144
        %2146 = vmatprep.mubr.f32.mxu0 0.0
        %2147 = vmatmul.mubr.f32.gmra.mrb[0].mxu0 %v1849
        %v2148 = vpop.f32.mrb[0].mxu0
        %v2149 = vadd.f32 0.0, %v2148
        %v2150 = vpop.f32.mrb[0].mxu0
        %v2151 = vadd.f32 0.0, %v2150
        %2152 = vmatprep.mubr.f32.mxu0 0.0
        %2153 = vmatmul.mubr.f32.gmra.mrb[0].mxu0 %v1852
        %v2154 = vpop.f32.mrb[0].mxu0
        %v2155 = vadd.f32 0.0, %v2154
        %v2156 = vpop.f32.mrb[0].mxu0
        %v2157 = vadd.f32 0.0, %v2156
        %2158 = vmatprep.mubr.f32.mxu0 0.0
        %2159 = vmatmul.mubr.f32.gmra.mrb[0].mxu0 %v1855
        %v2160 = vpop.f32.mrb[0].mxu0
        %v2161 = vadd.f32 0.0, %v2160
        %v2162 = vpop.f32.mrb[0].mxu0
        %v2163 = vadd.f32 0.0, %v2162
        %2164 = vmatprep.mubr.f32.mxu0 0.0
        %2165 = vmatmul.mubr.f32.gmra.mrb[0].mxu0 %v1858
        %v2166 = vpop.f32.mrb[0].mxu0
        %v2167 = vadd.f32 0.0, %v2166
        %v2168 = vpop.f32.mrb[0].mxu0
        %v2169 = vadd.f32 0.0, %v2168
        %2170 = vmatprep.mubr.f32.mxu0 0.0
        %2171 = vmatmul.mubr.f32.gmra.mrb[0].mxu0 %v1861
        %v2172 = vpop.f32.mrb[0].mxu0
        %v2173 = vadd.f32 0.0, %v2172
        %v2174 = vpop.f32.mrb[0].mxu0
        %v2175 = vadd.f32 0.0, %v2174
        %2176 = vmatprep.mubr.f32.mxu0 0.0
        %2177 = vmatmul.mubr.f32.gmra.mrb[0].mxu0 %v1864
        %v2178 = vpop.f32.mrb[0].mxu0
        %v2179 = vadd.f32 0.0, %v2178
        %v2180 = vpop.f32.mrb[0].mxu0
        %v2181 = vadd.f32 0.0, %v2180
        %2182 = vmatprep.mubr.f32.mxu0 0.0
        %2183 = vmatmul.mubr.f32.gmra.mrb[0].mxu0 %v1867
        %v2184 = vpop.f32.mrb[0].mxu0
        %v2185 = vadd.f32 0.0, %v2184
        %v2186 = vpop.f32.mrb[0].mxu0
        %v2187 = vadd.f32 0.0, %v2186
        %2188 = vmatprep.mubr.f32.mxu0 0.0
        %2189 = vmatmul.mubr.f32.gmra.mrb[0].mxu0 %v1870
        %v2190 = vpop.f32.mrb[0].mxu0
        %v2191 = vadd.f32 0.0, %v2190
        %v2192 = vpop.f32.mrb[0].mxu0
        %v2193 = vadd.f32 0.0, %v2192
        %2194 = vmatprep.mubr.f32.mxu0 0.0
        %2195 = vmatmul.mubr.f32.gmra.mrb[0].mxu0 %v1873
        %v2196 = vpop.f32.mrb[0].mxu0
        %v2197 = vadd.f32 0.0, %v2196
        %v2198 = vpop.f32.mrb[0].mxu0
        %v2199 = vadd.f32 0.0, %v2198
        %2200 = vmatprep.mubr.f32.mxu0 0.0
        %2201 = vmatmul.mubr.f32.gmra.mrb[0].mxu0 %v1876
        %v2202 = vpop.f32.mrb[0].mxu0
        %v2203 = vadd.f32 0.0, %v2202
        %v2204 = vpop.f32.mrb[0].mxu0
        %v2205 = vadd.f32 0.0, %v2204
        %2206 = vmatprep.mubr.f32.mxu0 0.0
        %2207 = vmatmul.mubr.f32.gmra.mrb[0].mxu0 %v1879
        %v2208 = vpop.f32.mrb[0].mxu0
        %v2209 = vadd.f32 0.0, %v2208
        %v2210 = vpop.f32.mrb[0].mxu0
        %v2211 = vadd.f32 0.0, %v2210
        %2212 = vmatprep.mubr.f32.mxu0 0.0
        %2213 = vmatmul.mubr.f32.gmra.mrb[0].mxu0 %v1882
        %v2214 = vpop.f32.mrb[0].mxu0
        %v2215 = vadd.f32 0.0, %v2214
        %v2216 = vpop.f32.mrb[0].mxu0
        %v2217 = vadd.f32 0.0, %v2216
        %2218 = vmatprep.mubr.f32.mxu0 0.0
        %2219 = vmatmul.mubr.f32.gmra.mrb[0].mxu0 %v1885
        %v2220 = vpop.f32.mrb[0].mxu0
        %v2221 = vadd.f32 0.0, %v2220
        %v2222 = vpop.f32.mrb[0].mxu0
        %v2223 = vadd.f32 0.0, %v2222
        %2224 = vmatprep.mubr.f32.mxu0 0.0
        %2225 = vmatmul.mubr.f32.gmra.mrb[0].mxu0 %v1888
        %v2226 = vpop.f32.mrb[0].mxu0
        %v2227 = vadd.f32 0.0, %v2226
        %v2228 = vpop.f32.mrb[0].mxu0
        %v2229 = vadd.f32 0.0, %v2228
        %2230 = vmatprep.mubr.f32.mxu0 0.0
        %2231 = vmatmul.mubr.f32.gmra.mrb[0].mxu0 %v1891
        %v2232 = vpop.f32.mrb[0].mxu0
        %v2233 = vadd.f32 0.0, %v2232
        %v2234 = vpop.f32.mrb[0].mxu0
        %v2235 = vadd.f32 0.0, %v2234
        %2236 = vmatprep.mubr.f32.mxu0 0.0
        %2237 = vmatmul.mubr.f32.gmra.mrb[0].mxu0 %v1894
        %v2238 = vpop.f32.mrb[0].mxu0
        %v2239 = vadd.f32 0.0, %v2238
        %v2240 = vpop.f32.mrb[0].mxu0
        %v2241 = vadd.f32 0.0, %v2240
        %2242 = vmatprep.mubr.f32.mxu0 0.0
        %2243 = vmatmul.mubr.f32.gmra.mrb[0].mxu0 %v1897
        %v2244 = vpop.f32.mrb[0].mxu0
        %v2245 = vadd.f32 0.0, %v2244
        %v2246 = vpop.f32.mrb[0].mxu0
        %v2247 = vadd.f32 0.0, %v2246
        %2248 = vmatprep.mubr.f32.mxu0 0.0
        %2249 = vmatmul.mubr.f32.gmra.mrb[0].mxu0 %v1900
        %v2250 = vpop.f32.mrb[0].mxu0
        %v2251 = vadd.f32 0.0, %v2250
        %v2252 = vpop.f32.mrb[0].mxu0
        %v2253 = vadd.f32 0.0, %v2252
        %2254 = vmatprep.mubr.f32.mxu0 0.0
        %2255 = vmatmul.mubr.f32.gmra.mrb[0].mxu0 %v1903
        %v2256 = vpop.f32.mrb[0].mxu0
        %v2257 = vadd.f32 0.0, %v2256
        %v2258 = vpop.f32.mrb[0].mxu0
        %v2259 = vadd.f32 0.0, %v2258
        %2260 = vmatprep.mubr.f32.mxu0 0.0
        %2261 = vmatmul.mubr.f32.gmra.mrb[0].mxu0 %v1906
        %v2262 = vpop.f32.mrb[0].mxu0
        %v2263 = vadd.f32 0.0, %v2262
        %v2264 = vpop.f32.mrb[0].mxu0
        %v2265 = vadd.f32 0.0, %v2264
        %2266 = vmatprep.mubr.f32.mxu0 0.0
        %2267 = vmatmul.mubr.f32.gmra.mrb[0].mxu0 %v1909
        %v2268 = vpop.f32.mrb[0].mxu0
        %v2269 = vadd.f32 0.0, %v2268
        %v2270 = vpop.f32.mrb[0].mxu0
        %v2271 = vadd.f32 0.0, %v2270
        %2272 = vmatprep.mubr.f32.mxu0 0.0
        %2273 = vmatmul.mubr.f32.gmra.mrb[0].mxu0 %v1912
        %v2274 = vpop.f32.mrb[0].mxu0
        %v2275 = vadd.f32 0.0, %v2274
        %v2276 = vpop.f32.mrb[0].mxu0
        %v2277 = vadd.f32 0.0, %v2276
        %2278 = vmatprep.mubr.f32.mxu0 0.0
        %2279 = vmatmul.mubr.f32.gmra.mrb[0].mxu0 %v1915
        %v2280 = vpop.f32.mrb[0].mxu0
        %v2281 = vadd.f32 0.0, %v2280
        %v2282 = vpop.f32.mrb[0].mxu0
        %v2283 = vadd.f32 0.0, %v2282
        %2284 = vmatprep.mubr.f32.mxu0 0.0
        %2285 = vmatmul.mubr.f32.gmra.mrb[0].mxu0 %v1918
        %v2286 = vpop.f32.mrb[0].mxu0
        %v2287 = vadd.f32 0.0, %v2286
        %v2288 = vpop.f32.mrb[0].mxu0
        %v2289 = vadd.f32 0.0, %v2288
        %2290 = vmatprep.mubr.f32.mxu0 0.0
        %2291 = vmatmul.mubr.f32.gmra.mrb[0].mxu0 %v1921
        %v2292 = vpop.f32.mrb[0].mxu0
        %v2293 = vadd.f32 0.0, %v2292
        %v2294 = vpop.f32.mrb[0].mxu0
        %v2295 = vadd.f32 0.0, %v2294
        %2296 = vmatprep.mubr.f32.mxu0 0.0
        %2297 = vmatmul.mubr.f32.gmra.mrb[0].mxu0 %v1924
        %v2298 = vpop.f32.mrb[0].mxu0
        %v2299 = vadd.f32 0.0, %v2298
        %v2300 = vpop.f32.mrb[0].mxu0
        %v2301 = vadd.f32 0.0, %v2300
        %2302 = vmatprep.mubr.f32.mxu0 0.0
        %2303 = vmatmul.mubr.f32.gmra.mrb[0].mxu0 %v1927
        %v2304 = vpop.f32.mrb[0].mxu0
        %v2305 = vadd.f32 0.0, %v2304
        %v2306 = vpop.f32.mrb[0].mxu0
        %v2307 = vadd.f32 0.0, %v2306
        %2308 = vmatprep.mubr.f32.mxu0 0.0
        %2309 = vmatmul.mubr.f32.gmra.mrb[0].mxu0 %v1930
        %v2310 = vpop.f32.mrb[0].mxu0
        %v2311 = vadd.f32 0.0, %v2310
        %v2312 = vpop.f32.mrb[0].mxu0
        %v2313 = vadd.f32 0.0, %v2312
        %2314 = vmatprep.mubr.f32.mxu0 0.0
        %2315 = vmatmul.mubr.f32.gmra.mrb[0].mxu0 %v1933
        %v2316 = vpop.f32.mrb[0].mxu0
        %v2317 = vadd.f32 0.0, %v2316
        %v2318 = vpop.f32.mrb[0].mxu0
        %v2319 = vadd.f32 0.0, %v2318
        %2320 = vmatprep.mubr.f32.mxu0 0.0
        %2321 = vmatmul.mubr.f32.gmra.mrb[0].mxu0 %v1936
        %v2322 = vpop.f32.mrb[0].mxu0
        %v2323 = vadd.f32 0.0, %v2322
        %v2324 = vpop.f32.mrb[0].mxu0
        %v2325 = vadd.f32 0.0, %v2324
        %2326 = vmatprep.mubr.f32.mxu0 0.0
        %2327 = vmatmul.mubr.f32.gmra.mrb[0].mxu0 %v1939
        %v2328 = vpop.f32.mrb[0].mxu0
        %v2329 = vadd.f32 0.0, %v2328
        %v2330 = vpop.f32.mrb[0].mxu0
        %v2331 = vadd.f32 0.0, %v2330
        %2332 = vmatprep.mubr.f32.mxu0 0.0
        %2333 = vmatmul.mubr.f32.gmra.mrb[0].mxu0 %v1942
        %v2334 = vpop.f32.mrb[0].mxu0
        %v2335 = vadd.f32 0.0, %v2334
        %v2336 = vpop.f32.mrb[0].mxu0
        %v2337 = vadd.f32 0.0, %v2336
        %2338 = vmatprep.mubr.f32.mxu0 0.0
        %2339 = vmatmul.mubr.f32.gmra.mrb[0].mxu0 %v1945
        %v2340 = vpop.f32.mrb[0].mxu0
        %v2341 = vadd.f32 0.0, %v2340
        %v2342 = vpop.f32.mrb[0].mxu0
        %v2343 = vadd.f32 0.0, %v2342
        %2344 = vmatprep.mubr.f32.mxu0 0.0
        %2345 = vmatmul.mubr.f32.gmra.mrb[0].mxu0 %v1948
        %v2346 = vpop.f32.mrb[0].mxu0
        %v2347 = vadd.f32 0.0, %v2346
        %v2348 = vpop.f32.mrb[0].mxu0
        %v2349 = vadd.f32 0.0, %v2348
        %2350 = vmatprep.mubr.f32.mxu0 0.0
        %2351 = vmatmul.mubr.f32.gmra.mrb[0].mxu0 %v1951
        %v2352 = vpop.f32.mrb[0].mxu0
        %v2353 = vadd.f32 0.0, %v2352
        %v2354 = vpop.f32.mrb[0].mxu0
        %v2355 = vadd.f32 0.0, %v2354
        %2356 = vmatprep.mubr.f32.mxu0 0.0
        %2357 = vmatmul.mubr.f32.gmra.mrb[0].mxu0 %v1954
        %v2358 = vpop.f32.mrb[0].mxu0
        %v2359 = vadd.f32 0.0, %v2358
        %v2360 = vpop.f32.mrb[0].mxu0
        %v2361 = vadd.f32 0.0, %v2360
        %2362 = vmatprep.mubr.f32.mxu0 0.0
        %2363 = vmatmul.mubr.f32.gmra.mrb[0].mxu0 %v1957
        %v2364 = vpop.f32.mrb[0].mxu0
        %v2365 = vadd.f32 0.0, %v2364
        %v2366 = vpop.f32.mrb[0].mxu0
        %v2367 = vadd.f32 0.0, %v2366
        %2368 = vmatprep.mubr.f32.mxu0 0.0
        %2369 = vmatmul.mubr.f32.gmra.mrb[0].mxu0 %v1960
        %v2370 = vpop.f32.mrb[0].mxu0
        %v2371 = vadd.f32 0.0, %v2370
        %v2372 = vpop.f32.mrb[0].mxu0
        %v2373 = vadd.f32 0.0, %v2372
        %2374 = vmatprep.mubr.f32.mxu0 0.0
        %2375 = vmatmul.mubr.f32.gmra.mrb[0].mxu0 %v1963
        %v2376 = vpop.f32.mrb[0].mxu0
        %v2377 = vadd.f32 0.0, %v2376
        %v2378 = vpop.f32.mrb[0].mxu0
        %v2379 = vadd.f32 0.0, %v2378
        %2380 = vmatprep.mubr.f32.mxu0 0.0
        %2381 = vmatmul.mubr.f32.gmra.mrb[0].mxu0 %v1966
        %v2382 = vpop.f32.mrb[0].mxu0
        %v2383 = vadd.f32 0.0, %v2382
        %v2384 = vpop.f32.mrb[0].mxu0
        %v2385 = vadd.f32 0.0, %v2384
        %2386 = vmatprep.mubr.f32.mxu0 0.0
        %2387 = vmatmul.mubr.f32.gmra.mrb[0].mxu0 %v1969
        %v2388 = vpop.f32.mrb[0].mxu0
        %v2389 = vadd.f32 0.0, %v2388
        %v2390 = vpop.f32.mrb[0].mxu0
        %v2391 = vadd.f32 0.0, %v2390
        %2392 = vmatprep.mubr.f32.mxu0 0.0
        %2393 = vmatmul.mubr.f32.gmra.mrb[0].mxu0 %v1972
        %v2394 = vpop.f32.mrb[0].mxu0
        %v2395 = vadd.f32 0.0, %v2394
        %v2396 = vpop.f32.mrb[0].mxu0
        %v2397 = vadd.f32 0.0, %v2396
        %2398 = vmatprep.mubr.f32.mxu0 0.0
        %2399 = vmatmul.mubr.f32.gmra.mrb[0].mxu0 %v1975
        %v2400 = vpop.f32.mrb[0].mxu0
        %v2401 = vadd.f32 0.0, %v2400
        %v2402 = vpop.f32.mrb[0].mxu0
        %v2403 = vadd.f32 0.0, %v2402
        %2404 = vmatprep.mubr.f32.mxu0 0.0
        %2405 = vmatmul.mubr.f32.gmra.mrb[0].mxu0 %v1978
        %v2406 = vpop.f32.mrb[0].mxu0
        %v2407 = vadd.f32 0.0, %v2406
        %v2408 = vpop.f32.mrb[0].mxu0
        %v2409 = vadd.f32 0.0, %v2408
        %2410 = vmatprep.mubr.f32.mxu0 0.0
        %2411 = vmatmul.mubr.f32.gmra.mrb[0].mxu0 %v1981
        %v2412 = vpop.f32.mrb[0].mxu0
        %v2413 = vadd.f32 0.0, %v2412
        %v2414 = vpop.f32.mrb[0].mxu0
        %v2415 = vadd.f32 0.0, %v2414
        %2416 = vmatprep.mubr.f32.mxu0 0.0
        %2417 = vmatmul.mubr.f32.gmra.mrb[0].mxu0 %v1984
        %v2418 = vpop.f32.mrb[0].mxu0
        %v2419 = vadd.f32 0.0, %v2418
        %v2420 = vpop.f32.mrb[0].mxu0
        %v2421 = vadd.f32 0.0, %v2420
        %2422 = vmatprep.mubr.f32.mxu0 0.0
        %2423 = vmatmul.mubr.f32.gmra.mrb[0].mxu0 %v1987
        %v2424 = vpop.f32.mrb[0].mxu0
        %v2425 = vadd.f32 0.0, %v2424
        %v2426 = vpop.f32.mrb[0].mxu0
        %v2427 = vadd.f32 0.0, %v2426
        %2428 = vmatprep.mubr.f32.mxu0 0.0
        %2429 = vmatmul.mubr.f32.gmra.mrb[0].mxu0 %v1990
        %v2430 = vpop.f32.mrb[0].mxu0
        %v2431 = vadd.f32 0.0, %v2430
        %v2432 = vpop.f32.mrb[0].mxu0
        %v2433 = vadd.f32 0.0, %v2432
        %2434 = vmatprep.mubr.f32.mxu0 0.0
        %2435 = vmatmul.mubr.f32.gmra.mrb[0].mxu0 %v1993
        %v2436 = vpop.f32.mrb[0].mxu0
        %v2437 = vadd.f32 0.0, %v2436
        %v2438 = vpop.f32.mrb[0].mxu0
        %v2439 = vadd.f32 0.0, %v2438
        %2440 = vmatprep.mubr.f32.mxu0 0.0
        %2441 = vmatmul.mubr.f32.gmra.mrb[0].mxu0 %v1996
        %v2442 = vpop.f32.mrb[0].mxu0
        %v2443 = vadd.f32 0.0, %v2442
        %v2444 = vpop.f32.mrb[0].mxu0
        %v2445 = vadd.f32 0.0, %v2444
        %2446 = vdwg.mxu0
        %2447 = vmatprep.subr.mxu0 %v1677
        %2448 = vmatpush1.msra.mxu0 %v1676
        %2449 = vmatprep.subr.mxu0 0.0
        %2450 = vmatpush1.msra.mxu0 0.0
        %2451 = vmatprep.subr.mxu0 0.0
        %2452 = vmatpush1.msra.mxu0 0.0
        %2453 = vmatprep.subr.mxu0 0.0
        %2454 = vmatpush1.msra.mxu0 0.0
        %2455 = vmatprep.subr.mxu0 0.0
        %2456 = vmatpush1.msra.mxu0 0.0
        %2457 = vmatprep.subr.mxu0 0.0
        %2458 = vmatpush1.msra.mxu0 0.0
        %2459 = vmatprep.subr.mxu0 0.0
        %2460 = vmatpush1.msra.mxu0 0.0
        %2461 = vmatprep.subr.mxu0 0.0
        %2462 = vmatpush1.msra.mxu0 0.0
        %2463 = vmatprep.subr.mxu0 0.0
        %2464 = vmatpush1.msra.mxu0 0.0
        %2465 = vmatprep.subr.mxu0 0.0
        %2466 = vmatpush1.msra.mxu0 0.0
        %2467 = vmatprep.subr.mxu0 0.0
        %2468 = vmatpush1.msra.mxu0 0.0
        %2469 = vmatprep.subr.mxu0 0.0
        %2470 = vmatpush1.msra.mxu0 0.0
        %2471 = vmatprep.subr.mxu0 0.0
        %2472 = vmatpush1.msra.mxu0 0.0
        %2473 = vmatprep.subr.mxu0 0.0
        %2474 = vmatpush1.msra.mxu0 0.0
        %2475 = vmatprep.subr.mxu0 0.0
        %2476 = vmatpush1.msra.mxu0 0.0
        %2477 = vmatprep.subr.mxu0 0.0
        %2478 = vmatpush1.msra.mxu0 0.0
        %2479 = vmatprep.subr.mxu0 0.0
        %2480 = vmatpush1.msra.mxu0 0.0
        %2481 = vmatprep.subr.mxu0 0.0
        %2482 = vmatpush1.msra.mxu0 0.0
        %2483 = vmatprep.subr.mxu0 0.0
        %2484 = vmatpush1.msra.mxu0 0.0
        %2485 = vmatprep.subr.mxu0 0.0
        %2486 = vmatpush1.msra.mxu0 0.0
        %2487 = vmatprep.subr.mxu0 0.0
        %2488 = vmatpush1.msra.mxu0 0.0
        %2489 = vmatprep.subr.mxu0 0.0
        %2490 = vmatpush1.msra.mxu0 0.0
        %2491 = vmatprep.subr.mxu0 0.0
        %2492 = vmatpush1.msra.mxu0 0.0
        %2493 = vmatprep.subr.mxu0 0.0
        %2494 = vmatpush1.msra.mxu0 0.0
        %2495 = vmatprep.subr.mxu0 0.0
        %2496 = vmatpush1.msra.mxu0 0.0
        %2497 = vmatprep.subr.mxu0 0.0
        %2498 = vmatpush1.msra.mxu0 0.0
        %2499 = vmatprep.subr.mxu0 0.0
        %2500 = vmatpush1.msra.mxu0 0.0
        %2501 = vmatprep.subr.mxu0 0.0
        %2502 = vmatpush1.msra.mxu0 0.0
        %2503 = vmatprep.subr.mxu0 0.0
        %2504 = vmatpush1.msra.mxu0 0.0
        %2505 = vmatprep.subr.mxu0 0.0
        %2506 = vmatpush1.msra.mxu0 0.0
        %2507 = vmatprep.subr.mxu0 0.0
        %2508 = vmatpush1.msra.mxu0 0.0
        %2509 = vmatprep.subr.mxu0 0.0
        %2510 = vmatpush1.msra.mxu0 0.0
        %2511 = vmatprep.mubr.f32.mxu0 0.0
        %2512 = vmatmul.mubr.f32.gmra.mrb[0].mxu0 %v1807
        %v2513 = vpop.f32.mrb[0].mxu0
        %v2514 = vadd.f32 0.0, %v2513
        %v2515 = vpop.f32.mrb[0].mxu0
        %v2516 = vadd.f32 0.0, %v2515
        %2517 = vmatprep.mubr.f32.mxu0 0.0
        %2518 = vmatmul.mubr.f32.gmra.mrb[0].mxu0 %v1810
        %v2519 = vpop.f32.mrb[0].mxu0
        %v2520 = vadd.f32 0.0, %v2519
        %v2521 = vpop.f32.mrb[0].mxu0
        %v2522 = vadd.f32 0.0, %v2521
        %2523 = vmatprep.mubr.f32.mxu0 0.0
        %2524 = vmatmul.mubr.f32.gmra.mrb[0].mxu0 %v1813
        %v2525 = vpop.f32.mrb[0].mxu0
        %v2526 = vadd.f32 0.0, %v2525
        %v2527 = vpop.f32.mrb[0].mxu0
        %v2528 = vadd.f32 0.0, %v2527
        %2529 = vmatprep.mubr.f32.mxu0 0.0
        %2530 = vmatmul.mubr.f32.gmra.mrb[0].mxu0 %v1816
        %v2531 = vpop.f32.mrb[0].mxu0
        %v2532 = vadd.f32 0.0, %v2531
        %v2533 = vpop.f32.mrb[0].mxu0
        %v2534 = vadd.f32 0.0, %v2533
        %2535 = vmatprep.mubr.f32.mxu0 0.0
        %2536 = vmatmul.mubr.f32.gmra.mrb[0].mxu0 %v1819
        %v2537 = vpop.f32.mrb[0].mxu0
        %v2538 = vadd.f32 0.0, %v2537
        %v2539 = vpop.f32.mrb[0].mxu0
        %v2540 = vadd.f32 0.0, %v2539
        %2541 = vmatprep.mubr.f32.mxu0 0.0
        %2542 = vmatmul.mubr.f32.gmra.mrb[0].mxu0 %v1822
        %v2543 = vpop.f32.mrb[0].mxu0
        %v2544 = vadd.f32 0.0, %v2543
        %v2545 = vpop.f32.mrb[0].mxu0
        %v2546 = vadd.f32 0.0, %v2545
        %2547 = vmatprep.mubr.f32.mxu0 0.0
        %2548 = vmatmul.mubr.f32.gmra.mrb[0].mxu0 %v1825
        %v2549 = vpop.f32.mrb[0].mxu0
        %v2550 = vadd.f32 0.0, %v2549
        %v2551 = vpop.f32.mrb[0].mxu0
        %v2552 = vadd.f32 0.0, %v2551
        %2553 = vmatprep.mubr.f32.mxu0 0.0
        %2554 = vmatmul.mubr.f32.gmra.mrb[0].mxu0 %v1828
        %v2555 = vpop.f32.mrb[0].mxu0
        %v2556 = vadd.f32 0.0, %v2555
        %v2557 = vpop.f32.mrb[0].mxu0
        %v2558 = vadd.f32 0.0, %v2557
        %2559 = vmatprep.mubr.f32.mxu0 0.0
        %2560 = vmatmul.mubr.f32.gmra.mrb[0].mxu0 %v1831
        %v2561 = vpop.f32.mrb[0].mxu0
        %v2562 = vadd.f32 0.0, %v2561
        %v2563 = vpop.f32.mrb[0].mxu0
        %v2564 = vadd.f32 0.0, %v2563
        %2565 = vmatprep.mubr.f32.mxu0 0.0
        %2566 = vmatmul.mubr.f32.gmra.mrb[0].mxu0 %v1834
        %v2567 = vpop.f32.mrb[0].mxu0
        %v2568 = vadd.f32 0.0, %v2567
        %v2569 = vpop.f32.mrb[0].mxu0
        %v2570 = vadd.f32 0.0, %v2569
        %2571 = vmatprep.mubr.f32.mxu0 0.0
        %2572 = vmatmul.mubr.f32.gmra.mrb[0].mxu0 %v1837
        %v2573 = vpop.f32.mrb[0].mxu0
        %v2574 = vadd.f32 0.0, %v2573
        %v2575 = vpop.f32.mrb[0].mxu0
        %v2576 = vadd.f32 0.0, %v2575
        %2577 = vmatprep.mubr.f32.mxu0 0.0
        %2578 = vmatmul.mubr.f32.gmra.mrb[0].mxu0 %v1840
        %v2579 = vpop.f32.mrb[0].mxu0
        %v2580 = vadd.f32 0.0, %v2579
        %v2581 = vpop.f32.mrb[0].mxu0
        %v2582 = vadd.f32 0.0, %v2581
        %2583 = vmatprep.mubr.f32.mxu0 0.0
        %2584 = vmatmul.mubr.f32.gmra.mrb[0].mxu0 %v1843
        %v2585 = vpop.f32.mrb[0].mxu0
        %v2586 = vadd.f32 0.0, %v2585
        %v2587 = vpop.f32.mrb[0].mxu0
        %v2588 = vadd.f32 0.0, %v2587
        %2589 = vmatprep.mubr.f32.mxu0 0.0
        %2590 = vmatmul.mubr.f32.gmra.mrb[0].mxu0 %v1846
        %v2591 = vpop.f32.mrb[0].mxu0
        %v2592 = vadd.f32 0.0, %v2591
        %v2593 = vpop.f32.mrb[0].mxu0
        %v2594 = vadd.f32 0.0, %v2593
        %2595 = vmatprep.mubr.f32.mxu0 0.0
        %2596 = vmatmul.mubr.f32.gmra.mrb[0].mxu0 %v1849
        %v2597 = vpop.f32.mrb[0].mxu0
        %v2598 = vadd.f32 0.0, %v2597
        %v2599 = vpop.f32.mrb[0].mxu0
        %v2600 = vadd.f32 0.0, %v2599
        %2601 = vmatprep.mubr.f32.mxu0 0.0
        %2602 = vmatmul.mubr.f32.gmra.mrb[0].mxu0 %v1852
        %v2603 = vpop.f32.mrb[0].mxu0
        %v2604 = vadd.f32 0.0, %v2603
        %v2605 = vpop.f32.mrb[0].mxu0
        %v2606 = vadd.f32 0.0, %v2605
        %2607 = vmatprep.mubr.f32.mxu0 0.0
        %2608 = vmatmul.mubr.f32.gmra.mrb[0].mxu0 %v1855
        %v2609 = vpop.f32.mrb[0].mxu0
        %v2610 = vadd.f32 0.0, %v2609
        %v2611 = vpop.f32.mrb[0].mxu0
        %v2612 = vadd.f32 0.0, %v2611
        %2613 = vmatprep.mubr.f32.mxu0 0.0
        %2614 = vmatmul.mubr.f32.gmra.mrb[0].mxu0 %v1858
        %v2615 = vpop.f32.mrb[0].mxu0
        %v2616 = vadd.f32 0.0, %v2615
        %v2617 = vpop.f32.mrb[0].mxu0
        %v2618 = vadd.f32 0.0, %v2617
        %2619 = vmatprep.mubr.f32.mxu0 0.0
        %2620 = vmatmul.mubr.f32.gmra.mrb[0].mxu0 %v1861
        %v2621 = vpop.f32.mrb[0].mxu0
        %v2622 = vadd.f32 0.0, %v2621
        %v2623 = vpop.f32.mrb[0].mxu0
        %v2624 = vadd.f32 0.0, %v2623
        %2625 = vmatprep.mubr.f32.mxu0 0.0
        %2626 = vmatmul.mubr.f32.gmra.mrb[0].mxu0 %v1864
        %v2627 = vpop.f32.mrb[0].mxu0
        %v2628 = vadd.f32 0.0, %v2627
        %v2629 = vpop.f32.mrb[0].mxu0
        %v2630 = vadd.f32 0.0, %v2629
        %2631 = vmatprep.mubr.f32.mxu0 0.0
        %2632 = vmatmul.mubr.f32.gmra.mrb[0].mxu0 %v1867
        %v2633 = vpop.f32.mrb[0].mxu0
        %v2634 = vadd.f32 0.0, %v2633
        %v2635 = vpop.f32.mrb[0].mxu0
        %v2636 = vadd.f32 0.0, %v2635
        %2637 = vmatprep.mubr.f32.mxu0 0.0
        %2638 = vmatmul.mubr.f32.gmra.mrb[0].mxu0 %v1870
        %v2639 = vpop.f32.mrb[0].mxu0
        %v2640 = vadd.f32 0.0, %v2639
        %v2641 = vpop.f32.mrb[0].mxu0
        %v2642 = vadd.f32 0.0, %v2641
        %2643 = vmatprep.mubr.f32.mxu0 0.0
        %2644 = vmatmul.mubr.f32.gmra.mrb[0].mxu0 %v1873
        %v2645 = vpop.f32.mrb[0].mxu0
        %v2646 = vadd.f32 0.0, %v2645
        %v2647 = vpop.f32.mrb[0].mxu0
        %v2648 = vadd.f32 0.0, %v2647
        %2649 = vmatprep.mubr.f32.mxu0 0.0
        %2650 = vmatmul.mubr.f32.gmra.mrb[0].mxu0 %v1876
        %v2651 = vpop.f32.mrb[0].mxu0
        %v2652 = vadd.f32 0.0, %v2651
        %v2653 = vpop.f32.mrb[0].mxu0
        %v2654 = vadd.f32 0.0, %v2653
        %2655 = vmatprep.mubr.f32.mxu0 0.0
        %2656 = vmatmul.mubr.f32.gmra.mrb[0].mxu0 %v1879
        %v2657 = vpop.f32.mrb[0].mxu0
        %v2658 = vadd.f32 0.0, %v2657
        %v2659 = vpop.f32.mrb[0].mxu0
        %v2660 = vadd.f32 0.0, %v2659
        %2661 = vmatprep.mubr.f32.mxu0 0.0
        %2662 = vmatmul.mubr.f32.gmra.mrb[0].mxu0 %v1882
        %v2663 = vpop.f32.mrb[0].mxu0
        %v2664 = vadd.f32 0.0, %v2663
        %v2665 = vpop.f32.mrb[0].mxu0
        %v2666 = vadd.f32 0.0, %v2665
        %2667 = vmatprep.mubr.f32.mxu0 0.0
        %2668 = vmatmul.mubr.f32.gmra.mrb[0].mxu0 %v1885
        %v2669 = vpop.f32.mrb[0].mxu0
        %v2670 = vadd.f32 0.0, %v2669
        %v2671 = vpop.f32.mrb[0].mxu0
        %v2672 = vadd.f32 0.0, %v2671
        %2673 = vmatprep.mubr.f32.mxu0 0.0
        %2674 = vmatmul.mubr.f32.gmra.mrb[0].mxu0 %v1888
        %v2675 = vpop.f32.mrb[0].mxu0
        %v2676 = vadd.f32 0.0, %v2675
        %v2677 = vpop.f32.mrb[0].mxu0
        %v2678 = vadd.f32 0.0, %v2677
        %2679 = vmatprep.mubr.f32.mxu0 0.0
        %2680 = vmatmul.mubr.f32.gmra.mrb[0].mxu0 %v1891
        %v2681 = vpop.f32.mrb[0].mxu0
        %v2682 = vadd.f32 0.0, %v2681
        %v2683 = vpop.f32.mrb[0].mxu0
        %v2684 = vadd.f32 0.0, %v2683
        %2685 = vmatprep.mubr.f32.mxu0 0.0
        %2686 = vmatmul.mubr.f32.gmra.mrb[0].mxu0 %v1894
        %v2687 = vpop.f32.mrb[0].mxu0
        %v2688 = vadd.f32 0.0, %v2687
        %v2689 = vpop.f32.mrb[0].mxu0
        %v2690 = vadd.f32 0.0, %v2689
        %2691 = vmatprep.mubr.f32.mxu0 0.0
        %2692 = vmatmul.mubr.f32.gmra.mrb[0].mxu0 %v1897
        %v2693 = vpop.f32.mrb[0].mxu0
        %v2694 = vadd.f32 0.0, %v2693
        %v2695 = vpop.f32.mrb[0].mxu0
        %v2696 = vadd.f32 0.0, %v2695
        %2697 = vmatprep.mubr.f32.mxu0 0.0
        %2698 = vmatmul.mubr.f32.gmra.mrb[0].mxu0 %v1900
        %v2699 = vpop.f32.mrb[0].mxu0
        %v2700 = vadd.f32 0.0, %v2699
        %v2701 = vpop.f32.mrb[0].mxu0
        %v2702 = vadd.f32 0.0, %v2701
        %2703 = vmatprep.mubr.f32.mxu0 0.0
        %2704 = vmatmul.mubr.f32.gmra.mrb[0].mxu0 %v1903
        %v2705 = vpop.f32.mrb[0].mxu0
        %v2706 = vadd.f32 0.0, %v2705
        %v2707 = vpop.f32.mrb[0].mxu0
        %v2708 = vadd.f32 0.0, %v2707
        %2709 = vmatprep.mubr.f32.mxu0 0.0
        %2710 = vmatmul.mubr.f32.gmra.mrb[0].mxu0 %v1906
        %v2711 = vpop.f32.mrb[0].mxu0
        %v2712 = vadd.f32 0.0, %v2711
        %v2713 = vpop.f32.mrb[0].mxu0
        %v2714 = vadd.f32 0.0, %v2713
        %2715 = vmatprep.mubr.f32.mxu0 0.0
        %2716 = vmatmul.mubr.f32.gmra.mrb[0].mxu0 %v1909
        %v2717 = vpop.f32.mrb[0].mxu0
        %v2718 = vadd.f32 0.0, %v2717
        %v2719 = vpop.f32.mrb[0].mxu0
        %v2720 = vadd.f32 0.0, %v2719
        %2721 = vmatprep.mubr.f32.mxu0 0.0
        %2722 = vmatmul.mubr.f32.gmra.mrb[0].mxu0 %v1912
        %v2723 = vpop.f32.mrb[0].mxu0
        %v2724 = vadd.f32 0.0, %v2723
        %v2725 = vpop.f32.mrb[0].mxu0
        %v2726 = vadd.f32 0.0, %v2725
        %2727 = vmatprep.mubr.f32.mxu0 0.0
        %2728 = vmatmul.mubr.f32.gmra.mrb[0].mxu0 %v1915
        %v2729 = vpop.f32.mrb[0].mxu0
        %v2730 = vadd.f32 0.0, %v2729
        %v2731 = vpop.f32.mrb[0].mxu0
        %v2732 = vadd.f32 0.0, %v2731
        %2733 = vmatprep.mubr.f32.mxu0 0.0
        %2734 = vmatmul.mubr.f32.gmra.mrb[0].mxu0 %v1918
        %v2735 = vpop.f32.mrb[0].mxu0
        %v2736 = vadd.f32 0.0, %v2735
        %v2737 = vpop.f32.mrb[0].mxu0
        %v2738 = vadd.f32 0.0, %v2737
        %2739 = vmatprep.mubr.f32.mxu0 0.0
        %2740 = vmatmul.mubr.f32.gmra.mrb[0].mxu0 %v1921
        %v2741 = vpop.f32.mrb[0].mxu0
        %v2742 = vadd.f32 0.0, %v2741
        %v2743 = vpop.f32.mrb[0].mxu0
        %v2744 = vadd.f32 0.0, %v2743
        %2745 = vmatprep.mubr.f32.mxu0 0.0
        %2746 = vmatmul.mubr.f32.gmra.mrb[0].mxu0 %v1924
        %v2747 = vpop.f32.mrb[0].mxu0
        %v2748 = vadd.f32 0.0, %v2747
        %v2749 = vpop.f32.mrb[0].mxu0
        %v2750 = vadd.f32 0.0, %v2749
        %2751 = vmatprep.mubr.f32.mxu0 0.0
        %2752 = vmatmul.mubr.f32.gmra.mrb[0].mxu0 %v1927
        %v2753 = vpop.f32.mrb[0].mxu0
        %v2754 = vadd.f32 0.0, %v2753
        %v2755 = vpop.f32.mrb[0].mxu0
        %v2756 = vadd.f32 0.0, %v2755
        %2757 = vmatprep.mubr.f32.mxu0 0.0
        %2758 = vmatmul.mubr.f32.gmra.mrb[0].mxu0 %v1930
        %v2759 = vpop.f32.mrb[0].mxu0
        %v2760 = vadd.f32 0.0, %v2759
        %v2761 = vpop.f32.mrb[0].mxu0
        %v2762 = vadd.f32 0.0, %v2761
        %2763 = vmatprep.mubr.f32.mxu0 0.0
        %2764 = vmatmul.mubr.f32.gmra.mrb[0].mxu0 %v1933
        %v2765 = vpop.f32.mrb[0].mxu0
        %v2766 = vadd.f32 0.0, %v2765
        %v2767 = vpop.f32.mrb[0].mxu0
        %v2768 = vadd.f32 0.0, %v2767
        %2769 = vmatprep.mubr.f32.mxu0 0.0
        %2770 = vmatmul.mubr.f32.gmra.mrb[0].mxu0 %v1936
        %v2771 = vpop.f32.mrb[0].mxu0
        %v2772 = vadd.f32 0.0, %v2771
        %v2773 = vpop.f32.mrb[0].mxu0
        %v2774 = vadd.f32 0.0, %v2773
        %2775 = vmatprep.mubr.f32.mxu0 0.0
        %2776 = vmatmul.mubr.f32.gmra.mrb[0].mxu0 %v1939
        %v2777 = vpop.f32.mrb[0].mxu0
        %v2778 = vadd.f32 0.0, %v2777
        %v2779 = vpop.f32.mrb[0].mxu0
        %v2780 = vadd.f32 0.0, %v2779
        %2781 = vmatprep.mubr.f32.mxu0 0.0
        %2782 = vmatmul.mubr.f32.gmra.mrb[0].mxu0 %v1942
        %v2783 = vpop.f32.mrb[0].mxu0
        %v2784 = vadd.f32 0.0, %v2783
        %v2785 = vpop.f32.mrb[0].mxu0
        %v2786 = vadd.f32 0.0, %v2785
        %2787 = vmatprep.mubr.f32.mxu0 0.0
        %2788 = vmatmul.mubr.f32.gmra.mrb[0].mxu0 %v1945
        %v2789 = vpop.f32.mrb[0].mxu0
        %v2790 = vadd.f32 0.0, %v2789
        %v2791 = vpop.f32.mrb[0].mxu0
        %v2792 = vadd.f32 0.0, %v2791
        %2793 = vmatprep.mubr.f32.mxu0 0.0
        %2794 = vmatmul.mubr.f32.gmra.mrb[0].mxu0 %v1948
        %v2795 = vpop.f32.mrb[0].mxu0
        %v2796 = vadd.f32 0.0, %v2795
        %v2797 = vpop.f32.mrb[0].mxu0
        %v2798 = vadd.f32 0.0, %v2797
        %2799 = vmatprep.mubr.f32.mxu0 0.0
        %2800 = vmatmul.mubr.f32.gmra.mrb[0].mxu0 %v1951
        %v2801 = vpop.f32.mrb[0].mxu0
        %v2802 = vadd.f32 0.0, %v2801
        %v2803 = vpop.f32.mrb[0].mxu0
        %v2804 = vadd.f32 0.0, %v2803
        %2805 = vmatprep.mubr.f32.mxu0 0.0
        %2806 = vmatmul.mubr.f32.gmra.mrb[0].mxu0 %v1954
        %v2807 = vpop.f32.mrb[0].mxu0
        %v2808 = vadd.f32 0.0, %v2807
        %v2809 = vpop.f32.mrb[0].mxu0
        %v2810 = vadd.f32 0.0, %v2809
        %2811 = vmatprep.mubr.f32.mxu0 0.0
        %2812 = vmatmul.mubr.f32.gmra.mrb[0].mxu0 %v1957
        %v2813 = vpop.f32.mrb[0].mxu0
        %v2814 = vadd.f32 0.0, %v2813
        %v2815 = vpop.f32.mrb[0].mxu0
        %v2816 = vadd.f32 0.0, %v2815
        %2817 = vmatprep.mubr.f32.mxu0 0.0
        %2818 = vmatmul.mubr.f32.gmra.mrb[0].mxu0 %v1960
        %v2819 = vpop.f32.mrb[0].mxu0
        %v2820 = vadd.f32 0.0, %v2819
        %v2821 = vpop.f32.mrb[0].mxu0
        %v2822 = vadd.f32 0.0, %v2821
        %2823 = vmatprep.mubr.f32.mxu0 0.0
        %2824 = vmatmul.mubr.f32.gmra.mrb[0].mxu0 %v1963
        %v2825 = vpop.f32.mrb[0].mxu0
        %v2826 = vadd.f32 0.0, %v2825
        %v2827 = vpop.f32.mrb[0].mxu0
        %v2828 = vadd.f32 0.0, %v2827
        %2829 = vmatprep.mubr.f32.mxu0 0.0
        %2830 = vmatmul.mubr.f32.gmra.mrb[0].mxu0 %v1966
        %v2831 = vpop.f32.mrb[0].mxu0
        %v2832 = vadd.f32 0.0, %v2831
        %v2833 = vpop.f32.mrb[0].mxu0
        %v2834 = vadd.f32 0.0, %v2833
        %2835 = vmatprep.mubr.f32.mxu0 0.0
        %2836 = vmatmul.mubr.f32.gmra.mrb[0].mxu0 %v1969
        %v2837 = vpop.f32.mrb[0].mxu0
        %v2838 = vadd.f32 0.0, %v2837
        %v2839 = vpop.f32.mrb[0].mxu0
        %v2840 = vadd.f32 0.0, %v2839
        %2841 = vmatprep.mubr.f32.mxu0 0.0
        %2842 = vmatmul.mubr.f32.gmra.mrb[0].mxu0 %v1972
        %v2843 = vpop.f32.mrb[0].mxu0
        %v2844 = vadd.f32 0.0, %v2843
        %v2845 = vpop.f32.mrb[0].mxu0
        %v2846 = vadd.f32 0.0, %v2845
        %2847 = vmatprep.mubr.f32.mxu0 0.0
        %2848 = vmatmul.mubr.f32.gmra.mrb[0].mxu0 %v1975
        %v2849 = vpop.f32.mrb[0].mxu0
        %v2850 = vadd.f32 0.0, %v2849
        %v2851 = vpop.f32.mrb[0].mxu0
        %v2852 = vadd.f32 0.0, %v2851
        %2853 = vmatprep.mubr.f32.mxu0 0.0
        %2854 = vmatmul.mubr.f32.gmra.mrb[0].mxu0 %v1978
        %v2855 = vpop.f32.mrb[0].mxu0
        %v2856 = vadd.f32 0.0, %v2855
        %v2857 = vpop.f32.mrb[0].mxu0
        %v2858 = vadd.f32 0.0, %v2857
        %2859 = vmatprep.mubr.f32.mxu0 0.0
        %2860 = vmatmul.mubr.f32.gmra.mrb[0].mxu0 %v1981
        %v2861 = vpop.f32.mrb[0].mxu0
        %v2862 = vadd.f32 0.0, %v2861
        %v2863 = vpop.f32.mrb[0].mxu0
        %v2864 = vadd.f32 0.0, %v2863
        %2865 = vmatprep.mubr.f32.mxu0 0.0
        %2866 = vmatmul.mubr.f32.gmra.mrb[0].mxu0 %v1984
        %v2867 = vpop.f32.mrb[0].mxu0
        %v2868 = vadd.f32 0.0, %v2867
        %v2869 = vpop.f32.mrb[0].mxu0
        %v2870 = vadd.f32 0.0, %v2869
        %2871 = vmatprep.mubr.f32.mxu0 0.0
        %2872 = vmatmul.mubr.f32.gmra.mrb[0].mxu0 %v1987
        %v2873 = vpop.f32.mrb[0].mxu0
        %v2874 = vadd.f32 0.0, %v2873
        %v2875 = vpop.f32.mrb[0].mxu0
        %v2876 = vadd.f32 0.0, %v2875
        %2877 = vmatprep.mubr.f32.mxu0 0.0
        %2878 = vmatmul.mubr.f32.gmra.mrb[0].mxu0 %v1990
        %v2879 = vpop.f32.mrb[0].mxu0
        %v2880 = vadd.f32 0.0, %v2879
        %v2881 = vpop.f32.mrb[0].mxu0
        %v2882 = vadd.f32 0.0, %v2881
        %2883 = vmatprep.mubr.f32.mxu0 0.0
        %2884 = vmatmul.mubr.f32.gmra.mrb[0].mxu0 %v1993
        %v2885 = vpop.f32.mrb[0].mxu0
        %v2886 = vadd.f32 0.0, %v2885
        %v2887 = vpop.f32.mrb[0].mxu0
        %v2888 = vadd.f32 0.0, %v2887
        %2889 = vmatprep.mubr.f32.mxu0 0.0
        %2890 = vmatmul.mubr.f32.gmra.mrb[0].mxu0 %v1996
        %v2891 = vpop.f32.mrb[0].mxu0
        %v2892 = vadd.f32 0.0, %v2891
        %v2893 = vpop.f32.mrb[0].mxu0
        %v2894 = vadd.f32 0.0, %v2893
        %2895 = vdwg.mxu0
        %v2896 = vld [vmem:[%s431] sm:$0xff]
        %v2897 = vld [vmem:[%s431 + $0x8] sm:$0xff]
        %v2898 = vld [vmem:[%s431 + $0x10] sm:$0xff]
        %v2899 = vld [vmem:[%s431 + $0x18] sm:$0xff]
        %v2900 = vld [vmem:[%s431 + $0x20] sm:$0xff]
        %v2901 = vld [vmem:[%s431 + $0x28] sm:$0xff]
        %v2902 = vld [vmem:[%s431 + $0x30] sm:$0xff]
        %v2903 = vld [vmem:[%s431 + $0x38] sm:$0xff]
        %v2904 = vld [vmem:[%s431 + $0x40] sm:$0xff]
        %v2905 = vld [vmem:[%s431 + $0x48] sm:$0xff]
        %v2906 = vld [vmem:[%s431 + $0x50] sm:$0xff]
        %v2907 = vld [vmem:[%s431 + $0x58] sm:$0xff]
        %v2908 = vld [vmem:[%s431 + $0x60] sm:$0xff]
        %v2909 = vld [vmem:[%s431 + $0x68] sm:$0xff]
        %v2910 = vld [vmem:[%s431 + $0x70] sm:$0xff]
        %v2911 = vld [vmem:[%s431 + $0x78] sm:$0xff]
        %v2912 = vld [vmem:[%s431 + $0x80] sm:$0xff]
        %v2913 = vld [vmem:[%s431 + $0x88] sm:$0xff]
        %v2914 = vld [vmem:[%s431 + $0x90] sm:$0xff]
        %v2915 = vld [vmem:[%s431 + $0x98] sm:$0xff]
        %v2916 = vld [vmem:[%s431 + $0xa0] sm:$0xff]
        %v2917 = vld [vmem:[%s431 + $0xa8] sm:$0xff]
        %v2918 = vld [vmem:[%s431 + $0xb0] sm:$0xff]
        %v2919 = vld [vmem:[%s431 + $0xb8] sm:$0xff]
        %v2920 = vld [vmem:[%s431 + $0xc0] sm:$0xff]
        %v2921 = vld [vmem:[%s431 + $0xc8] sm:$0xff]
        %v2922 = vld [vmem:[%s431 + $0xd0] sm:$0xff]
        %v2923 = vld [vmem:[%s431 + $0xd8] sm:$0xff]
        %v2924 = vld [vmem:[%s431 + $0xe0] sm:$0xff]
        %v2925 = vld [vmem:[%s431 + $0xe8] sm:$0xff]
        %v2926 = vld [vmem:[%s431 + $0xf0] sm:$0xff]
        %v2927 = vld [vmem:[%s431 + $0xf8] sm:$0xff]
        %v2928 = vld [vmem:[%s431 + $0x100] sm:$0xff]
        %v2929 = vld [vmem:[%s431 + $0x108] sm:$0xff]
        %v2930 = vld [vmem:[%s431 + $0x110] sm:$0xff]
        %v2931 = vld [vmem:[%s431 + $0x118] sm:$0xff]
        %v2932 = vld [vmem:[%s431 + $0x120] sm:$0xff]
        %v2933 = vld [vmem:[%s431 + $0x128] sm:$0xff]
        %v2934 = vld [vmem:[%s431 + $0x130] sm:$0xff]
        %v2935 = vld [vmem:[%s431 + $0x138] sm:$0xff]
        %v2936 = vld [vmem:[%s431 + $0x140] sm:$0xff]
        %v2937 = vld [vmem:[%s431 + $0x148] sm:$0xff]
        %v2938 = vld [vmem:[%s431 + $0x150] sm:$0xff]
        %v2939 = vld [vmem:[%s431 + $0x158] sm:$0xff]
        %v2940 = vld [vmem:[%s431 + $0x160] sm:$0xff]
        %v2941 = vld [vmem:[%s431 + $0x168] sm:$0xff]
        %v2942 = vld [vmem:[%s431 + $0x170] sm:$0xff]
        %v2943 = vld [vmem:[%s431 + $0x178] sm:$0xff]
        %v2944 = vld [vmem:[%s431 + $0x180] sm:$0xff]
        %v2945 = vld [vmem:[%s431 + $0x188] sm:$0xff]
        %v2946 = vld [vmem:[%s431 + $0x190] sm:$0xff]
        %v2947 = vld [vmem:[%s431 + $0x198] sm:$0xff]
        %v2948 = vld [vmem:[%s431 + $0x1a0] sm:$0xff]
        %v2949 = vld [vmem:[%s431 + $0x1a8] sm:$0xff]
        %v2950 = vld [vmem:[%s431 + $0x1b0] sm:$0xff]
        %v2951 = vld [vmem:[%s431 + $0x1b8] sm:$0xff]
        %v2952 = vld [vmem:[%s431 + $0x1c0] sm:$0xff]
        %v2953 = vld [vmem:[%s431 + $0x1c8] sm:$0xff]
        %v2954 = vld [vmem:[%s431 + $0x1d0] sm:$0xff]
        %v2955 = vld [vmem:[%s431 + $0x1d8] sm:$0xff]
        %v2956 = vld [vmem:[%s431 + $0x1e0] sm:$0xff]
        %v2957 = vld [vmem:[%s431 + $0x1e8] sm:$0xff]
        %v2958 = vld [vmem:[%s431 + $0x1f0] sm:$0xff]
        %v2959 = vld [vmem:[%s431 + $0x1f8] sm:$0xff]
        %2961 = vset.pattern.permute.xlu0 0
        %2962 = vperm.xlu0 %2961, %v2896
        %v2963 = vpop.permute.xlu0 %2962
        %2966 = vset.pattern.permute.xlu0 0
        %2967 = vperm.xlu0 %2966, %v2897
        %v2968 = vpop.permute.xlu0 %2967
        %2971 = vset.pattern.permute.xlu0 0
        %2972 = vperm.xlu0 %2971, %v2898
        %v2973 = vpop.permute.xlu0 %2972
        %2976 = vset.pattern.permute.xlu0 0
        %2977 = vperm.xlu0 %2976, %v2899
        %v2978 = vpop.permute.xlu0 %2977
        %2981 = vset.pattern.permute.xlu0 0
        %2982 = vperm.xlu0 %2981, %v2900
        %v2983 = vpop.permute.xlu0 %2982
        %2986 = vset.pattern.permute.xlu0 0
        %2987 = vperm.xlu0 %2986, %v2901
        %v2988 = vpop.permute.xlu0 %2987
        %2991 = vset.pattern.permute.xlu0 0
        %2992 = vperm.xlu0 %2991, %v2902
        %v2993 = vpop.permute.xlu0 %2992
        %2996 = vset.pattern.permute.xlu0 0
        %2997 = vperm.xlu0 %2996, %v2903
        %v2998 = vpop.permute.xlu0 %2997
        %3001 = vset.pattern.permute.xlu0 0
        %3002 = vperm.xlu0 %3001, %v2904
        %v3003 = vpop.permute.xlu0 %3002
        %3006 = vset.pattern.permute.xlu0 0
        %3007 = vperm.xlu0 %3006, %v2905
        %v3008 = vpop.permute.xlu0 %3007
        %3011 = vset.pattern.permute.xlu0 0
        %3012 = vperm.xlu0 %3011, %v2906
        %v3013 = vpop.permute.xlu0 %3012
        %3016 = vset.pattern.permute.xlu0 0
        %3017 = vperm.xlu0 %3016, %v2907
        %v3018 = vpop.permute.xlu0 %3017
        %3021 = vset.pattern.permute.xlu0 0
        %3022 = vperm.xlu0 %3021, %v2908
        %v3023 = vpop.permute.xlu0 %3022
        %3026 = vset.pattern.permute.xlu0 0
        %3027 = vperm.xlu0 %3026, %v2909
        %v3028 = vpop.permute.xlu0 %3027
        %3031 = vset.pattern.permute.xlu0 0
        %3032 = vperm.xlu0 %3031, %v2910
        %v3033 = vpop.permute.xlu0 %3032
        %3036 = vset.pattern.permute.xlu0 0
        %3037 = vperm.xlu0 %3036, %v2911
        %v3038 = vpop.permute.xlu0 %3037
        %3041 = vset.pattern.permute.xlu0 0
        %3042 = vperm.xlu0 %3041, %v2912
        %v3043 = vpop.permute.xlu0 %3042
        %3046 = vset.pattern.permute.xlu0 0
        %3047 = vperm.xlu0 %3046, %v2913
        %v3048 = vpop.permute.xlu0 %3047
        %3051 = vset.pattern.permute.xlu0 0
        %3052 = vperm.xlu0 %3051, %v2914
        %v3053 = vpop.permute.xlu0 %3052
        %3056 = vset.pattern.permute.xlu0 0
        %3057 = vperm.xlu0 %3056, %v2915
        %v3058 = vpop.permute.xlu0 %3057
        %3061 = vset.pattern.permute.xlu0 0
        %3062 = vperm.xlu0 %3061, %v2916
        %v3063 = vpop.permute.xlu0 %3062
        %3066 = vset.pattern.permute.xlu0 0
        %3067 = vperm.xlu0 %3066, %v2917
        %v3068 = vpop.permute.xlu0 %3067
        %3071 = vset.pattern.permute.xlu0 0
        %3072 = vperm.xlu0 %3071, %v2918
        %v3073 = vpop.permute.xlu0 %3072
        %3076 = vset.pattern.permute.xlu0 0
        %3077 = vperm.xlu0 %3076, %v2919
        %v3078 = vpop.permute.xlu0 %3077
        %3081 = vset.pattern.permute.xlu0 0
        %3082 = vperm.xlu0 %3081, %v2920
        %v3083 = vpop.permute.xlu0 %3082
        %3086 = vset.pattern.permute.xlu0 0
        %3087 = vperm.xlu0 %3086, %v2921
        %v3088 = vpop.permute.xlu0 %3087
        %3091 = vset.pattern.permute.xlu0 0
        %3092 = vperm.xlu0 %3091, %v2922
        %v3093 = vpop.permute.xlu0 %3092
        %3096 = vset.pattern.permute.xlu0 0
        %3097 = vperm.xlu0 %3096, %v2923
        %v3098 = vpop.permute.xlu0 %3097
        %3101 = vset.pattern.permute.xlu0 0
        %3102 = vperm.xlu0 %3101, %v2924
        %v3103 = vpop.permute.xlu0 %3102
        %3106 = vset.pattern.permute.xlu0 0
        %3107 = vperm.xlu0 %3106, %v2925
        %v3108 = vpop.permute.xlu0 %3107
        %3111 = vset.pattern.permute.xlu0 0
        %3112 = vperm.xlu0 %3111, %v2926
        %v3113 = vpop.permute.xlu0 %3112
        %3116 = vset.pattern.permute.xlu0 0
        %3117 = vperm.xlu0 %3116, %v2927
        %v3118 = vpop.permute.xlu0 %3117
        %3121 = vset.pattern.permute.xlu0 0
        %3122 = vperm.xlu0 %3121, %v2928
        %v3123 = vpop.permute.xlu0 %3122
        %3126 = vset.pattern.permute.xlu0 0
        %3127 = vperm.xlu0 %3126, %v2929
        %v3128 = vpop.permute.xlu0 %3127
        %3131 = vset.pattern.permute.xlu0 0
        %3132 = vperm.xlu0 %3131, %v2930
        %v3133 = vpop.permute.xlu0 %3132
        %3136 = vset.pattern.permute.xlu0 0
        %3137 = vperm.xlu0 %3136, %v2931
        %v3138 = vpop.permute.xlu0 %3137
        %3141 = vset.pattern.permute.xlu0 0
        %3142 = vperm.xlu0 %3141, %v2932
        %v3143 = vpop.permute.xlu0 %3142
        %3146 = vset.pattern.permute.xlu0 0
        %3147 = vperm.xlu0 %3146, %v2933
        %v3148 = vpop.permute.xlu0 %3147
        %3151 = vset.pattern.permute.xlu0 0
        %3152 = vperm.xlu0 %3151, %v2934
        %v3153 = vpop.permute.xlu0 %3152
        %3156 = vset.pattern.permute.xlu0 0
        %3157 = vperm.xlu0 %3156, %v2935
        %v3158 = vpop.permute.xlu0 %3157
        %3161 = vset.pattern.permute.xlu0 0
        %3162 = vperm.xlu0 %3161, %v2936
        %v3163 = vpop.permute.xlu0 %3162
        %3166 = vset.pattern.permute.xlu0 0
        %3167 = vperm.xlu0 %3166, %v2937
        %v3168 = vpop.permute.xlu0 %3167
        %3171 = vset.pattern.permute.xlu0 0
        %3172 = vperm.xlu0 %3171, %v2938
        %v3173 = vpop.permute.xlu0 %3172
        %3176 = vset.pattern.permute.xlu0 0
        %3177 = vperm.xlu0 %3176, %v2939
        %v3178 = vpop.permute.xlu0 %3177
        %3181 = vset.pattern.permute.xlu0 0
        %3182 = vperm.xlu0 %3181, %v2940
        %v3183 = vpop.permute.xlu0 %3182
        %3186 = vset.pattern.permute.xlu0 0
        %3187 = vperm.xlu0 %3186, %v2941
        %v3188 = vpop.permute.xlu0 %3187
        %3191 = vset.pattern.permute.xlu0 0
        %3192 = vperm.xlu0 %3191, %v2942
        %v3193 = vpop.permute.xlu0 %3192
        %3196 = vset.pattern.permute.xlu0 0
        %3197 = vperm.xlu0 %3196, %v2943
        %v3198 = vpop.permute.xlu0 %3197
        %3201 = vset.pattern.permute.xlu0 0
        %3202 = vperm.xlu0 %3201, %v2944
        %v3203 = vpop.permute.xlu0 %3202
        %3206 = vset.pattern.permute.xlu0 0
        %3207 = vperm.xlu0 %3206, %v2945
        %v3208 = vpop.permute.xlu0 %3207
        %3211 = vset.pattern.permute.xlu0 0
        %3212 = vperm.xlu0 %3211, %v2946
        %v3213 = vpop.permute.xlu0 %3212
        %3216 = vset.pattern.permute.xlu0 0
        %3217 = vperm.xlu0 %3216, %v2947
        %v3218 = vpop.permute.xlu0 %3217
        %3221 = vset.pattern.permute.xlu0 0
        %3222 = vperm.xlu0 %3221, %v2948
        %v3223 = vpop.permute.xlu0 %3222
        %3226 = vset.pattern.permute.xlu0 0
        %3227 = vperm.xlu0 %3226, %v2949
        %v3228 = vpop.permute.xlu0 %3227
        %3231 = vset.pattern.permute.xlu0 0
        %3232 = vperm.xlu0 %3231, %v2950
        %v3233 = vpop.permute.xlu0 %3232
        %3236 = vset.pattern.permute.xlu0 0
        %3237 = vperm.xlu0 %3236, %v2951
        %v3238 = vpop.permute.xlu0 %3237
        %3241 = vset.pattern.permute.xlu0 0
        %3242 = vperm.xlu0 %3241, %v2952
        %v3243 = vpop.permute.xlu0 %3242
        %3246 = vset.pattern.permute.xlu0 0
        %3247 = vperm.xlu0 %3246, %v2953
        %v3248 = vpop.permute.xlu0 %3247
        %3251 = vset.pattern.permute.xlu0 0
        %3252 = vperm.xlu0 %3251, %v2954
        %v3253 = vpop.permute.xlu0 %3252
        %3256 = vset.pattern.permute.xlu0 0
        %3257 = vperm.xlu0 %3256, %v2955
        %v3258 = vpop.permute.xlu0 %3257
        %3261 = vset.pattern.permute.xlu0 0
        %3262 = vperm.xlu0 %3261, %v2956
        %v3263 = vpop.permute.xlu0 %3262
        %3266 = vset.pattern.permute.xlu0 0
        %3267 = vperm.xlu0 %3266, %v2957
        %v3268 = vpop.permute.xlu0 %3267
        %3271 = vset.pattern.permute.xlu0 0
        %3272 = vperm.xlu0 %3271, %v2958
        %v3273 = vpop.permute.xlu0 %3272
        %3276 = vset.pattern.permute.xlu0 0
        %3277 = vperm.xlu0 %3276, %v2959
        %v3278 = vpop.permute.xlu0 %3277
        %v3280 = vmul.f32 %v839, %v2963
        %v3281 = vmul.f32 %v841, %v2963
        %v3282 = vmul.f32 %v1288, %v2963
        %v3283 = vmul.f32 %v1290, %v2963
        %v3284 = vmul.f32 %v845, %v2968
        %v3285 = vmul.f32 %v847, %v2968
        %v3286 = vmul.f32 %v1294, %v2968
        %v3287 = vmul.f32 %v1296, %v2968
        %v3288 = vmul.f32 %v851, %v2973
        %v3289 = vmul.f32 %v853, %v2973
        %v3290 = vmul.f32 %v1300, %v2973
        %v3291 = vmul.f32 %v1302, %v2973
        %v3292 = vmul.f32 %v857, %v2978
        %v3293 = vmul.f32 %v859, %v2978
        %v3294 = vmul.f32 %v1306, %v2978
        %v3295 = vmul.f32 %v1308, %v2978
        %v3296 = vmul.f32 %v863, %v2983
        %v3297 = vmul.f32 %v865, %v2983
        %v3298 = vmul.f32 %v1312, %v2983
        %v3299 = vmul.f32 %v1314, %v2983
        %v3300 = vmul.f32 %v869, %v2988
        %v3301 = vmul.f32 %v871, %v2988
        %v3302 = vmul.f32 %v1318, %v2988
        %v3303 = vmul.f32 %v1320, %v2988
        %v3304 = vmul.f32 %v875, %v2993
        %v3305 = vmul.f32 %v877, %v2993
        %v3306 = vmul.f32 %v1324, %v2993
        %v3307 = vmul.f32 %v1326, %v2993
        %v3308 = vmul.f32 %v881, %v2998
        %v3309 = vmul.f32 %v883, %v2998
        %v3310 = vmul.f32 %v1330, %v2998
        %v3311 = vmul.f32 %v1332, %v2998
        %v3312 = vmul.f32 %v887, %v3003
        %v3313 = vmul.f32 %v889, %v3003
        %v3314 = vmul.f32 %v1336, %v3003
        %v3315 = vmul.f32 %v1338, %v3003
        %v3316 = vmul.f32 %v893, %v3008
        %v3317 = vmul.f32 %v895, %v3008
        %v3318 = vmul.f32 %v1342, %v3008
        %v3319 = vmul.f32 %v1344, %v3008
        %v3320 = vmul.f32 %v899, %v3013
        %v3321 = vmul.f32 %v901, %v3013
        %v3322 = vmul.f32 %v1348, %v3013
        %v3323 = vmul.f32 %v1350, %v3013
        %v3324 = vmul.f32 %v905, %v3018
        %v3325 = vmul.f32 %v907, %v3018
        %v3326 = vmul.f32 %v1354, %v3018
        %v3327 = vmul.f32 %v1356, %v3018
        %v3328 = vmul.f32 %v911, %v3023
        %v3329 = vmul.f32 %v913, %v3023
        %v3330 = vmul.f32 %v1360, %v3023
        %v3331 = vmul.f32 %v1362, %v3023
        %v3332 = vmul.f32 %v917, %v3028
        %v3333 = vmul.f32 %v919, %v3028
        %v3334 = vmul.f32 %v1366, %v3028
        %v3335 = vmul.f32 %v1368, %v3028
        %v3336 = vmul.f32 %v923, %v3033
        %v3337 = vmul.f32 %v925, %v3033
        %v3338 = vmul.f32 %v1372, %v3033
        %v3339 = vmul.f32 %v1374, %v3033
        %v3340 = vmul.f32 %v929, %v3038
        %v3341 = vmul.f32 %v931, %v3038
        %v3342 = vmul.f32 %v1378, %v3038
        %v3343 = vmul.f32 %v1380, %v3038
        %v3344 = vmul.f32 %v935, %v3043
        %v3345 = vmul.f32 %v937, %v3043
        %v3346 = vmul.f32 %v1384, %v3043
        %v3347 = vmul.f32 %v1386, %v3043
        %v3348 = vmul.f32 %v941, %v3048
        %v3349 = vmul.f32 %v943, %v3048
        %v3350 = vmul.f32 %v1390, %v3048
        %v3351 = vmul.f32 %v1392, %v3048
        %v3352 = vmul.f32 %v947, %v3053
        %v3353 = vmul.f32 %v949, %v3053
        %v3354 = vmul.f32 %v1396, %v3053
        %v3355 = vmul.f32 %v1398, %v3053
        %v3356 = vmul.f32 %v953, %v3058
        %v3357 = vmul.f32 %v955, %v3058
        %v3358 = vmul.f32 %v1402, %v3058
        %v3359 = vmul.f32 %v1404, %v3058
        %v3360 = vmul.f32 %v959, %v3063
        %v3361 = vmul.f32 %v961, %v3063
        %v3362 = vmul.f32 %v1408, %v3063
        %v3363 = vmul.f32 %v1410, %v3063
        %v3364 = vmul.f32 %v965, %v3068
        %v3365 = vmul.f32 %v967, %v3068
        %v3366 = vmul.f32 %v1414, %v3068
        %v3367 = vmul.f32 %v1416, %v3068
        %v3368 = vmul.f32 %v971, %v3073
        %v3369 = vmul.f32 %v973, %v3073
        %v3370 = vmul.f32 %v1420, %v3073
        %v3371 = vmul.f32 %v1422, %v3073
        %v3372 = vmul.f32 %v977, %v3078
        %v3373 = vmul.f32 %v979, %v3078
        %v3374 = vmul.f32 %v1426, %v3078
        %v3375 = vmul.f32 %v1428, %v3078
        %v3376 = vmul.f32 %v983, %v3083
        %v3377 = vmul.f32 %v985, %v3083
        %v3378 = vmul.f32 %v1432, %v3083
        %v3379 = vmul.f32 %v1434, %v3083
        %v3380 = vmul.f32 %v989, %v3088
        %v3381 = vmul.f32 %v991, %v3088
        %v3382 = vmul.f32 %v1438, %v3088
        %v3383 = vmul.f32 %v1440, %v3088
        %v3384 = vmul.f32 %v995, %v3093
        %v3385 = vmul.f32 %v997, %v3093
        %v3386 = vmul.f32 %v1444, %v3093
        %v3387 = vmul.f32 %v1446, %v3093
        %v3388 = vmul.f32 %v1001, %v3098
        %v3389 = vmul.f32 %v1003, %v3098
        %v3390 = vmul.f32 %v1450, %v3098
        %v3391 = vmul.f32 %v1452, %v3098
        %v3392 = vmul.f32 %v1007, %v3103
        %v3393 = vmul.f32 %v1009, %v3103
        %v3394 = vmul.f32 %v1456, %v3103
        %v3395 = vmul.f32 %v1458, %v3103
        %v3396 = vmul.f32 %v1013, %v3108
        %v3397 = vmul.f32 %v1015, %v3108
        %v3398 = vmul.f32 %v1462, %v3108
        %v3399 = vmul.f32 %v1464, %v3108
        %v3400 = vmul.f32 %v1019, %v3113
        %v3401 = vmul.f32 %v1021, %v3113
        %v3402 = vmul.f32 %v1468, %v3113
        %v3403 = vmul.f32 %v1470, %v3113
        %v3404 = vmul.f32 %v1025, %v3118
        %v3405 = vmul.f32 %v1027, %v3118
        %v3406 = vmul.f32 %v1474, %v3118
        %v3407 = vmul.f32 %v1476, %v3118
        %v3408 = vmul.f32 %v1031, %v3123
        %v3409 = vmul.f32 %v1033, %v3123
        %v3410 = vmul.f32 %v1480, %v3123
        %v3411 = vmul.f32 %v1482, %v3123
        %v3412 = vmul.f32 %v1037, %v3128
        %v3413 = vmul.f32 %v1039, %v3128
        %v3414 = vmul.f32 %v1486, %v3128
        %v3415 = vmul.f32 %v1488, %v3128
        %v3416 = vmul.f32 %v1043, %v3133
        %v3417 = vmul.f32 %v1045, %v3133
        %v3418 = vmul.f32 %v1492, %v3133
        %v3419 = vmul.f32 %v1494, %v3133
        %v3420 = vmul.f32 %v1049, %v3138
        %v3421 = vmul.f32 %v1051, %v3138
        %v3422 = vmul.f32 %v1498, %v3138
        %v3423 = vmul.f32 %v1500, %v3138
        %v3424 = vmul.f32 %v1055, %v3143
        %v3425 = vmul.f32 %v1057, %v3143
        %v3426 = vmul.f32 %v1504, %v3143
        %v3427 = vmul.f32 %v1506, %v3143
        %v3428 = vmul.f32 %v1061, %v3148
        %v3429 = vmul.f32 %v1063, %v3148
        %v3430 = vmul.f32 %v1510, %v3148
        %v3431 = vmul.f32 %v1512, %v3148
        %v3432 = vmul.f32 %v1067, %v3153
        %v3433 = vmul.f32 %v1069, %v3153
        %v3434 = vmul.f32 %v1516, %v3153
        %v3435 = vmul.f32 %v1518, %v3153
        %v3436 = vmul.f32 %v1073, %v3158
        %v3437 = vmul.f32 %v1075, %v3158
        %v3438 = vmul.f32 %v1522, %v3158
        %v3439 = vmul.f32 %v1524, %v3158
        %v3440 = vmul.f32 %v1079, %v3163
        %v3441 = vmul.f32 %v1081, %v3163
        %v3442 = vmul.f32 %v1528, %v3163
        %v3443 = vmul.f32 %v1530, %v3163
        %v3444 = vmul.f32 %v1085, %v3168
        %v3445 = vmul.f32 %v1087, %v3168
        %v3446 = vmul.f32 %v1534, %v3168
        %v3447 = vmul.f32 %v1536, %v3168
        %v3448 = vmul.f32 %v1091, %v3173
        %v3449 = vmul.f32 %v1093, %v3173
        %v3450 = vmul.f32 %v1540, %v3173
        %v3451 = vmul.f32 %v1542, %v3173
        %v3452 = vmul.f32 %v1097, %v3178
        %v3453 = vmul.f32 %v1099, %v3178
        %v3454 = vmul.f32 %v1546, %v3178
        %v3455 = vmul.f32 %v1548, %v3178
        %v3456 = vmul.f32 %v1103, %v3183
        %v3457 = vmul.f32 %v1105, %v3183
        %v3458 = vmul.f32 %v1552, %v3183
        %v3459 = vmul.f32 %v1554, %v3183
        %v3460 = vmul.f32 %v1109, %v3188
        %v3461 = vmul.f32 %v1111, %v3188
        %v3462 = vmul.f32 %v1558, %v3188
        %v3463 = vmul.f32 %v1560, %v3188
        %v3464 = vmul.f32 %v1115, %v3193
        %v3465 = vmul.f32 %v1117, %v3193
        %v3466 = vmul.f32 %v1564, %v3193
        %v3467 = vmul.f32 %v1566, %v3193
        %v3468 = vmul.f32 %v1121, %v3198
        %v3469 = vmul.f32 %v1123, %v3198
        %v3470 = vmul.f32 %v1570, %v3198
        %v3471 = vmul.f32 %v1572, %v3198
        %v3472 = vmul.f32 %v1127, %v3203
        %v3473 = vmul.f32 %v1129, %v3203
        %v3474 = vmul.f32 %v1576, %v3203
        %v3475 = vmul.f32 %v1578, %v3203
        %v3476 = vmul.f32 %v1133, %v3208
        %v3477 = vmul.f32 %v1135, %v3208
        %v3478 = vmul.f32 %v1582, %v3208
        %v3479 = vmul.f32 %v1584, %v3208
        %v3480 = vmul.f32 %v1139, %v3213
        %v3481 = vmul.f32 %v1141, %v3213
        %v3482 = vmul.f32 %v1588, %v3213
        %v3483 = vmul.f32 %v1590, %v3213
        %v3484 = vmul.f32 %v1145, %v3218
        %v3485 = vmul.f32 %v1147, %v3218
        %v3486 = vmul.f32 %v1594, %v3218
        %v3487 = vmul.f32 %v1596, %v3218
        %v3488 = vmul.f32 %v1151, %v3223
        %v3489 = vmul.f32 %v1153, %v3223
        %v3490 = vmul.f32 %v1600, %v3223
        %v3491 = vmul.f32 %v1602, %v3223
        %v3492 = vmul.f32 %v1157, %v3228
        %v3493 = vmul.f32 %v1159, %v3228
        %v3494 = vmul.f32 %v1606, %v3228
        %v3495 = vmul.f32 %v1608, %v3228
        %v3496 = vmul.f32 %v1163, %v3233
        %v3497 = vmul.f32 %v1165, %v3233
        %v3498 = vmul.f32 %v1612, %v3233
        %v3499 = vmul.f32 %v1614, %v3233
        %v3500 = vmul.f32 %v1169, %v3238
        %v3501 = vmul.f32 %v1171, %v3238
        %v3502 = vmul.f32 %v1618, %v3238
        %v3503 = vmul.f32 %v1620, %v3238
        %v3504 = vmul.f32 %v1175, %v3243
        %v3505 = vmul.f32 %v1177, %v3243
        %v3506 = vmul.f32 %v1624, %v3243
        %v3507 = vmul.f32 %v1626, %v3243
        %v3508 = vmul.f32 %v1181, %v3248
        %v3509 = vmul.f32 %v1183, %v3248
        %v3510 = vmul.f32 %v1630, %v3248
        %v3511 = vmul.f32 %v1632, %v3248
        %v3512 = vmul.f32 %v1187, %v3253
        %v3513 = vmul.f32 %v1189, %v3253
        %v3514 = vmul.f32 %v1636, %v3253
        %v3515 = vmul.f32 %v1638, %v3253
        %v3516 = vmul.f32 %v1193, %v3258
        %v3517 = vmul.f32 %v1195, %v3258
        %v3518 = vmul.f32 %v1642, %v3258
        %v3519 = vmul.f32 %v1644, %v3258
        %v3520 = vmul.f32 %v1199, %v3263
        %v3521 = vmul.f32 %v1201, %v3263
        %v3522 = vmul.f32 %v1648, %v3263
        %v3523 = vmul.f32 %v1650, %v3263
        %v3524 = vmul.f32 %v1205, %v3268
        %v3525 = vmul.f32 %v1207, %v3268
        %v3526 = vmul.f32 %v1654, %v3268
        %v3527 = vmul.f32 %v1656, %v3268
        %v3528 = vmul.f32 %v1211, %v3273
        %v3529 = vmul.f32 %v1213, %v3273
        %v3530 = vmul.f32 %v1660, %v3273
        %v3531 = vmul.f32 %v1662, %v3273
        %v3532 = vmul.f32 %v1217, %v3278
        %v3533 = vmul.f32 %v1219, %v3278
        %v3534 = vmul.f32 %v1666, %v3278
        %v3535 = vmul.f32 %v1668, %v3278
        %v3536 = vld [vmem:[%s437] sm:$0xff]
        %v3537 = vld [vmem:[%s437 + $0x8] sm:$0xff]
        %v3538 = vld [vmem:[%s437 + $0x10] sm:$0xff]
        %v3539 = vld [vmem:[%s437 + $0x18] sm:$0xff]
        %v3540 = vld [vmem:[%s437 + $0x20] sm:$0xff]
        %v3541 = vld [vmem:[%s437 + $0x28] sm:$0xff]
        %v3542 = vld [vmem:[%s437 + $0x30] sm:$0xff]
        %v3543 = vld [vmem:[%s437 + $0x38] sm:$0xff]
        %v3544 = vld [vmem:[%s437 + $0x40] sm:$0xff]
        %v3545 = vld [vmem:[%s437 + $0x48] sm:$0xff]
        %v3546 = vld [vmem:[%s437 + $0x50] sm:$0xff]
        %v3547 = vld [vmem:[%s437 + $0x58] sm:$0xff]
        %v3548 = vld [vmem:[%s437 + $0x60] sm:$0xff]
        %v3549 = vld [vmem:[%s437 + $0x68] sm:$0xff]
        %v3550 = vld [vmem:[%s437 + $0x70] sm:$0xff]
        %v3551 = vld [vmem:[%s437 + $0x78] sm:$0xff]
        %v3552 = vld [vmem:[%s437 + $0x80] sm:$0xff]
        %v3553 = vld [vmem:[%s437 + $0x88] sm:$0xff]
        %v3554 = vld [vmem:[%s437 + $0x90] sm:$0xff]
        %v3555 = vld [vmem:[%s437 + $0x98] sm:$0xff]
        %v3556 = vld [vmem:[%s437 + $0xa0] sm:$0xff]
        %v3557 = vld [vmem:[%s437 + $0xa8] sm:$0xff]
        %v3558 = vld [vmem:[%s437 + $0xb0] sm:$0xff]
        %v3559 = vld [vmem:[%s437 + $0xb8] sm:$0xff]
        %v3560 = vld [vmem:[%s437 + $0xc0] sm:$0xff]
        %v3561 = vld [vmem:[%s437 + $0xc8] sm:$0xff]
        %v3562 = vld [vmem:[%s437 + $0xd0] sm:$0xff]
        %v3563 = vld [vmem:[%s437 + $0xd8] sm:$0xff]
        %v3564 = vld [vmem:[%s437 + $0xe0] sm:$0xff]
        %v3565 = vld [vmem:[%s437 + $0xe8] sm:$0xff]
        %v3566 = vld [vmem:[%s437 + $0xf0] sm:$0xff]
        %v3567 = vld [vmem:[%s437 + $0xf8] sm:$0xff]
        %v3568 = vld [vmem:[%s437 + $0x100] sm:$0xff]
        %v3569 = vld [vmem:[%s437 + $0x108] sm:$0xff]
        %v3570 = vld [vmem:[%s437 + $0x110] sm:$0xff]
        %v3571 = vld [vmem:[%s437 + $0x118] sm:$0xff]
        %v3572 = vld [vmem:[%s437 + $0x120] sm:$0xff]
        %v3573 = vld [vmem:[%s437 + $0x128] sm:$0xff]
        %v3574 = vld [vmem:[%s437 + $0x130] sm:$0xff]
        %v3575 = vld [vmem:[%s437 + $0x138] sm:$0xff]
        %v3576 = vld [vmem:[%s437 + $0x140] sm:$0xff]
        %v3577 = vld [vmem:[%s437 + $0x148] sm:$0xff]
        %v3578 = vld [vmem:[%s437 + $0x150] sm:$0xff]
        %v3579 = vld [vmem:[%s437 + $0x158] sm:$0xff]
        %v3580 = vld [vmem:[%s437 + $0x160] sm:$0xff]
        %v3581 = vld [vmem:[%s437 + $0x168] sm:$0xff]
        %v3582 = vld [vmem:[%s437 + $0x170] sm:$0xff]
        %v3583 = vld [vmem:[%s437 + $0x178] sm:$0xff]
        %v3584 = vld [vmem:[%s437 + $0x180] sm:$0xff]
        %v3585 = vld [vmem:[%s437 + $0x188] sm:$0xff]
        %v3586 = vld [vmem:[%s437 + $0x190] sm:$0xff]
        %v3587 = vld [vmem:[%s437 + $0x198] sm:$0xff]
        %v3588 = vld [vmem:[%s437 + $0x1a0] sm:$0xff]
        %v3589 = vld [vmem:[%s437 + $0x1a8] sm:$0xff]
        %v3590 = vld [vmem:[%s437 + $0x1b0] sm:$0xff]
        %v3591 = vld [vmem:[%s437 + $0x1b8] sm:$0xff]
        %v3592 = vld [vmem:[%s437 + $0x1c0] sm:$0xff]
        %v3593 = vld [vmem:[%s437 + $0x1c8] sm:$0xff]
        %v3594 = vld [vmem:[%s437 + $0x1d0] sm:$0xff]
        %v3595 = vld [vmem:[%s437 + $0x1d8] sm:$0xff]
        %v3596 = vld [vmem:[%s437 + $0x1e0] sm:$0xff]
        %v3597 = vld [vmem:[%s437 + $0x1e8] sm:$0xff]
        %v3598 = vld [vmem:[%s437 + $0x1f0] sm:$0xff]
        %v3599 = vld [vmem:[%s437 + $0x1f8] sm:$0xff]
        %3601 = vset.pattern.permute.xlu0 0
        %3602 = vperm.xlu0 %3601, %v3536
        %v3603 = vpop.permute.xlu0 %3602
        %3606 = vset.pattern.permute.xlu0 0
        %3607 = vperm.xlu0 %3606, %v3537
        %v3608 = vpop.permute.xlu0 %3607
        %3611 = vset.pattern.permute.xlu0 0
        %3612 = vperm.xlu0 %3611, %v3538
        %v3613 = vpop.permute.xlu0 %3612
        %3616 = vset.pattern.permute.xlu0 0
        %3617 = vperm.xlu0 %3616, %v3539
        %v3618 = vpop.permute.xlu0 %3617
        %3621 = vset.pattern.permute.xlu0 0
        %3622 = vperm.xlu0 %3621, %v3540
        %v3623 = vpop.permute.xlu0 %3622
        %3626 = vset.pattern.permute.xlu0 0
        %3627 = vperm.xlu0 %3626, %v3541
        %v3628 = vpop.permute.xlu0 %3627
        %3631 = vset.pattern.permute.xlu0 0
        %3632 = vperm.xlu0 %3631, %v3542
        %v3633 = vpop.permute.xlu0 %3632
        %3636 = vset.pattern.permute.xlu0 0
        %3637 = vperm.xlu0 %3636, %v3543
        %v3638 = vpop.permute.xlu0 %3637
        %3641 = vset.pattern.permute.xlu0 0
        %3642 = vperm.xlu0 %3641, %v3544
        %v3643 = vpop.permute.xlu0 %3642
        %3646 = vset.pattern.permute.xlu0 0
        %3647 = vperm.xlu0 %3646, %v3545
        %v3648 = vpop.permute.xlu0 %3647
        %3651 = vset.pattern.permute.xlu0 0
        %3652 = vperm.xlu0 %3651, %v3546
        %v3653 = vpop.permute.xlu0 %3652
        %3656 = vset.pattern.permute.xlu0 0
        %3657 = vperm.xlu0 %3656, %v3547
        %v3658 = vpop.permute.xlu0 %3657
        %3661 = vset.pattern.permute.xlu0 0
        %3662 = vperm.xlu0 %3661, %v3548
        %v3663 = vpop.permute.xlu0 %3662
        %3666 = vset.pattern.permute.xlu0 0
        %3667 = vperm.xlu0 %3666, %v3549
        %v3668 = vpop.permute.xlu0 %3667
        %3671 = vset.pattern.permute.xlu0 0
        %3672 = vperm.xlu0 %3671, %v3550
        %v3673 = vpop.permute.xlu0 %3672
        %3676 = vset.pattern.permute.xlu0 0
        %3677 = vperm.xlu0 %3676, %v3551
        %v3678 = vpop.permute.xlu0 %3677
        %3681 = vset.pattern.permute.xlu0 0
        %3682 = vperm.xlu0 %3681, %v3552
        %v3683 = vpop.permute.xlu0 %3682
        %3686 = vset.pattern.permute.xlu0 0
        %3687 = vperm.xlu0 %3686, %v3553
        %v3688 = vpop.permute.xlu0 %3687
        %3691 = vset.pattern.permute.xlu0 0
        %3692 = vperm.xlu0 %3691, %v3554
        %v3693 = vpop.permute.xlu0 %3692
        %3696 = vset.pattern.permute.xlu0 0
        %3697 = vperm.xlu0 %3696, %v3555
        %v3698 = vpop.permute.xlu0 %3697
        %3701 = vset.pattern.permute.xlu0 0
        %3702 = vperm.xlu0 %3701, %v3556
        %v3703 = vpop.permute.xlu0 %3702
        %3706 = vset.pattern.permute.xlu0 0
        %3707 = vperm.xlu0 %3706, %v3557
        %v3708 = vpop.permute.xlu0 %3707
        %3711 = vset.pattern.permute.xlu0 0
        %3712 = vperm.xlu0 %3711, %v3558
        %v3713 = vpop.permute.xlu0 %3712
        %3716 = vset.pattern.permute.xlu0 0
        %3717 = vperm.xlu0 %3716, %v3559
        %v3718 = vpop.permute.xlu0 %3717
        %3721 = vset.pattern.permute.xlu0 0
        %3722 = vperm.xlu0 %3721, %v3560
        %v3723 = vpop.permute.xlu0 %3722
        %3726 = vset.pattern.permute.xlu0 0
        %3727 = vperm.xlu0 %3726, %v3561
        %v3728 = vpop.permute.xlu0 %3727
        %3731 = vset.pattern.permute.xlu0 0
        %3732 = vperm.xlu0 %3731, %v3562
        %v3733 = vpop.permute.xlu0 %3732
        %3736 = vset.pattern.permute.xlu0 0
        %3737 = vperm.xlu0 %3736, %v3563
        %v3738 = vpop.permute.xlu0 %3737
        %3741 = vset.pattern.permute.xlu0 0
        %3742 = vperm.xlu0 %3741, %v3564
        %v3743 = vpop.permute.xlu0 %3742
        %3746 = vset.pattern.permute.xlu0 0
        %3747 = vperm.xlu0 %3746, %v3565
        %v3748 = vpop.permute.xlu0 %3747
        %3751 = vset.pattern.permute.xlu0 0
        %3752 = vperm.xlu0 %3751, %v3566
        %v3753 = vpop.permute.xlu0 %3752
        %3756 = vset.pattern.permute.xlu0 0
        %3757 = vperm.xlu0 %3756, %v3567
        %v3758 = vpop.permute.xlu0 %3757
        %3761 = vset.pattern.permute.xlu0 0
        %3762 = vperm.xlu0 %3761, %v3568
        %v3763 = vpop.permute.xlu0 %3762
        %3766 = vset.pattern.permute.xlu0 0
        %3767 = vperm.xlu0 %3766, %v3569
        %v3768 = vpop.permute.xlu0 %3767
        %3771 = vset.pattern.permute.xlu0 0
        %3772 = vperm.xlu0 %3771, %v3570
        %v3773 = vpop.permute.xlu0 %3772
        %3776 = vset.pattern.permute.xlu0 0
        %3777 = vperm.xlu0 %3776, %v3571
        %v3778 = vpop.permute.xlu0 %3777
        %3781 = vset.pattern.permute.xlu0 0
        %3782 = vperm.xlu0 %3781, %v3572
        %v3783 = vpop.permute.xlu0 %3782
        %3786 = vset.pattern.permute.xlu0 0
        %3787 = vperm.xlu0 %3786, %v3573
        %v3788 = vpop.permute.xlu0 %3787
        %3791 = vset.pattern.permute.xlu0 0
        %3792 = vperm.xlu0 %3791, %v3574
        %v3793 = vpop.permute.xlu0 %3792
        %3796 = vset.pattern.permute.xlu0 0
        %3797 = vperm.xlu0 %3796, %v3575
        %v3798 = vpop.permute.xlu0 %3797
        %3801 = vset.pattern.permute.xlu0 0
        %3802 = vperm.xlu0 %3801, %v3576
        %v3803 = vpop.permute.xlu0 %3802
        %3806 = vset.pattern.permute.xlu0 0
        %3807 = vperm.xlu0 %3806, %v3577
        %v3808 = vpop.permute.xlu0 %3807
        %3811 = vset.pattern.permute.xlu0 0
        %3812 = vperm.xlu0 %3811, %v3578
        %v3813 = vpop.permute.xlu0 %3812
        %3816 = vset.pattern.permute.xlu0 0
        %3817 = vperm.xlu0 %3816, %v3579
        %v3818 = vpop.permute.xlu0 %3817
        %3821 = vset.pattern.permute.xlu0 0
        %3822 = vperm.xlu0 %3821, %v3580
        %v3823 = vpop.permute.xlu0 %3822
        %3826 = vset.pattern.permute.xlu0 0
        %3827 = vperm.xlu0 %3826, %v3581
        %v3828 = vpop.permute.xlu0 %3827
        %3831 = vset.pattern.permute.xlu0 0
        %3832 = vperm.xlu0 %3831, %v3582
        %v3833 = vpop.permute.xlu0 %3832
        %3836 = vset.pattern.permute.xlu0 0
        %3837 = vperm.xlu0 %3836, %v3583
        %v3838 = vpop.permute.xlu0 %3837
        %3841 = vset.pattern.permute.xlu0 0
        %3842 = vperm.xlu0 %3841, %v3584
        %v3843 = vpop.permute.xlu0 %3842
        %3846 = vset.pattern.permute.xlu0 0
        %3847 = vperm.xlu0 %3846, %v3585
        %v3848 = vpop.permute.xlu0 %3847
        %3851 = vset.pattern.permute.xlu0 0
        %3852 = vperm.xlu0 %3851, %v3586
        %v3853 = vpop.permute.xlu0 %3852
        %3856 = vset.pattern.permute.xlu0 0
        %3857 = vperm.xlu0 %3856, %v3587
        %v3858 = vpop.permute.xlu0 %3857
        %3861 = vset.pattern.permute.xlu0 0
        %3862 = vperm.xlu0 %3861, %v3588
        %v3863 = vpop.permute.xlu0 %3862
        %3866 = vset.pattern.permute.xlu0 0
        %3867 = vperm.xlu0 %3866, %v3589
        %v3868 = vpop.permute.xlu0 %3867
        %3871 = vset.pattern.permute.xlu0 0
        %3872 = vperm.xlu0 %3871, %v3590
        %v3873 = vpop.permute.xlu0 %3872
        %3876 = vset.pattern.permute.xlu0 0
        %3877 = vperm.xlu0 %3876, %v3591
        %v3878 = vpop.permute.xlu0 %3877
        %3881 = vset.pattern.permute.xlu0 0
        %3882 = vperm.xlu0 %3881, %v3592
        %v3883 = vpop.permute.xlu0 %3882
        %3886 = vset.pattern.permute.xlu0 0
        %3887 = vperm.xlu0 %3886, %v3593
        %v3888 = vpop.permute.xlu0 %3887
        %3891 = vset.pattern.permute.xlu0 0
        %3892 = vperm.xlu0 %3891, %v3594
        %v3893 = vpop.permute.xlu0 %3892
        %3896 = vset.pattern.permute.xlu0 0
        %3897 = vperm.xlu0 %3896, %v3595
        %v3898 = vpop.permute.xlu0 %3897
        %3901 = vset.pattern.permute.xlu0 0
        %3902 = vperm.xlu0 %3901, %v3596
        %v3903 = vpop.permute.xlu0 %3902
        %3906 = vset.pattern.permute.xlu0 0
        %3907 = vperm.xlu0 %3906, %v3597
        %v3908 = vpop.permute.xlu0 %3907
        %3911 = vset.pattern.permute.xlu0 0
        %3912 = vperm.xlu0 %3911, %v3598
        %v3913 = vpop.permute.xlu0 %3912
        %3916 = vset.pattern.permute.xlu0 0
        %3917 = vperm.xlu0 %3916, %v3599
        %v3918 = vpop.permute.xlu0 %3917
        %v3920 = vmul.f32 %v2065, %v3603
        %v3921 = vmul.f32 %v2067, %v3603
        %v3922 = vmul.f32 %v2514, %v3603
        %v3923 = vmul.f32 %v2516, %v3603
        %v3924 = vmul.f32 %v2071, %v3608
        %v3925 = vmul.f32 %v2073, %v3608
        %v3926 = vmul.f32 %v2520, %v3608
        %v3927 = vmul.f32 %v2522, %v3608
        %v3928 = vmul.f32 %v2077, %v3613
        %v3929 = vmul.f32 %v2079, %v3613
        %v3930 = vmul.f32 %v2526, %v3613
        %v3931 = vmul.f32 %v2528, %v3613
        %v3932 = vmul.f32 %v2083, %v3618
        %v3933 = vmul.f32 %v2085, %v3618
        %v3934 = vmul.f32 %v2532, %v3618
        %v3935 = vmul.f32 %v2534, %v3618
        %v3936 = vmul.f32 %v2089, %v3623
        %v3937 = vmul.f32 %v2091, %v3623
        %v3938 = vmul.f32 %v2538, %v3623
        %v3939 = vmul.f32 %v2540, %v3623
        %v3940 = vmul.f32 %v2095, %v3628
        %v3941 = vmul.f32 %v2097, %v3628
        %v3942 = vmul.f32 %v2544, %v3628
        %v3943 = vmul.f32 %v2546, %v3628
        %v3944 = vmul.f32 %v2101, %v3633
        %v3945 = vmul.f32 %v2103, %v3633
        %v3946 = vmul.f32 %v2550, %v3633
        %v3947 = vmul.f32 %v2552, %v3633
        %v3948 = vmul.f32 %v2107, %v3638
        %v3949 = vmul.f32 %v2109, %v3638
        %v3950 = vmul.f32 %v2556, %v3638
        %v3951 = vmul.f32 %v2558, %v3638
        %v3952 = vmul.f32 %v2113, %v3643
        %v3953 = vmul.f32 %v2115, %v3643
        %v3954 = vmul.f32 %v2562, %v3643
        %v3955 = vmul.f32 %v2564, %v3643
        %v3956 = vmul.f32 %v2119, %v3648
        %v3957 = vmul.f32 %v2121, %v3648
        %v3958 = vmul.f32 %v2568, %v3648
        %v3959 = vmul.f32 %v2570, %v3648
        %v3960 = vmul.f32 %v2125, %v3653
        %v3961 = vmul.f32 %v2127, %v3653
        %v3962 = vmul.f32 %v2574, %v3653
        %v3963 = vmul.f32 %v2576, %v3653
        %v3964 = vmul.f32 %v2131, %v3658
        %v3965 = vmul.f32 %v2133, %v3658
        %v3966 = vmul.f32 %v2580, %v3658
        %v3967 = vmul.f32 %v2582, %v3658
        %v3968 = vmul.f32 %v2137, %v3663
        %v3969 = vmul.f32 %v2139, %v3663
        %v3970 = vmul.f32 %v2586, %v3663
        %v3971 = vmul.f32 %v2588, %v3663
        %v3972 = vmul.f32 %v2143, %v3668
        %v3973 = vmul.f32 %v2145, %v3668
        %v3974 = vmul.f32 %v2592, %v3668
        %v3975 = vmul.f32 %v2594, %v3668
        %v3976 = vmul.f32 %v2149, %v3673
        %v3977 = vmul.f32 %v2151, %v3673
        %v3978 = vmul.f32 %v2598, %v3673
        %v3979 = vmul.f32 %v2600, %v3673
        %v3980 = vmul.f32 %v2155, %v3678
        %v3981 = vmul.f32 %v2157, %v3678
        %v3982 = vmul.f32 %v2604, %v3678
        %v3983 = vmul.f32 %v2606, %v3678
        %v3984 = vmul.f32 %v2161, %v3683
        %v3985 = vmul.f32 %v2163, %v3683
        %v3986 = vmul.f32 %v2610, %v3683
        %v3987 = vmul.f32 %v2612, %v3683
        %v3988 = vmul.f32 %v2167, %v3688
        %v3989 = vmul.f32 %v2169, %v3688
        %v3990 = vmul.f32 %v2616, %v3688
        %v3991 = vmul.f32 %v2618, %v3688
        %v3992 = vmul.f32 %v2173, %v3693
        %v3993 = vmul.f32 %v2175, %v3693
        %v3994 = vmul.f32 %v2622, %v3693
        %v3995 = vmul.f32 %v2624, %v3693
        %v3996 = vmul.f32 %v2179, %v3698
        %v3997 = vmul.f32 %v2181, %v3698
        %v3998 = vmul.f32 %v2628, %v3698
        %v3999 = vmul.f32 %v2630, %v3698
        %v4000 = vmul.f32 %v2185, %v3703
        %v4001 = vmul.f32 %v2187, %v3703
        %v4002 = vmul.f32 %v2634, %v3703
        %v4003 = vmul.f32 %v2636, %v3703
        %v4004 = vmul.f32 %v2191, %v3708
        %v4005 = vmul.f32 %v2193, %v3708
        %v4006 = vmul.f32 %v2640, %v3708
        %v4007 = vmul.f32 %v2642, %v3708
        %v4008 = vmul.f32 %v2197, %v3713
        %v4009 = vmul.f32 %v2199, %v3713
        %v4010 = vmul.f32 %v2646, %v3713
        %v4011 = vmul.f32 %v2648, %v3713
        %v4012 = vmul.f32 %v2203, %v3718
        %v4013 = vmul.f32 %v2205, %v3718
        %v4014 = vmul.f32 %v2652, %v3718
        %v4015 = vmul.f32 %v2654, %v3718
        %v4016 = vmul.f32 %v2209, %v3723
        %v4017 = vmul.f32 %v2211, %v3723
        %v4018 = vmul.f32 %v2658, %v3723
        %v4019 = vmul.f32 %v2660, %v3723
        %v4020 = vmul.f32 %v2215, %v3728
        %v4021 = vmul.f32 %v2217, %v3728
        %v4022 = vmul.f32 %v2664, %v3728
        %v4023 = vmul.f32 %v2666, %v3728
        %v4024 = vmul.f32 %v2221, %v3733
        %v4025 = vmul.f32 %v2223, %v3733
        %v4026 = vmul.f32 %v2670, %v3733
        %v4027 = vmul.f32 %v2672, %v3733
        %v4028 = vmul.f32 %v2227, %v3738
        %v4029 = vmul.f32 %v2229, %v3738
        %v4030 = vmul.f32 %v2676, %v3738
        %v4031 = vmul.f32 %v2678, %v3738
        %v4032 = vmul.f32 %v2233, %v3743
        %v4033 = vmul.f32 %v2235, %v3743
        %v4034 = vmul.f32 %v2682, %v3743
        %v4035 = vmul.f32 %v2684, %v3743
        %v4036 = vmul.f32 %v2239, %v3748
        %v4037 = vmul.f32 %v2241, %v3748
        %v4038 = vmul.f32 %v2688, %v3748
        %v4039 = vmul.f32 %v2690, %v3748
        %v4040 = vmul.f32 %v2245, %v3753
        %v4041 = vmul.f32 %v2247, %v3753
        %v4042 = vmul.f32 %v2694, %v3753
        %v4043 = vmul.f32 %v2696, %v3753
        %v4044 = vmul.f32 %v2251, %v3758
        %v4045 = vmul.f32 %v2253, %v3758
        %v4046 = vmul.f32 %v2700, %v3758
        %v4047 = vmul.f32 %v2702, %v3758
        %v4048 = vmul.f32 %v2257, %v3763
        %v4049 = vmul.f32 %v2259, %v3763
        %v4050 = vmul.f32 %v2706, %v3763
        %v4051 = vmul.f32 %v2708, %v3763
        %v4052 = vmul.f32 %v2263, %v3768
        %v4053 = vmul.f32 %v2265, %v3768
        %v4054 = vmul.f32 %v2712, %v3768
        %v4055 = vmul.f32 %v2714, %v3768
        %v4056 = vmul.f32 %v2269, %v3773
        %v4057 = vmul.f32 %v2271, %v3773
        %v4058 = vmul.f32 %v2718, %v3773
        %v4059 = vmul.f32 %v2720, %v3773
        %v4060 = vmul.f32 %v2275, %v3778
        %v4061 = vmul.f32 %v2277, %v3778
        %v4062 = vmul.f32 %v2724, %v3778
        %v4063 = vmul.f32 %v2726, %v3778
        %v4064 = vmul.f32 %v2281, %v3783
        %v4065 = vmul.f32 %v2283, %v3783
        %v4066 = vmul.f32 %v2730, %v3783
        %v4067 = vmul.f32 %v2732, %v3783
        %v4068 = vmul.f32 %v2287, %v3788
        %v4069 = vmul.f32 %v2289, %v3788
        %v4070 = vmul.f32 %v2736, %v3788
        %v4071 = vmul.f32 %v2738, %v3788
        %v4072 = vmul.f32 %v2293, %v3793
        %v4073 = vmul.f32 %v2295, %v3793
        %v4074 = vmul.f32 %v2742, %v3793
        %v4075 = vmul.f32 %v2744, %v3793
        %v4076 = vmul.f32 %v2299, %v3798
        %v4077 = vmul.f32 %v2301, %v3798
        %v4078 = vmul.f32 %v2748, %v3798
        %v4079 = vmul.f32 %v2750, %v3798
        %v4080 = vmul.f32 %v2305, %v3803
        %v4081 = vmul.f32 %v2307, %v3803
        %v4082 = vmul.f32 %v2754, %v3803
        %v4083 = vmul.f32 %v2756, %v3803
        %v4084 = vmul.f32 %v2311, %v3808
        %v4085 = vmul.f32 %v2313, %v3808
        %v4086 = vmul.f32 %v2760, %v3808
        %v4087 = vmul.f32 %v2762, %v3808
        %v4088 = vmul.f32 %v2317, %v3813
        %v4089 = vmul.f32 %v2319, %v3813
        %v4090 = vmul.f32 %v2766, %v3813
        %v4091 = vmul.f32 %v2768, %v3813
        %v4092 = vmul.f32 %v2323, %v3818
        %v4093 = vmul.f32 %v2325, %v3818
        %v4094 = vmul.f32 %v2772, %v3818
        %v4095 = vmul.f32 %v2774, %v3818
        %v4096 = vmul.f32 %v2329, %v3823
        %v4097 = vmul.f32 %v2331, %v3823
        %v4098 = vmul.f32 %v2778, %v3823
        %v4099 = vmul.f32 %v2780, %v3823
        %v4100 = vmul.f32 %v2335, %v3828
        %v4101 = vmul.f32 %v2337, %v3828
        %v4102 = vmul.f32 %v2784, %v3828
        %v4103 = vmul.f32 %v2786, %v3828
        %v4104 = vmul.f32 %v2341, %v3833
        %v4105 = vmul.f32 %v2343, %v3833
        %v4106 = vmul.f32 %v2790, %v3833
        %v4107 = vmul.f32 %v2792, %v3833
        %v4108 = vmul.f32 %v2347, %v3838
        %v4109 = vmul.f32 %v2349, %v3838
        %v4110 = vmul.f32 %v2796, %v3838
        %v4111 = vmul.f32 %v2798, %v3838
        %v4112 = vmul.f32 %v2353, %v3843
        %v4113 = vmul.f32 %v2355, %v3843
        %v4114 = vmul.f32 %v2802, %v3843
        %v4115 = vmul.f32 %v2804, %v3843
        %v4116 = vmul.f32 %v2359, %v3848
        %v4117 = vmul.f32 %v2361, %v3848
        %v4118 = vmul.f32 %v2808, %v3848
        %v4119 = vmul.f32 %v2810, %v3848
        %v4120 = vmul.f32 %v2365, %v3853
        %v4121 = vmul.f32 %v2367, %v3853
        %v4122 = vmul.f32 %v2814, %v3853
        %v4123 = vmul.f32 %v2816, %v3853
        %v4124 = vmul.f32 %v2371, %v3858
        %v4125 = vmul.f32 %v2373, %v3858
        %v4126 = vmul.f32 %v2820, %v3858
        %v4127 = vmul.f32 %v2822, %v3858
        %v4128 = vmul.f32 %v2377, %v3863
        %v4129 = vmul.f32 %v2379, %v3863
        %v4130 = vmul.f32 %v2826, %v3863
        %v4131 = vmul.f32 %v2828, %v3863
        %v4132 = vmul.f32 %v2383, %v3868
        %v4133 = vmul.f32 %v2385, %v3868
        %v4134 = vmul.f32 %v2832, %v3868
        %v4135 = vmul.f32 %v2834, %v3868
        %v4136 = vmul.f32 %v2389, %v3873
        %v4137 = vmul.f32 %v2391, %v3873
        %v4138 = vmul.f32 %v2838, %v3873
        %v4139 = vmul.f32 %v2840, %v3873
        %v4140 = vmul.f32 %v2395, %v3878
        %v4141 = vmul.f32 %v2397, %v3878
        %v4142 = vmul.f32 %v2844, %v3878
        %v4143 = vmul.f32 %v2846, %v3878
        %v4144 = vmul.f32 %v2401, %v3883
        %v4145 = vmul.f32 %v2403, %v3883
        %v4146 = vmul.f32 %v2850, %v3883
        %v4147 = vmul.f32 %v2852, %v3883
        %v4148 = vmul.f32 %v2407, %v3888
        %v4149 = vmul.f32 %v2409, %v3888
        %v4150 = vmul.f32 %v2856, %v3888
        %v4151 = vmul.f32 %v2858, %v3888
        %v4152 = vmul.f32 %v2413, %v3893
        %v4153 = vmul.f32 %v2415, %v3893
        %v4154 = vmul.f32 %v2862, %v3893
        %v4155 = vmul.f32 %v2864, %v3893
        %v4156 = vmul.f32 %v2419, %v3898
        %v4157 = vmul.f32 %v2421, %v3898
        %v4158 = vmul.f32 %v2868, %v3898
        %v4159 = vmul.f32 %v2870, %v3898
        %v4160 = vmul.f32 %v2425, %v3903
        %v4161 = vmul.f32 %v2427, %v3903
        %v4162 = vmul.f32 %v2874, %v3903
        %v4163 = vmul.f32 %v2876, %v3903
        %v4164 = vmul.f32 %v2431, %v3908
        %v4165 = vmul.f32 %v2433, %v3908
        %v4166 = vmul.f32 %v2880, %v3908
        %v4167 = vmul.f32 %v2882, %v3908
        %v4168 = vmul.f32 %v2437, %v3913
        %v4169 = vmul.f32 %v2439, %v3913
        %v4170 = vmul.f32 %v2886, %v3913
        %v4171 = vmul.f32 %v2888, %v3913
        %v4172 = vmul.f32 %v2443, %v3918
        %v4173 = vmul.f32 %v2445, %v3918
        %v4174 = vmul.f32 %v2892, %v3918
        %v4175 = vmul.f32 %v2894, %v3918
        %v4176 = vsub.f32 %v3280, %v3920
        %v4177 = vsub.f32 %v3281, %v3921
        %v4178 = vsub.f32 %v3282, %v3922
        %v4179 = vsub.f32 %v3283, %v3923
        %v4180 = vsub.f32 %v3284, %v3924
        %v4181 = vsub.f32 %v3285, %v3925
        %v4182 = vsub.f32 %v3286, %v3926
        %v4183 = vsub.f32 %v3287, %v3927
        %v4184 = vsub.f32 %v3288, %v3928
        %v4185 = vsub.f32 %v3289, %v3929
        %v4186 = vsub.f32 %v3290, %v3930
        %v4187 = vsub.f32 %v3291, %v3931
        %v4188 = vsub.f32 %v3292, %v3932
        %v4189 = vsub.f32 %v3293, %v3933
        %v4190 = vsub.f32 %v3294, %v3934
        %v4191 = vsub.f32 %v3295, %v3935
        %v4192 = vsub.f32 %v3296, %v3936
        %v4193 = vsub.f32 %v3297, %v3937
        %v4194 = vsub.f32 %v3298, %v3938
        %v4195 = vsub.f32 %v3299, %v3939
        %v4196 = vsub.f32 %v3300, %v3940
        %v4197 = vsub.f32 %v3301, %v3941
        %v4198 = vsub.f32 %v3302, %v3942
        %v4199 = vsub.f32 %v3303, %v3943
        %v4200 = vsub.f32 %v3304, %v3944
        %v4201 = vsub.f32 %v3305, %v3945
        %v4202 = vsub.f32 %v3306, %v3946
        %v4203 = vsub.f32 %v3307, %v3947
        %v4204 = vsub.f32 %v3308, %v3948
        %v4205 = vsub.f32 %v3309, %v3949
        %v4206 = vsub.f32 %v3310, %v3950
        %v4207 = vsub.f32 %v3311, %v3951
        %v4208 = vsub.f32 %v3312, %v3952
        %v4209 = vsub.f32 %v3313, %v3953
        %v4210 = vsub.f32 %v3314, %v3954
        %v4211 = vsub.f32 %v3315, %v3955
        %v4212 = vsub.f32 %v3316, %v3956
        %v4213 = vsub.f32 %v3317, %v3957
        %v4214 = vsub.f32 %v3318, %v3958
        %v4215 = vsub.f32 %v3319, %v3959
        %v4216 = vsub.f32 %v3320, %v3960
        %v4217 = vsub.f32 %v3321, %v3961
        %v4218 = vsub.f32 %v3322, %v3962
        %v4219 = vsub.f32 %v3323, %v3963
        %v4220 = vsub.f32 %v3324, %v3964
        %v4221 = vsub.f32 %v3325, %v3965
        %v4222 = vsub.f32 %v3326, %v3966
        %v4223 = vsub.f32 %v3327, %v3967
        %v4224 = vsub.f32 %v3328, %v3968
        %v4225 = vsub.f32 %v3329, %v3969
        %v4226 = vsub.f32 %v3330, %v3970
        %v4227 = vsub.f32 %v3331, %v3971
        %v4228 = vsub.f32 %v3332, %v3972
        %v4229 = vsub.f32 %v3333, %v3973
        %v4230 = vsub.f32 %v3334, %v3974
        %v4231 = vsub.f32 %v3335, %v3975
        %v4232 = vsub.f32 %v3336, %v3976
        %v4233 = vsub.f32 %v3337, %v3977
        %v4234 = vsub.f32 %v3338, %v3978
        %v4235 = vsub.f32 %v3339, %v3979
        %v4236 = vsub.f32 %v3340, %v3980
        %v4237 = vsub.f32 %v3341, %v3981
        %v4238 = vsub.f32 %v3342, %v3982
        %v4239 = vsub.f32 %v3343, %v3983
        %v4240 = vsub.f32 %v3344, %v3984
        %v4241 = vsub.f32 %v3345, %v3985
        %v4242 = vsub.f32 %v3346, %v3986
        %v4243 = vsub.f32 %v3347, %v3987
        %v4244 = vsub.f32 %v3348, %v3988
        %v4245 = vsub.f32 %v3349, %v3989
        %v4246 = vsub.f32 %v3350, %v3990
        %v4247 = vsub.f32 %v3351, %v3991
        %v4248 = vsub.f32 %v3352, %v3992
        %v4249 = vsub.f32 %v3353, %v3993
        %v4250 = vsub.f32 %v3354, %v3994
        %v4251 = vsub.f32 %v3355, %v3995
        %v4252 = vsub.f32 %v3356, %v3996
        %v4253 = vsub.f32 %v3357, %v3997
        %v4254 = vsub.f32 %v3358, %v3998
        %v4255 = vsub.f32 %v3359, %v3999
        %v4256 = vsub.f32 %v3360, %v4000
        %v4257 = vsub.f32 %v3361, %v4001
        %v4258 = vsub.f32 %v3362, %v4002
        %v4259 = vsub.f32 %v3363, %v4003
        %v4260 = vsub.f32 %v3364, %v4004
        %v4261 = vsub.f32 %v3365, %v4005
        %v4262 = vsub.f32 %v3366, %v4006
        %v4263 = vsub.f32 %v3367, %v4007
        %v4264 = vsub.f32 %v3368, %v4008
        %v4265 = vsub.f32 %v3369, %v4009
        %v4266 = vsub.f32 %v3370, %v4010
        %v4267 = vsub.f32 %v3371, %v4011
        %v4268 = vsub.f32 %v3372, %v4012
        %v4269 = vsub.f32 %v3373, %v4013
        %v4270 = vsub.f32 %v3374, %v4014
        %v4271 = vsub.f32 %v3375, %v4015
        %v4272 = vsub.f32 %v3376, %v4016
        %v4273 = vsub.f32 %v3377, %v4017
        %v4274 = vsub.f32 %v3378, %v4018
        %v4275 = vsub.f32 %v3379, %v4019
        %v4276 = vsub.f32 %v3380, %v4020
        %v4277 = vsub.f32 %v3381, %v4021
        %v4278 = vsub.f32 %v3382, %v4022
        %v4279 = vsub.f32 %v3383, %v4023
        %v4280 = vsub.f32 %v3384, %v4024
        %v4281 = vsub.f32 %v3385, %v4025
        %v4282 = vsub.f32 %v3386, %v4026
        %v4283 = vsub.f32 %v3387, %v4027
        %v4284 = vsub.f32 %v3388, %v4028
        %v4285 = vsub.f32 %v3389, %v4029
        %v4286 = vsub.f32 %v3390, %v4030
        %v4287 = vsub.f32 %v3391, %v4031
        %v4288 = vsub.f32 %v3392, %v4032
        %v4289 = vsub.f32 %v3393, %v4033
        %v4290 = vsub.f32 %v3394, %v4034
        %v4291 = vsub.f32 %v3395, %v4035
        %v4292 = vsub.f32 %v3396, %v4036
        %v4293 = vsub.f32 %v3397, %v4037
        %v4294 = vsub.f32 %v3398, %v4038
        %v4295 = vsub.f32 %v3399, %v4039
        %v4296 = vsub.f32 %v3400, %v4040
        %v4297 = vsub.f32 %v3401, %v4041
        %v4298 = vsub.f32 %v3402, %v4042
        %v4299 = vsub.f32 %v3403, %v4043
        %v4300 = vsub.f32 %v3404, %v4044
        %v4301 = vsub.f32 %v3405, %v4045
        %v4302 = vsub.f32 %v3406, %v4046
        %v4303 = vsub.f32 %v3407, %v4047
        %v4304 = vsub.f32 %v3408, %v4048
        %v4305 = vsub.f32 %v3409, %v4049
        %v4306 = vsub.f32 %v3410, %v4050
        %v4307 = vsub.f32 %v3411, %v4051
        %v4308 = vsub.f32 %v3412, %v4052
        %v4309 = vsub.f32 %v3413, %v4053
        %v4310 = vsub.f32 %v3414, %v4054
        %v4311 = vsub.f32 %v3415, %v4055
        %v4312 = vsub.f32 %v3416, %v4056
        %v4313 = vsub.f32 %v3417, %v4057
        %v4314 = vsub.f32 %v3418, %v4058
        %v4315 = vsub.f32 %v3419, %v4059
        %v4316 = vsub.f32 %v3420, %v4060
        %v4317 = vsub.f32 %v3421, %v4061
        %v4318 = vsub.f32 %v3422, %v4062
        %v4319 = vsub.f32 %v3423, %v4063
        %v4320 = vsub.f32 %v3424, %v4064
        %v4321 = vsub.f32 %v3425, %v4065
        %v4322 = vsub.f32 %v3426, %v4066
        %v4323 = vsub.f32 %v3427, %v4067
        %v4324 = vsub.f32 %v3428, %v4068
        %v4325 = vsub.f32 %v3429, %v4069
        %v4326 = vsub.f32 %v3430, %v4070
        %v4327 = vsub.f32 %v3431, %v4071
        %v4328 = vsub.f32 %v3432, %v4072
        %v4329 = vsub.f32 %v3433, %v4073
        %v4330 = vsub.f32 %v3434, %v4074
        %v4331 = vsub.f32 %v3435, %v4075
        %v4332 = vsub.f32 %v3436, %v4076
        %v4333 = vsub.f32 %v3437, %v4077
        %v4334 = vsub.f32 %v3438, %v4078
        %v4335 = vsub.f32 %v3439, %v4079
        %v4336 = vsub.f32 %v3440, %v4080
        %v4337 = vsub.f32 %v3441, %v4081
        %v4338 = vsub.f32 %v3442, %v4082
        %v4339 = vsub.f32 %v3443, %v4083
        %v4340 = vsub.f32 %v3444, %v4084
        %v4341 = vsub.f32 %v3445, %v4085
        %v4342 = vsub.f32 %v3446, %v4086
        %v4343 = vsub.f32 %v3447, %v4087
        %v4344 = vsub.f32 %v3448, %v4088
        %v4345 = vsub.f32 %v3449, %v4089
        %v4346 = vsub.f32 %v3450, %v4090
        %v4347 = vsub.f32 %v3451, %v4091
        %v4348 = vsub.f32 %v3452, %v4092
        %v4349 = vsub.f32 %v3453, %v4093
        %v4350 = vsub.f32 %v3454, %v4094
        %v4351 = vsub.f32 %v3455, %v4095
        %v4352 = vsub.f32 %v3456, %v4096
        %v4353 = vsub.f32 %v3457, %v4097
        %v4354 = vsub.f32 %v3458, %v4098
        %v4355 = vsub.f32 %v3459, %v4099
        %v4356 = vsub.f32 %v3460, %v4100
        %v4357 = vsub.f32 %v3461, %v4101
        %v4358 = vsub.f32 %v3462, %v4102
        %v4359 = vsub.f32 %v3463, %v4103
        %v4360 = vsub.f32 %v3464, %v4104
        %v4361 = vsub.f32 %v3465, %v4105
        %v4362 = vsub.f32 %v3466, %v4106
        %v4363 = vsub.f32 %v3467, %v4107
        %v4364 = vsub.f32 %v3468, %v4108
        %v4365 = vsub.f32 %v3469, %v4109
        %v4366 = vsub.f32 %v3470, %v4110
        %v4367 = vsub.f32 %v3471, %v4111
        %v4368 = vsub.f32 %v3472, %v4112
        %v4369 = vsub.f32 %v3473, %v4113
        %v4370 = vsub.f32 %v3474, %v4114
        %v4371 = vsub.f32 %v3475, %v4115
        %v4372 = vsub.f32 %v3476, %v4116
        %v4373 = vsub.f32 %v3477, %v4117
        %v4374 = vsub.f32 %v3478, %v4118
        %v4375 = vsub.f32 %v3479, %v4119
        %v4376 = vsub.f32 %v3480, %v4120
        %v4377 = vsub.f32 %v3481, %v4121
        %v4378 = vsub.f32 %v3482, %v4122
        %v4379 = vsub.f32 %v3483, %v4123
        %v4380 = vsub.f32 %v3484, %v4124
        %v4381 = vsub.f32 %v3485, %v4125
        %v4382 = vsub.f32 %v3486, %v4126
        %v4383 = vsub.f32 %v3487, %v4127
        %v4384 = vsub.f32 %v3488, %v4128
        %v4385 = vsub.f32 %v3489, %v4129
        %v4386 = vsub.f32 %v3490, %v4130
        %v4387 = vsub.f32 %v3491, %v4131
        %v4388 = vsub.f32 %v3492, %v4132
        %v4389 = vsub.f32 %v3493, %v4133
        %v4390 = vsub.f32 %v3494, %v4134
        %v4391 = vsub.f32 %v3495, %v4135
        %v4392 = vsub.f32 %v3496, %v4136
        %v4393 = vsub.f32 %v3497, %v4137
        %v4394 = vsub.f32 %v3498, %v4138
        %v4395 = vsub.f32 %v3499, %v4139
        %v4396 = vsub.f32 %v3500, %v4140
        %v4397 = vsub.f32 %v3501, %v4141
        %v4398 = vsub.f32 %v3502, %v4142
        %v4399 = vsub.f32 %v3503, %v4143
        %v4400 = vsub.f32 %v3504, %v4144
        %v4401 = vsub.f32 %v3505, %v4145
        %v4402 = vsub.f32 %v3506, %v4146
        %v4403 = vsub.f32 %v3507, %v4147
        %v4404 = vsub.f32 %v3508, %v4148
        %v4405 = vsub.f32 %v3509, %v4149
        %v4406 = vsub.f32 %v3510, %v4150
        %v4407 = vsub.f32 %v3511, %v4151
        %v4408 = vsub.f32 %v3512, %v4152
        %v4409 = vsub.f32 %v3513, %v4153
        %v4410 = vsub.f32 %v3514, %v4154
        %v4411 = vsub.f32 %v3515, %v4155
        %v4412 = vsub.f32 %v3516, %v4156
        %v4413 = vsub.f32 %v3517, %v4157
        %v4414 = vsub.f32 %v3518, %v4158
        %v4415 = vsub.f32 %v3519, %v4159
        %v4416 = vsub.f32 %v3520, %v4160
        %v4417 = vsub.f32 %v3521, %v4161
        %v4418 = vsub.f32 %v3522, %v4162
        %v4419 = vsub.f32 %v3523, %v4163
        %v4420 = vsub.f32 %v3524, %v4164
        %v4421 = vsub.f32 %v3525, %v4165
        %v4422 = vsub.f32 %v3526, %v4166
        %v4423 = vsub.f32 %v3527, %v4167
        %v4424 = vsub.f32 %v3528, %v4168
        %v4425 = vsub.f32 %v3529, %v4169
        %v4426 = vsub.f32 %v3530, %v4170
        %v4427 = vsub.f32 %v3531, %v4171
        %v4428 = vsub.f32 %v3532, %v4172
        %v4429 = vsub.f32 %v3533, %v4173
        %v4430 = vsub.f32 %v3534, %v4174
        %v4431 = vsub.f32 %v3535, %v4175
        %v4432 = vmul.f32 %v4176, %v4176
        %v4433 = vmul.f32 %v4177, %v4177
        %v4434 = vmul.f32 %v4178, %v4178
        %v4435 = vmul.f32 %v4179, %v4179
        %v4436 = vmul.f32 %v4180, %v4180
        %v4437 = vmul.f32 %v4181, %v4181
        %v4438 = vmul.f32 %v4182, %v4182
        %v4439 = vmul.f32 %v4183, %v4183
        %v4440 = vmul.f32 %v4184, %v4184
        %v4441 = vmul.f32 %v4185, %v4185
        %v4442 = vmul.f32 %v4186, %v4186
        %v4443 = vmul.f32 %v4187, %v4187
        %v4444 = vmul.f32 %v4188, %v4188
        %v4445 = vmul.f32 %v4189, %v4189
        %v4446 = vmul.f32 %v4190, %v4190
        %v4447 = vmul.f32 %v4191, %v4191
        %v4448 = vmul.f32 %v4192, %v4192
        %v4449 = vmul.f32 %v4193, %v4193
        %v4450 = vmul.f32 %v4194, %v4194
        %v4451 = vmul.f32 %v4195, %v4195
        %v4452 = vmul.f32 %v4196, %v4196
        %v4453 = vmul.f32 %v4197, %v4197
        %v4454 = vmul.f32 %v4198, %v4198
        %v4455 = vmul.f32 %v4199, %v4199
        %v4456 = vmul.f32 %v4200, %v4200
        %v4457 = vmul.f32 %v4201, %v4201
        %v4458 = vmul.f32 %v4202, %v4202
        %v4459 = vmul.f32 %v4203, %v4203
        %v4460 = vmul.f32 %v4204, %v4204
        %v4461 = vmul.f32 %v4205, %v4205
        %v4462 = vmul.f32 %v4206, %v4206
        %v4463 = vmul.f32 %v4207, %v4207
        %v4464 = vmul.f32 %v4208, %v4208
        %v4465 = vmul.f32 %v4209, %v4209
        %v4466 = vmul.f32 %v4210, %v4210
        %v4467 = vmul.f32 %v4211, %v4211
        %v4468 = vmul.f32 %v4212, %v4212
        %v4469 = vmul.f32 %v4213, %v4213
        %v4470 = vmul.f32 %v4214, %v4214
        %v4471 = vmul.f32 %v4215, %v4215
        %v4472 = vmul.f32 %v4216, %v4216
        %v4473 = vmul.f32 %v4217, %v4217
        %v4474 = vmul.f32 %v4218, %v4218
        %v4475 = vmul.f32 %v4219, %v4219
        %v4476 = vmul.f32 %v4220, %v4220
        %v4477 = vmul.f32 %v4221, %v4221
        %v4478 = vmul.f32 %v4222, %v4222
        %v4479 = vmul.f32 %v4223, %v4223
        %v4480 = vmul.f32 %v4224, %v4224
        %v4481 = vmul.f32 %v4225, %v4225
        %v4482 = vmul.f32 %v4226, %v4226
        %v4483 = vmul.f32 %v4227, %v4227
        %v4484 = vmul.f32 %v4228, %v4228
        %v4485 = vmul.f32 %v4229, %v4229
        %v4486 = vmul.f32 %v4230, %v4230
        %v4487 = vmul.f32 %v4231, %v4231
        %v4488 = vmul.f32 %v4232, %v4232
        %v4489 = vmul.f32 %v4233, %v4233
        %v4490 = vmul.f32 %v4234, %v4234
        %v4491 = vmul.f32 %v4235, %v4235
        %v4492 = vmul.f32 %v4236, %v4236
        %v4493 = vmul.f32 %v4237, %v4237
        %v4494 = vmul.f32 %v4238, %v4238
        %v4495 = vmul.f32 %v4239, %v4239
        %v4496 = vmul.f32 %v4240, %v4240
        %v4497 = vmul.f32 %v4241, %v4241
        %v4498 = vmul.f32 %v4242, %v4242
        %v4499 = vmul.f32 %v4243, %v4243
        %v4500 = vmul.f32 %v4244, %v4244
        %v4501 = vmul.f32 %v4245, %v4245
        %v4502 = vmul.f32 %v4246, %v4246
        %v4503 = vmul.f32 %v4247, %v4247
        %v4504 = vmul.f32 %v4248, %v4248
        %v4505 = vmul.f32 %v4249, %v4249
        %v4506 = vmul.f32 %v4250, %v4250
        %v4507 = vmul.f32 %v4251, %v4251
        %v4508 = vmul.f32 %v4252, %v4252
        %v4509 = vmul.f32 %v4253, %v4253
        %v4510 = vmul.f32 %v4254, %v4254
        %v4511 = vmul.f32 %v4255, %v4255
        %v4512 = vmul.f32 %v4256, %v4256
        %v4513 = vmul.f32 %v4257, %v4257
        %v4514 = vmul.f32 %v4258, %v4258
        %v4515 = vmul.f32 %v4259, %v4259
        %v4516 = vmul.f32 %v4260, %v4260
        %v4517 = vmul.f32 %v4261, %v4261
        %v4518 = vmul.f32 %v4262, %v4262
        %v4519 = vmul.f32 %v4263, %v4263
        %v4520 = vmul.f32 %v4264, %v4264
        %v4521 = vmul.f32 %v4265, %v4265
        %v4522 = vmul.f32 %v4266, %v4266
        %v4523 = vmul.f32 %v4267, %v4267
        %v4524 = vmul.f32 %v4268, %v4268
        %v4525 = vmul.f32 %v4269, %v4269
        %v4526 = vmul.f32 %v4270, %v4270
        %v4527 = vmul.f32 %v4271, %v4271
        %v4528 = vmul.f32 %v4272, %v4272
        %v4529 = vmul.f32 %v4273, %v4273
        %v4530 = vmul.f32 %v4274, %v4274
        %v4531 = vmul.f32 %v4275, %v4275
        %v4532 = vmul.f32 %v4276, %v4276
        %v4533 = vmul.f32 %v4277, %v4277
        %v4534 = vmul.f32 %v4278, %v4278
        %v4535 = vmul.f32 %v4279, %v4279
        %v4536 = vmul.f32 %v4280, %v4280
        %v4537 = vmul.f32 %v4281, %v4281
        %v4538 = vmul.f32 %v4282, %v4282
        %v4539 = vmul.f32 %v4283, %v4283
        %v4540 = vmul.f32 %v4284, %v4284
        %v4541 = vmul.f32 %v4285, %v4285
        %v4542 = vmul.f32 %v4286, %v4286
        %v4543 = vmul.f32 %v4287, %v4287
        %v4544 = vmul.f32 %v4288, %v4288
        %v4545 = vmul.f32 %v4289, %v4289
        %v4546 = vmul.f32 %v4290, %v4290
        %v4547 = vmul.f32 %v4291, %v4291
        %v4548 = vmul.f32 %v4292, %v4292
        %v4549 = vmul.f32 %v4293, %v4293
        %v4550 = vmul.f32 %v4294, %v4294
        %v4551 = vmul.f32 %v4295, %v4295
        %v4552 = vmul.f32 %v4296, %v4296
        %v4553 = vmul.f32 %v4297, %v4297
        %v4554 = vmul.f32 %v4298, %v4298
        %v4555 = vmul.f32 %v4299, %v4299
        %v4556 = vmul.f32 %v4300, %v4300
        %v4557 = vmul.f32 %v4301, %v4301
        %v4558 = vmul.f32 %v4302, %v4302
        %v4559 = vmul.f32 %v4303, %v4303
        %v4560 = vmul.f32 %v4304, %v4304
        %v4561 = vmul.f32 %v4305, %v4305
        %v4562 = vmul.f32 %v4306, %v4306
        %v4563 = vmul.f32 %v4307, %v4307
        %v4564 = vmul.f32 %v4308, %v4308
        %v4565 = vmul.f32 %v4309, %v4309
        %v4566 = vmul.f32 %v4310, %v4310
        %v4567 = vmul.f32 %v4311, %v4311
        %v4568 = vmul.f32 %v4312, %v4312
        %v4569 = vmul.f32 %v4313, %v4313
        %v4570 = vmul.f32 %v4314, %v4314
        %v4571 = vmul.f32 %v4315, %v4315
        %v4572 = vmul.f32 %v4316, %v4316
        %v4573 = vmul.f32 %v4317, %v4317
        %v4574 = vmul.f32 %v4318, %v4318
        %v4575 = vmul.f32 %v4319, %v4319
        %v4576 = vmul.f32 %v4320, %v4320
        %v4577 = vmul.f32 %v4321, %v4321
        %v4578 = vmul.f32 %v4322, %v4322
        %v4579 = vmul.f32 %v4323, %v4323
        %v4580 = vmul.f32 %v4324, %v4324
        %v4581 = vmul.f32 %v4325, %v4325
        %v4582 = vmul.f32 %v4326, %v4326
        %v4583 = vmul.f32 %v4327, %v4327
        %v4584 = vmul.f32 %v4328, %v4328
        %v4585 = vmul.f32 %v4329, %v4329
        %v4586 = vmul.f32 %v4330, %v4330
        %v4587 = vmul.f32 %v4331, %v4331
        %v4588 = vmul.f32 %v4332, %v4332
        %v4589 = vmul.f32 %v4333, %v4333
        %v4590 = vmul.f32 %v4334, %v4334
        %v4591 = vmul.f32 %v4335, %v4335
        %v4592 = vmul.f32 %v4336, %v4336
        %v4593 = vmul.f32 %v4337, %v4337
        %v4594 = vmul.f32 %v4338, %v4338
        %v4595 = vmul.f32 %v4339, %v4339
        %v4596 = vmul.f32 %v4340, %v4340
        %v4597 = vmul.f32 %v4341, %v4341
        %v4598 = vmul.f32 %v4342, %v4342
        %v4599 = vmul.f32 %v4343, %v4343
        %v4600 = vmul.f32 %v4344, %v4344
        %v4601 = vmul.f32 %v4345, %v4345
        %v4602 = vmul.f32 %v4346, %v4346
        %v4603 = vmul.f32 %v4347, %v4347
        %v4604 = vmul.f32 %v4348, %v4348
        %v4605 = vmul.f32 %v4349, %v4349
        %v4606 = vmul.f32 %v4350, %v4350
        %v4607 = vmul.f32 %v4351, %v4351
        %v4608 = vmul.f32 %v4352, %v4352
        %v4609 = vmul.f32 %v4353, %v4353
        %v4610 = vmul.f32 %v4354, %v4354
        %v4611 = vmul.f32 %v4355, %v4355
        %v4612 = vmul.f32 %v4356, %v4356
        %v4613 = vmul.f32 %v4357, %v4357
        %v4614 = vmul.f32 %v4358, %v4358
        %v4615 = vmul.f32 %v4359, %v4359
        %v4616 = vmul.f32 %v4360, %v4360
        %v4617 = vmul.f32 %v4361, %v4361
        %v4618 = vmul.f32 %v4362, %v4362
        %v4619 = vmul.f32 %v4363, %v4363
        %v4620 = vmul.f32 %v4364, %v4364
        %v4621 = vmul.f32 %v4365, %v4365
        %v4622 = vmul.f32 %v4366, %v4366
        %v4623 = vmul.f32 %v4367, %v4367
        %v4624 = vmul.f32 %v4368, %v4368
        %v4625 = vmul.f32 %v4369, %v4369
        %v4626 = vmul.f32 %v4370, %v4370
        %v4627 = vmul.f32 %v4371, %v4371
        %v4628 = vmul.f32 %v4372, %v4372
        %v4629 = vmul.f32 %v4373, %v4373
        %v4630 = vmul.f32 %v4374, %v4374
        %v4631 = vmul.f32 %v4375, %v4375
        %v4632 = vmul.f32 %v4376, %v4376
        %v4633 = vmul.f32 %v4377, %v4377
        %v4634 = vmul.f32 %v4378, %v4378
        %v4635 = vmul.f32 %v4379, %v4379
        %v4636 = vmul.f32 %v4380, %v4380
        %v4637 = vmul.f32 %v4381, %v4381
        %v4638 = vmul.f32 %v4382, %v4382
        %v4639 = vmul.f32 %v4383, %v4383
        %v4640 = vmul.f32 %v4384, %v4384
        %v4641 = vmul.f32 %v4385, %v4385
        %v4642 = vmul.f32 %v4386, %v4386
        %v4643 = vmul.f32 %v4387, %v4387
        %v4644 = vmul.f32 %v4388, %v4388
        %v4645 = vmul.f32 %v4389, %v4389
        %v4646 = vmul.f32 %v4390, %v4390
        %v4647 = vmul.f32 %v4391, %v4391
        %v4648 = vmul.f32 %v4392, %v4392
        %v4649 = vmul.f32 %v4393, %v4393
        %v4650 = vmul.f32 %v4394, %v4394
        %v4651 = vmul.f32 %v4395, %v4395
        %v4652 = vmul.f32 %v4396, %v4396
        %v4653 = vmul.f32 %v4397, %v4397
        %v4654 = vmul.f32 %v4398, %v4398
        %v4655 = vmul.f32 %v4399, %v4399
        %v4656 = vmul.f32 %v4400, %v4400
        %v4657 = vmul.f32 %v4401, %v4401
        %v4658 = vmul.f32 %v4402, %v4402
        %v4659 = vmul.f32 %v4403, %v4403
        %v4660 = vmul.f32 %v4404, %v4404
        %v4661 = vmul.f32 %v4405, %v4405
        %v4662 = vmul.f32 %v4406, %v4406
        %v4663 = vmul.f32 %v4407, %v4407
        %v4664 = vmul.f32 %v4408, %v4408
        %v4665 = vmul.f32 %v4409, %v4409
        %v4666 = vmul.f32 %v4410, %v4410
        %v4667 = vmul.f32 %v4411, %v4411
        %v4668 = vmul.f32 %v4412, %v4412
        %v4669 = vmul.f32 %v4413, %v4413
        %v4670 = vmul.f32 %v4414, %v4414
        %v4671 = vmul.f32 %v4415, %v4415
        %v4672 = vmul.f32 %v4416, %v4416
        %v4673 = vmul.f32 %v4417, %v4417
        %v4674 = vmul.f32 %v4418, %v4418
        %v4675 = vmul.f32 %v4419, %v4419
        %v4676 = vmul.f32 %v4420, %v4420
        %v4677 = vmul.f32 %v4421, %v4421
        %v4678 = vmul.f32 %v4422, %v4422
        %v4679 = vmul.f32 %v4423, %v4423
        %v4680 = vmul.f32 %v4424, %v4424
        %v4681 = vmul.f32 %v4425, %v4425
        %v4682 = vmul.f32 %v4426, %v4426
        %v4683 = vmul.f32 %v4427, %v4427
        %v4684 = vmul.f32 %v4428, %v4428
        %v4685 = vmul.f32 %v4429, %v4429
        %v4686 = vmul.f32 %v4430, %v4430
        %v4687 = vmul.f32 %v4431, %v4431
        %4688 = vst [vmem:[%s424] sm:$0xff] %v4432
        %4689 = vst [vmem:[%s424 + $0x8] sm:$0xff] %v4433
        %4690 = vst [vmem:[%s424 + $0x10] sm:$0xff] %v4434
        %4691 = vst [vmem:[%s424 + $0x18] sm:$0xff] %v4435
        %4692 = vst [vmem:[%s424 + $0x20] sm:$0xff] %v4436
        %4693 = vst [vmem:[%s424 + $0x28] sm:$0xff] %v4437
        %4694 = vst [vmem:[%s424 + $0x30] sm:$0xff] %v4438
        %4695 = vst [vmem:[%s424 + $0x38] sm:$0xff] %v4439
        %4696 = vst [vmem:[%s424 + $0x40] sm:$0xff] %v4440
        %4697 = vst [vmem:[%s424 + $0x48] sm:$0xff] %v4441
        %4698 = vst [vmem:[%s424 + $0x50] sm:$0xff] %v4442
        %4699 = vst [vmem:[%s424 + $0x58] sm:$0xff] %v4443
        %4700 = vst [vmem:[%s424 + $0x60] sm:$0xff] %v4444
        %4701 = vst [vmem:[%s424 + $0x68] sm:$0xff] %v4445
        %4702 = vst [vmem:[%s424 + $0x70] sm:$0xff] %v4446
        %4703 = vst [vmem:[%s424 + $0x78] sm:$0xff] %v4447
        %4704 = vst [vmem:[%s424 + $0x80] sm:$0xff] %v4448
        %4705 = vst [vmem:[%s424 + $0x88] sm:$0xff] %v4449
        %4706 = vst [vmem:[%s424 + $0x90] sm:$0xff] %v4450
        %4707 = vst [vmem:[%s424 + $0x98] sm:$0xff] %v4451
        %4708 = vst [vmem:[%s424 + $0xa0] sm:$0xff] %v4452
        %4709 = vst [vmem:[%s424 + $0xa8] sm:$0xff] %v4453
        %4710 = vst [vmem:[%s424 + $0xb0] sm:$0xff] %v4454
        %4711 = vst [vmem:[%s424 + $0xb8] sm:$0xff] %v4455
        %4712 = vst [vmem:[%s424 + $0xc0] sm:$0xff] %v4456
        %4713 = vst [vmem:[%s424 + $0xc8] sm:$0xff] %v4457
        %4714 = vst [vmem:[%s424 + $0xd0] sm:$0xff] %v4458
        %4715 = vst [vmem:[%s424 + $0xd8] sm:$0xff] %v4459
        %4716 = vst [vmem:[%s424 + $0xe0] sm:$0xff] %v4460
        %4717 = vst [vmem:[%s424 + $0xe8] sm:$0xff] %v4461
        %4718 = vst [vmem:[%s424 + $0xf0] sm:$0xff] %v4462
        %4719 = vst [vmem:[%s424 + $0xf8] sm:$0xff] %v4463
        %4720 = vst [vmem:[%s424 + $0x100] sm:$0xff] %v4464
        %4721 = vst [vmem:[%s424 + $0x108] sm:$0xff] %v4465
        %4722 = vst [vmem:[%s424 + $0x110] sm:$0xff] %v4466
        %4723 = vst [vmem:[%s424 + $0x118] sm:$0xff] %v4467
        %4724 = vst [vmem:[%s424 + $0x120] sm:$0xff] %v4468
        %4725 = vst [vmem:[%s424 + $0x128] sm:$0xff] %v4469
        %4726 = vst [vmem:[%s424 + $0x130] sm:$0xff] %v4470
        %4727 = vst [vmem:[%s424 + $0x138] sm:$0xff] %v4471
        %4728 = vst [vmem:[%s424 + $0x140] sm:$0xff] %v4472
        %4729 = vst [vmem:[%s424 + $0x148] sm:$0xff] %v4473
        %4730 = vst [vmem:[%s424 + $0x150] sm:$0xff] %v4474
        %4731 = vst [vmem:[%s424 + $0x158] sm:$0xff] %v4475
        %4732 = vst [vmem:[%s424 + $0x160] sm:$0xff] %v4476
        %4733 = vst [vmem:[%s424 + $0x168] sm:$0xff] %v4477
        %4734 = vst [vmem:[%s424 + $0x170] sm:$0xff] %v4478
        %4735 = vst [vmem:[%s424 + $0x178] sm:$0xff] %v4479
        %4736 = vst [vmem:[%s424 + $0x180] sm:$0xff] %v4480
        %4737 = vst [vmem:[%s424 + $0x188] sm:$0xff] %v4481
        %4738 = vst [vmem:[%s424 + $0x190] sm:$0xff] %v4482
        %4739 = vst [vmem:[%s424 + $0x198] sm:$0xff] %v4483
        %4740 = vst [vmem:[%s424 + $0x1a0] sm:$0xff] %v4484
        %4741 = vst [vmem:[%s424 + $0x1a8] sm:$0xff] %v4485
        %4742 = vst [vmem:[%s424 + $0x1b0] sm:$0xff] %v4486
        %4743 = vst [vmem:[%s424 + $0x1b8] sm:$0xff] %v4487
        %4744 = vst [vmem:[%s424 + $0x1c0] sm:$0xff] %v4488
        %4745 = vst [vmem:[%s424 + $0x1c8] sm:$0xff] %v4489
        %4746 = vst [vmem:[%s424 + $0x1d0] sm:$0xff] %v4490
        %4747 = vst [vmem:[%s424 + $0x1d8] sm:$0xff] %v4491
        %4748 = vst [vmem:[%s424 + $0x1e0] sm:$0xff] %v4492
        %4749 = vst [vmem:[%s424 + $0x1e8] sm:$0xff] %v4493
        %4750 = vst [vmem:[%s424 + $0x1f0] sm:$0xff] %v4494
        %4751 = vst [vmem:[%s424 + $0x1f8] sm:$0xff] %v4495
        %4752 = vst [vmem:[%s424 + $0x200] sm:$0xff] %v4496
        %4753 = vst [vmem:[%s424 + $0x208] sm:$0xff] %v4497
        %4754 = vst [vmem:[%s424 + $0x210] sm:$0xff] %v4498
        %4755 = vst [vmem:[%s424 + $0x218] sm:$0xff] %v4499
        %4756 = vst [vmem:[%s424 + $0x220] sm:$0xff] %v4500
        %4757 = vst [vmem:[%s424 + $0x228] sm:$0xff] %v4501
        %4758 = vst [vmem:[%s424 + $0x230] sm:$0xff] %v4502
        %4759 = vst [vmem:[%s424 + $0x238] sm:$0xff] %v4503
        %4760 = vst [vmem:[%s424 + $0x240] sm:$0xff] %v4504
        %4761 = vst [vmem:[%s424 + $0x248] sm:$0xff] %v4505
        %4762 = vst [vmem:[%s424 + $0x250] sm:$0xff] %v4506
        %4763 = vst [vmem:[%s424 + $0x258] sm:$0xff] %v4507
        %4764 = vst [vmem:[%s424 + $0x260] sm:$0xff] %v4508
        %4765 = vst [vmem:[%s424 + $0x268] sm:$0xff] %v4509
        %4766 = vst [vmem:[%s424 + $0x270] sm:$0xff] %v4510
        %4767 = vst [vmem:[%s424 + $0x278] sm:$0xff] %v4511
        %4768 = vst [vmem:[%s424 + $0x280] sm:$0xff] %v4512
        %4769 = vst [vmem:[%s424 + $0x288] sm:$0xff] %v4513
        %4770 = vst [vmem:[%s424 + $0x290] sm:$0xff] %v4514
        %4771 = vst [vmem:[%s424 + $0x298] sm:$0xff] %v4515
        %4772 = vst [vmem:[%s424 + $0x2a0] sm:$0xff] %v4516
        %4773 = vst [vmem:[%s424 + $0x2a8] sm:$0xff] %v4517
        %4774 = vst [vmem:[%s424 + $0x2b0] sm:$0xff] %v4518
        %4775 = vst [vmem:[%s424 + $0x2b8] sm:$0xff] %v4519
        %4776 = vst [vmem:[%s424 + $0x2c0] sm:$0xff] %v4520
        %4777 = vst [vmem:[%s424 + $0x2c8] sm:$0xff] %v4521
        %4778 = vst [vmem:[%s424 + $0x2d0] sm:$0xff] %v4522
        %4779 = vst [vmem:[%s424 + $0x2d8] sm:$0xff] %v4523
        %4780 = vst [vmem:[%s424 + $0x2e0] sm:$0xff] %v4524
        %4781 = vst [vmem:[%s424 + $0x2e8] sm:$0xff] %v4525
        %4782 = vst [vmem:[%s424 + $0x2f0] sm:$0xff] %v4526
        %4783 = vst [vmem:[%s424 + $0x2f8] sm:$0xff] %v4527
        %4784 = vst [vmem:[%s424 + $0x300] sm:$0xff] %v4528
        %4785 = vst [vmem:[%s424 + $0x308] sm:$0xff] %v4529
        %4786 = vst [vmem:[%s424 + $0x310] sm:$0xff] %v4530
        %4787 = vst [vmem:[%s424 + $0x318] sm:$0xff] %v4531
        %4788 = vst [vmem:[%s424 + $0x320] sm:$0xff] %v4532
        %4789 = vst [vmem:[%s424 + $0x328] sm:$0xff] %v4533
        %4790 = vst [vmem:[%s424 + $0x330] sm:$0xff] %v4534
        %4791 = vst [vmem:[%s424 + $0x338] sm:$0xff] %v4535
        %4792 = vst [vmem:[%s424 + $0x340] sm:$0xff] %v4536
        %4793 = vst [vmem:[%s424 + $0x348] sm:$0xff] %v4537
        %4794 = vst [vmem:[%s424 + $0x350] sm:$0xff] %v4538
        %4795 = vst [vmem:[%s424 + $0x358] sm:$0xff] %v4539
        %4796 = vst [vmem:[%s424 + $0x360] sm:$0xff] %v4540
        %4797 = vst [vmem:[%s424 + $0x368] sm:$0xff] %v4541
        %4798 = vst [vmem:[%s424 + $0x370] sm:$0xff] %v4542
        %4799 = vst [vmem:[%s424 + $0x378] sm:$0xff] %v4543
        %4800 = vst [vmem:[%s424 + $0x380] sm:$0xff] %v4544
        %4801 = vst [vmem:[%s424 + $0x388] sm:$0xff] %v4545
        %4802 = vst [vmem:[%s424 + $0x390] sm:$0xff] %v4546
        %4803 = vst [vmem:[%s424 + $0x398] sm:$0xff] %v4547
        %4804 = vst [vmem:[%s424 + $0x3a0] sm:$0xff] %v4548
        %4805 = vst [vmem:[%s424 + $0x3a8] sm:$0xff] %v4549
        %4806 = vst [vmem:[%s424 + $0x3b0] sm:$0xff] %v4550
        %4807 = vst [vmem:[%s424 + $0x3b8] sm:$0xff] %v4551
        %4808 = vst [vmem:[%s424 + $0x3c0] sm:$0xff] %v4552
        %4809 = vst [vmem:[%s424 + $0x3c8] sm:$0xff] %v4553
        %4810 = vst [vmem:[%s424 + $0x3d0] sm:$0xff] %v4554
        %4811 = vst [vmem:[%s424 + $0x3d8] sm:$0xff] %v4555
        %4812 = vst [vmem:[%s424 + $0x3e0] sm:$0xff] %v4556
        %4813 = vst [vmem:[%s424 + $0x3e8] sm:$0xff] %v4557
        %4814 = vst [vmem:[%s424 + $0x3f0] sm:$0xff] %v4558
        %4815 = vst [vmem:[%s424 + $0x3f8] sm:$0xff] %v4559
        %4816 = vst [vmem:[%s424 + $0x400] sm:$0xff] %v4560
        %4817 = vst [vmem:[%s424 + $0x408] sm:$0xff] %v4561
        %4818 = vst [vmem:[%s424 + $0x410] sm:$0xff] %v4562
        %4819 = vst [vmem:[%s424 + $0x418] sm:$0xff] %v4563
        %4820 = vst [vmem:[%s424 + $0x420] sm:$0xff] %v4564
        %4821 = vst [vmem:[%s424 + $0x428] sm:$0xff] %v4565
        %4822 = vst [vmem:[%s424 + $0x430] sm:$0xff] %v4566
        %4823 = vst [vmem:[%s424 + $0x438] sm:$0xff] %v4567
        %4824 = vst [vmem:[%s424 + $0x440] sm:$0xff] %v4568
        %4825 = vst [vmem:[%s424 + $0x448] sm:$0xff] %v4569
        %4826 = vst [vmem:[%s424 + $0x450] sm:$0xff] %v4570
        %4827 = vst [vmem:[%s424 + $0x458] sm:$0xff] %v4571
        %4828 = vst [vmem:[%s424 + $0x460] sm:$0xff] %v4572
        %4829 = vst [vmem:[%s424 + $0x468] sm:$0xff] %v4573
        %4830 = vst [vmem:[%s424 + $0x470] sm:$0xff] %v4574
        %4831 = vst [vmem:[%s424 + $0x478] sm:$0xff] %v4575
        %4832 = vst [vmem:[%s424 + $0x480] sm:$0xff] %v4576
        %4833 = vst [vmem:[%s424 + $0x488] sm:$0xff] %v4577
        %4834 = vst [vmem:[%s424 + $0x490] sm:$0xff] %v4578
        %4835 = vst [vmem:[%s424 + $0x498] sm:$0xff] %v4579
        %4836 = vst [vmem:[%s424 + $0x4a0] sm:$0xff] %v4580
        %4837 = vst [vmem:[%s424 + $0x4a8] sm:$0xff] %v4581
        %4838 = vst [vmem:[%s424 + $0x4b0] sm:$0xff] %v4582
        %4839 = vst [vmem:[%s424 + $0x4b8] sm:$0xff] %v4583
        %4840 = vst [vmem:[%s424 + $0x4c0] sm:$0xff] %v4584
        %4841 = vst [vmem:[%s424 + $0x4c8] sm:$0xff] %v4585
        %4842 = vst [vmem:[%s424 + $0x4d0] sm:$0xff] %v4586
        %4843 = vst [vmem:[%s424 + $0x4d8] sm:$0xff] %v4587
        %4844 = vst [vmem:[%s424 + $0x4e0] sm:$0xff] %v4588
        %4845 = vst [vmem:[%s424 + $0x4e8] sm:$0xff] %v4589
        %4846 = vst [vmem:[%s424 + $0x4f0] sm:$0xff] %v4590
        %4847 = vst [vmem:[%s424 + $0x4f8] sm:$0xff] %v4591
        %4848 = vst [vmem:[%s424 + $0x500] sm:$0xff] %v4592
        %4849 = vst [vmem:[%s424 + $0x508] sm:$0xff] %v4593
        %4850 = vst [vmem:[%s424 + $0x510] sm:$0xff] %v4594
        %4851 = vst [vmem:[%s424 + $0x518] sm:$0xff] %v4595
        %4852 = vst [vmem:[%s424 + $0x520] sm:$0xff] %v4596
        %4853 = vst [vmem:[%s424 + $0x528] sm:$0xff] %v4597
        %4854 = vst [vmem:[%s424 + $0x530] sm:$0xff] %v4598
        %4855 = vst [vmem:[%s424 + $0x538] sm:$0xff] %v4599
        %4856 = vst [vmem:[%s424 + $0x540] sm:$0xff] %v4600
        %4857 = vst [vmem:[%s424 + $0x548] sm:$0xff] %v4601
        %4858 = vst [vmem:[%s424 + $0x550] sm:$0xff] %v4602
        %4859 = vst [vmem:[%s424 + $0x558] sm:$0xff] %v4603
        %4860 = vst [vmem:[%s424 + $0x560] sm:$0xff] %v4604
        %4861 = vst [vmem:[%s424 + $0x568] sm:$0xff] %v4605
        %4862 = vst [vmem:[%s424 + $0x570] sm:$0xff] %v4606
        %4863 = vst [vmem:[%s424 + $0x578] sm:$0xff] %v4607
        %4864 = vst [vmem:[%s424 + $0x580] sm:$0xff] %v4608
        %4865 = vst [vmem:[%s424 + $0x588] sm:$0xff] %v4609
        %4866 = vst [vmem:[%s424 + $0x590] sm:$0xff] %v4610
        %4867 = vst [vmem:[%s424 + $0x598] sm:$0xff] %v4611
        %4868 = vst [vmem:[%s424 + $0x5a0] sm:$0xff] %v4612
        %4869 = vst [vmem:[%s424 + $0x5a8] sm:$0xff] %v4613
        %4870 = vst [vmem:[%s424 + $0x5b0] sm:$0xff] %v4614
        %4871 = vst [vmem:[%s424 + $0x5b8] sm:$0xff] %v4615
        %4872 = vst [vmem:[%s424 + $0x5c0] sm:$0xff] %v4616
        %4873 = vst [vmem:[%s424 + $0x5c8] sm:$0xff] %v4617
        %4874 = vst [vmem:[%s424 + $0x5d0] sm:$0xff] %v4618
        %4875 = vst [vmem:[%s424 + $0x5d8] sm:$0xff] %v4619
        %4876 = vst [vmem:[%s424 + $0x5e0] sm:$0xff] %v4620
        %4877 = vst [vmem:[%s424 + $0x5e8] sm:$0xff] %v4621
        %4878 = vst [vmem:[%s424 + $0x5f0] sm:$0xff] %v4622
        %4879 = vst [vmem:[%s424 + $0x5f8] sm:$0xff] %v4623
        %4880 = vst [vmem:[%s424 + $0x600] sm:$0xff] %v4624
        %4881 = vst [vmem:[%s424 + $0x608] sm:$0xff] %v4625
        %4882 = vst [vmem:[%s424 + $0x610] sm:$0xff] %v4626
        %4883 = vst [vmem:[%s424 + $0x618] sm:$0xff] %v4627
        %4884 = vst [vmem:[%s424 + $0x620] sm:$0xff] %v4628
        %4885 = vst [vmem:[%s424 + $0x628] sm:$0xff] %v4629
        %4886 = vst [vmem:[%s424 + $0x630] sm:$0xff] %v4630
        %4887 = vst [vmem:[%s424 + $0x638] sm:$0xff] %v4631
        %4888 = vst [vmem:[%s424 + $0x640] sm:$0xff] %v4632
        %4889 = vst [vmem:[%s424 + $0x648] sm:$0xff] %v4633
        %4890 = vst [vmem:[%s424 + $0x650] sm:$0xff] %v4634
        %4891 = vst [vmem:[%s424 + $0x658] sm:$0xff] %v4635
        %4892 = vst [vmem:[%s424 + $0x660] sm:$0xff] %v4636
        %4893 = vst [vmem:[%s424 + $0x668] sm:$0xff] %v4637
        %4894 = vst [vmem:[%s424 + $0x670] sm:$0xff] %v4638
        %4895 = vst [vmem:[%s424 + $0x678] sm:$0xff] %v4639
        %4896 = vst [vmem:[%s424 + $0x680] sm:$0xff] %v4640
        %4897 = vst [vmem:[%s424 + $0x688] sm:$0xff] %v4641
        %4898 = vst [vmem:[%s424 + $0x690] sm:$0xff] %v4642
        %4899 = vst [vmem:[%s424 + $0x698] sm:$0xff] %v4643
        %4900 = vst [vmem:[%s424 + $0x6a0] sm:$0xff] %v4644
        %4901 = vst [vmem:[%s424 + $0x6a8] sm:$0xff] %v4645
        %4902 = vst [vmem:[%s424 + $0x6b0] sm:$0xff] %v4646
        %4903 = vst [vmem:[%s424 + $0x6b8] sm:$0xff] %v4647
        %4904 = vst [vmem:[%s424 + $0x6c0] sm:$0xff] %v4648
        %4905 = vst [vmem:[%s424 + $0x6c8] sm:$0xff] %v4649
        %4906 = vst [vmem:[%s424 + $0x6d0] sm:$0xff] %v4650
        %4907 = vst [vmem:[%s424 + $0x6d8] sm:$0xff] %v4651
        %4908 = vst [vmem:[%s424 + $0x6e0] sm:$0xff] %v4652
        %4909 = vst [vmem:[%s424 + $0x6e8] sm:$0xff] %v4653
        %4910 = vst [vmem:[%s424 + $0x6f0] sm:$0xff] %v4654
        %4911 = vst [vmem:[%s424 + $0x6f8] sm:$0xff] %v4655
        %4912 = vst [vmem:[%s424 + $0x700] sm:$0xff] %v4656
        %4913 = vst [vmem:[%s424 + $0x708] sm:$0xff] %v4657
        %4914 = vst [vmem:[%s424 + $0x710] sm:$0xff] %v4658
        %4915 = vst [vmem:[%s424 + $0x718] sm:$0xff] %v4659
        %4916 = vst [vmem:[%s424 + $0x720] sm:$0xff] %v4660
        %4917 = vst [vmem:[%s424 + $0x728] sm:$0xff] %v4661
        %4918 = vst [vmem:[%s424 + $0x730] sm:$0xff] %v4662
        %4919 = vst [vmem:[%s424 + $0x738] sm:$0xff] %v4663
        %4920 = vst [vmem:[%s424 + $0x740] sm:$0xff] %v4664
        %4921 = vst [vmem:[%s424 + $0x748] sm:$0xff] %v4665
        %4922 = vst [vmem:[%s424 + $0x750] sm:$0xff] %v4666
        %4923 = vst [vmem:[%s424 + $0x758] sm:$0xff] %v4667
        %4924 = vst [vmem:[%s424 + $0x760] sm:$0xff] %v4668
        %4925 = vst [vmem:[%s424 + $0x768] sm:$0xff] %v4669
        %4926 = vst [vmem:[%s424 + $0x770] sm:$0xff] %v4670
        %4927 = vst [vmem:[%s424 + $0x778] sm:$0xff] %v4671
        %4928 = vst [vmem:[%s424 + $0x780] sm:$0xff] %v4672
        %4929 = vst [vmem:[%s424 + $0x788] sm:$0xff] %v4673
        %4930 = vst [vmem:[%s424 + $0x790] sm:$0xff] %v4674
        %4931 = vst [vmem:[%s424 + $0x798] sm:$0xff] %v4675
        %4932 = vst [vmem:[%s424 + $0x7a0] sm:$0xff] %v4676
        %4933 = vst [vmem:[%s424 + $0x7a8] sm:$0xff] %v4677
        %4934 = vst [vmem:[%s424 + $0x7b0] sm:$0xff] %v4678
        %4935 = vst [vmem:[%s424 + $0x7b8] sm:$0xff] %v4679
        %4936 = vst [vmem:[%s424 + $0x7c0] sm:$0xff] %v4680
        %4937 = vst [vmem:[%s424 + $0x7c8] sm:$0xff] %v4681
        %4938 = vst [vmem:[%s424 + $0x7d0] sm:$0xff] %v4682
        %4939 = vst [vmem:[%s424 + $0x7d8] sm:$0xff] %v4683
        %4940 = vst [vmem:[%s424 + $0x7e0] sm:$0xff] %v4684
        %4941 = vst [vmem:[%s424 + $0x7e8] sm:$0xff] %v4685
        %4942 = vst [vmem:[%s424 + $0x7f0] sm:$0xff] %v4686
        %4943 = vst [vmem:[%s424 + $0x7f8] sm:$0xff] %v4687
        %s4944 = sand.u32 %s207, 1
        %s4945 = scalar_lea.sflag [#allocation4], %s4944
        %s4946 = sand.u32 %s207, 1
        %s4947 = smul.addr %s4946, 2048
        %s4948 = scalar_lea.vmem [#allocation10], %s4947
        // Predicated region
        $region61: #{tpu_custom_call.1} parent=43 // pred_check
          %p4949 = pneg %p217
        $region62: #{tpu_custom_call.1} parent=43 // pred_check_branch
          %4951 = sbr.rel (%p4949) target = $region64
        $region63: #{tpu_custom_call.1} parent=43 // pred_region
          %s4952 = smul.u32 64, %s33
          %s4953 = smul.u32 4, %s34
          %s4955 = ssub.s32 32768, 32768
          %4956 = vsyncadd %s4945, %s4955
          %s4957 = smul.addr %s4952, 8
          %s4958 = sadd.s32 %s4953, %s4957
          %s4959 = smul.addr %s4958, 128
          %s4960 = scalar_lea.hbm %s6, %s4959
          %s4961 = sshll.u32 %s4948, 4
          %s4962 = int_to_ptr.vmem [resolvable:$true] %s4961
          %4967 = dma.vmem_to_hbm [thread:$0]  %s4962, 32768, %s4960, %s4945, 512, 1024, 32
        $region64: #{tpu_custom_call.1} parent=43 // pred_fallthru
          _
      $region44: #{tpu_custom_call.1} parent=5 // pred_fallthru
        _
      %p4968 = scmp.le.s32.totalorder 2, %s24
      // Predicated region
      $region65: #{tpu_custom_call.1} parent=5 // pred_check
        %p4969 = pneg %p4968
      $region66: #{tpu_custom_call.1} parent=5 // pred_check_branch
        %4971 = sbr.rel (%p4969) target = $region68
      $region67: #{tpu_custom_call.1} parent=5 // pred_region
        %s4972 = ssub.s32 %s24, 2
        // Predicated region
        $region69: #{tpu_custom_call.1} parent=67 // pred_check
          %p4973 = pneg %p223
        $region70: #{tpu_custom_call.1} parent=67 // pred_check_branch
          %4975 = sbr.rel (%p4973) target = $region72
        $region71: #{tpu_custom_call.1} parent=67 // pred_region
          %s4976 = sand.u32 %s208, 1
          %s4977 = scalar_lea.sflag [#allocation4], %s4976
          %s4978 = sand.u32 %s208, 1
          %s4979 = smul.addr %s4978, 2048
          %s4980 = scalar_lea.vmem [#allocation10], %s4979
          %4981 = dma.done %s4977, 32768
        $region72: #{tpu_custom_call.1} parent=67 // pred_fallthru
          _
      $region68: #{tpu_custom_call.1} parent=5 // pred_fallthru
        _
    $region6: #{tpu_custom_call.1} parent=1 // loop_footer
      %s28 = sadd.s32 1, %s24
    $region7: #{tpu_custom_call.1} parent=1 // loop_footer_branch
      %23 = sbr.rel target = $region3
    $region8: #{tpu_custom_call.1} parent=1 // loop_exit
      _
    %4982 = vsyncpa [#allocation3], 1
    %s4983 = scalar_lea.sflag [#allocation3], 1
    %4984 = vsyncpa %s4983, 1
    %4985 = vsyncpa [#allocation6], 1
    %s4986 = scalar_lea.sflag [#allocation6], 1
    %4987 = vsyncpa %s4986, 1
    %4988 = vsyncpa [#allocation9], 1
    %s4989 = scalar_lea.sflag [#allocation9], 1
    %4990 = vsyncpa %s4989, 1
    %4991 = vsyncpa [#allocation4], 1
    %s4992 = scalar_lea.sflag [#allocation4], 1
    %4993 = vsyncpa %s4992, 1

</llo_original>
